<compile_context>
chip_gen: v7x
topology: tpu7x:2x2x1
jax: 0.10.0
libtpu: 0.0.40
codegen_flags: <defaults>
</compile_context>

<pallas_src>
import functools
import math

import jax
import jax.numpy as jnp
from jax.experimental import pallas as pl
from jax.experimental.pallas import tpu as pltpu


def _round_up(n, m):
    return ((n + m - 1) // m) * m


def _pad_to(x, axis, target):
    n = x.shape[axis]
    if n == target:
        return x
    pads = [(0, 0)] * x.ndim
    pads[axis] = (0, target - n)
    return jnp.pad(x, pads)


# ----------------------------------------------------------------------------
# Kernel 1: fused RPN head with in-kernel im2col
#   hidden = relu(sum_{dy,dx} shift(x, dy, dx) @ Wconv[dy,dx] + bconv)
#   fused  = hidden @ [Wloc | Wscore | Wdiff | 0] + b   (one lane-dense matmul)
#   fg cols <- sigmoid(diff)  (softmax fg prob; tanh form, overflow-safe)
# ----------------------------------------------------------------------------
def _rpn_head_kernel(tile_h, wrow, fg_lo, fg_hi,
                     x2_ref, wconv_ref, bconv_ref, wheads_ref, bheads_ref,
                     out_ref):
    rows = tile_h * wrow            # output rows handled this step (mult of 8)
    halo = 2 * wrow + 2             # flat-row halo of the 3x3 window
    cmid = wconv_ref.shape[-1]

    base = pl.multiple_of(pl.program_id(0) * rows, 8)
    # One aligned VMEM load of the row slab (+halo).  The nine conv taps are
    # static slices of this value (cheap f32 sublane shifts) -> in-kernel
    # im2col, the feature map is read from HBM exactly once.
    slab = x2_ref[pl.ds(base, rows + halo), :].astype(jnp.float32)

    acc = jnp.broadcast_to(bconv_ref[...], (rows, cmid))     # f32, bias folded
    for s in range(9):
        off = (s // 3) * wrow + (s % 3)                      # dy*wrow + dx
        tap = slab[off:off + rows, :].astype(jnp.bfloat16)   # (rows, Cin_p)
        acc = acc + jnp.dot(tap, wconv_ref[s],
                            preferred_element_type=jnp.float32)
    hidden = jnp.maximum(acc, 0.0)                           # relu(conv + b)

    # Fused 1x1 heads: [loc | score | (fg-bg) diff | zero pad], 128 lanes.
    fused = jnp.dot(hidden.astype(jnp.bfloat16), wheads_ref[...],
                    preferred_element_type=jnp.float32) + bheads_ref[...]

    # fg prob = softmax over (bg, fg) = sigmoid(s_fg - s_bg).  The tanh form
    # never overflows, so evaluating it on the unused columns is harmless.
    fg = 0.5 * (jnp.tanh(0.5 * fused) + 1.0)
    col = jax.lax.broadcasted_iota(jnp.int32, fused.shape, 1)
    out_ref[...] = jnp.where((col >= fg_lo) & (col < fg_hi), fg, fused)


def prepare_rpn_head_params(params, n_anchor):
    """Fuse / pad / cast the RPN weights once (hoisted out of the fwd path)."""
    wconv, bconv, wloc, bloc, wscore, bscore = params
    k_h, k_w, cin, cmid = wconv.shape
    assert (k_h, k_w) == (3, 3)
    a = n_anchor
    cin_p = _round_up(cin, 128)
    cmid_p = _round_up(cmid, 128)
    n_p = _round_up(7 * a, 128)

    # 3x3 conv weight as 9 (Cin_p, Cmid_p) bf16 tap matrices.
    w9 = wconv.reshape(9, cin, cmid)
    w9 = _pad_to(_pad_to(w9, 1, cin_p), 2, cmid_p).astype(jnp.bfloat16)
    bconv_p = _pad_to(bconv.reshape(1, cmid), 1, cmid_p).astype(jnp.float32)

    # Fused 1x1 heads: loc (4A) | score (2A) | fg-bg diff (A), padded to 128.
    wdiff = wscore[:, 1::2] - wscore[:, 0::2]
    bdiff = bscore[1::2] - bscore[0::2]
    wheads = jnp.concatenate([wloc, wscore, wdiff], axis=1)          # (Cmid,7A)
    bheads = jnp.concatenate([bloc, bscore, bdiff])                  # (7A,)
    wheads_p = _pad_to(_pad_to(wheads, 0, cmid_p), 1, n_p).astype(jnp.bfloat16)
    bheads_p = _pad_to(bheads.reshape(1, 7 * a), 1, n_p).astype(jnp.float32)

    return dict(w9=w9, bconv=bconv_p, wheads=wheads_p, bheads=bheads_p,
                cin=cin, cin_p=cin_p, cmid_p=cmid_p, n_anchor=a, n_p=n_p)


def rpn_head_forward(x_nchw, prep, *, target_rows=256, vmem_limit_mb=32):
    """RPN head forward. Returns (loc, score, fg_score) exactly like _RPN."""
    n, cin, h, w = x_nchw.shape
    assert n == 1, "RPN forward assumes n = 1 (as in the PyTorch module)"
    assert cin == prep["cin"]
    a, cin_p, cmid_p, n_p = (prep["n_anchor"], prep["cin_p"],
                             prep["cmid_p"], prep["n_p"])
    hw = h * w
    wrow = w + 2                                   # padded row width

    # Row tile: ~target_rows matrix rows per step; tile_h*wrow % 8 == 0 so the
    # slab base stays sublane-aligned.  target_rows=256 is a good default for
    # v7x (keeps >= 2 grid steps per TC) and v5e; use ~512 on v6e.
    step = 8 // math.gcd(wrow, 8)
    tile_h = max(1, target_rows // wrow)
    tile_h = max(step, (tile_h // step) * step)
    tile_h = min(tile_h, _round_up(h, step))
    h_p = _round_up(h, tile_h)
    rows = tile_h * wrow
    grid = (h_p // tile_h,)

    # Activation glue (cheap, read-once): NCHW -> HWC, bf16 cast FIRST, SAME
    # pad + bottom pad to h_p, channel pad to a lane-dense 128 multiple, then
    # flatten (row, col) so every conv tap is a contiguous flat-row slice.
    x_hwc = jnp.transpose(x_nchw[0], (1, 2, 0)).astype(jnp.bfloat16)
    xp = jnp.pad(x_hwc, ((1, 1 + h_p - h), (1, 1), (0, cin_p - cin)))
    r2 = _round_up((h_p + 2) * wrow + 2, 8)        # +2 covers last-tap overrun
    x2 = _pad_to(xp.reshape((h_p + 2) * wrow, cin_p), 0, r2)

    kernel = functools.partial(_rpn_head_kernel, tile_h, wrow, 6 * a, 7 * a)
    # Grid-invariant operands: single-buffered (no wasted VMEM double buffer).
    resident = functools.partial(pl.BlockSpec,
                                 pipeline_mode=pl.Buffered(buffer_count=1))

    out = pl.pallas_call(
        kernel,
        out_shape=jax.ShapeDtypeStruct((h_p * wrow, n_p), jnp.float32),
        grid=grid,
        in_specs=[
            resident((r2, cin_p), lambda i: (0, 0)),           # feature map
            resident((9, cin_p, cmid_p), lambda i: (0, 0, 0)),  # conv weight
            resident((1, cmid_p), lambda i: (0, 0)),            # conv bias
            resident((cmid_p, n_p), lambda i: (0, 0)),           # fused heads W
            resident((1, n_p), lambda i: (0, 0)),                # fused heads b
        ],
        out_specs=pl.BlockSpec((rows, n_p), lambda i: (i, 0)),
        compiler_params=pltpu.CompilerParams(
            dimension_semantics=("parallel",),
            # Toy default.  For real Cin=512-1024 raise to ~48-56 MiB on v7x
            # (64 MiB physical VMEM) and ~64-100 MiB on v5e/v6e (128 MiB).
            vmem_limit_bytes=vmem_limit_mb * 1024 * 1024,
        ),
    )(x2, prep["w9"], prep["bconv"], prep["wheads"], prep["bheads"])

    # Glue epilogue: drop the bottom-pad garbage rows and the 2 garbage right
    # columns (finite values only; never consumed), slice the PyTorch views.
    out = out.reshape(h_p, wrow, n_p)[:h, :w, :7 * a].reshape(hw, 7 * a)
    loc = out[:, :4 * a].reshape(1, hw * a, 4)
    score = out[:, 4 * a:6 * a].reshape(1, hw * a, 2)
    fg = out[:, 6 * a:].reshape(1, hw * a)
    return loc, score, fg


# ----------------------------------------------------------------------------
# Kernel 2: bbox_regression_loss (smooth L1)
#   Lane-dense (4, M_pad) layout; gt_label passed once, masks derived in-kernel
#   (cuts the loss kernel's HBM input traffic ~45%); scalar result -> SMEM.
# ----------------------------------------------------------------------------
def _bbox_loss_kernel(sigma2, pred_ref, gt_ref, label_ref, out_ref):
    label = label_ref[...]                                 # (1, Mp) int32
    in_w = (label > 0).astype(jnp.float32)                 # positives only
    diff = in_w * (pred_ref[...] - gt_ref[...])            # (4, Mp) broadcast
    abs_diff = jnp.abs(diff)
    flag = (abs_diff < (1.0 / sigma2)).astype(jnp.float32)
    y = (flag * (0.5 * sigma2) * diff * diff
         + (1.0 - flag) * (abs_diff - 0.5 / sigma2))
    cnt = jnp.maximum(jnp.sum((label >= 0).astype(jnp.float32)), 1.0)
    out_ref[0, 0] = jnp.sum(y) / cnt


def bbox_regression_loss(pred_loc, gt_loc, gt_label, sigma):
    m = pred_loc.shape[0]
    m_p = _round_up(m, 128)
    pred_t = _pad_to(pred_loc.T.astype(jnp.float32), 1, m_p)   # (4, Mp)
    gt_t = _pad_to(gt_loc.T.astype(jnp.float32), 1, m_p)
    label = jnp.pad(gt_label.reshape(1, m).astype(jnp.int32),
                    ((0, 0), (0, m_p - m)), constant_values=-1)  # pads ignored

    vmem = pl.BlockSpec(memory_space=pltpu.MemorySpace.VMEM)
    out = pl.pallas_call(
        functools.partial(_bbox_loss_kernel, float(sigma) ** 2),
        out_shape=jax.ShapeDtypeStruct((1, 1), jnp.float32),
        in_specs=[vmem, vmem, vmem],
        out_specs=pl.BlockSpec(memory_space=pltpu.MemorySpace.SMEM),
    )(pred_t, gt_t, label)
    # TODO(synk): for much larger anchor sets, switch to a row-block grid with
    # a scalar accumulator so the reduction is pipelined against the DMAs.
    return out[0, 0]


# TODO(synk): _ProposalLayer (anchor decode + clip + NMS), _ProposalTargetLayer
# and _AnchorTargetLayer (IoU matching + random sampling) are data-dependent,
# variable-size ops with no clean Pallas equivalent; not implemented here.
# TODO(synk): rpn_cls_loss (cross_entropy with ignore_index=-1) depends on the
# anchor target layer output and is left to host-side JAX if needed.


# ----------------------------------------------------------------------------
# main
# ----------------------------------------------------------------------------
if __name__ == "__main__":
    key = jax.random.PRNGKey(0)
    (k_x, k_c, k_bc, k_l, k_bl, k_s, k_bs, k_gt, k_lab) = jax.random.split(key, 9)

    # small, module-consistent shapes (RPN forward is n = 1)
    n, in_chs, mid_chs, h, w = 1, 8, 16, 16, 16
    scales, ratios = [8.0], [0.5, 1.0, 2.0]
    n_anchor = len(scales) * len(ratios)          # 3
    rpn_sigma = 3.0

    # rpn_conv weight stored as (3, 3, Cin, Cmid) (HWIO); 1x1 heads (Cmid, Cout).
    # (the module zero-inits biases; small nonzero ones here exercise the path)
    wconv = 0.01 * jax.random.normal(k_c, (3, 3, in_chs, mid_chs), jnp.float32)
    bconv = 0.01 * jax.random.normal(k_bc, (mid_chs,), jnp.float32)
    wloc = 0.01 * jax.random.normal(k_l, (mid_chs, n_anchor * 4), jnp.float32)
    bloc = 0.01 * jax.random.normal(k_bl, (n_anchor * 4,), jnp.float32)
    wscore = 0.01 * jax.random.normal(k_s, (mid_chs, n_anchor * 2), jnp.float32)
    bscore = 0.01 * jax.random.normal(k_bs, (n_anchor * 2,), jnp.float32)
    params = (wconv, bconv, wloc, bloc, wscore, bscore)

    x = jax.random.normal(k_x, (n, in_chs, h, w), jnp.float32)   # NCHW input

    prep = prepare_rpn_head_params(params, n_anchor)   # hoisted weight prep
    loc, score, fg = rpn_head_forward(x, prep)
    loc, score, fg = jax.block_until_ready((loc, score, fg))

    # ---- reference (plain JAX), mirroring the kernel's bf16 input rounding --
    bf = lambda t_: t_.astype(jnp.bfloat16).astype(jnp.float32)
    x_q, wconv_q, wloc_q, wscore_q = bf(x), bf(wconv), bf(wloc), bf(wscore)
    hid = jax.lax.conv_general_dilated(
        x_q, wconv_q, (1, 1), "SAME",
        dimension_numbers=("NCHW", "HWIO", "NCHW"))
    hid = jax.nn.relu(hid + bconv.reshape(1, mid_chs, 1, 1))
    hid_q = bf(hid)
    loc_map = jnp.einsum("nchw,cd->nhwd", hid_q, wloc_q) + bloc
    score_map = jnp.einsum("nchw,cd->nhwd", hid_q, wscore_q) + bscore
    loc_ref = loc_map.reshape(1, h * w * n_anchor, 4)
    score_ref = score_map.reshape(1, h * w * n_anchor, 2)
    fg_ref = jax.nn.softmax(
        score_map.reshape(1, h, w, n_anchor, 2), axis=-1)[..., 1].reshape(1, -1)

    assert jnp.allclose(loc, loc_ref, atol=1e-5, rtol=1e-3), "loc mismatch"
    assert jnp.allclose(score, score_ref, atol=1e-5, rtol=1e-3), "score mismatch"
    # fg differs only by the bf16 rounding of the folded (fg-bg) weight column.
    assert jnp.allclose(fg, fg_ref, atol=2e-3, rtol=1e-3), "fg mismatch"

    # ---- smooth-L1 bbox regression loss kernel (synthetic targets) ---------
    m = h * w * n_anchor
    gt_loc = jax.random.normal(k_gt, (m, 4), jnp.float32)
    gt_label = jax.random.randint(k_lab, (m,), -1, 2, jnp.int32)   # {-1,0,1}
    loss = bbox_regression_loss(loc[0], gt_loc, gt_label, rpn_sigma)
    loss = jax.block_until_ready(loss)

    # reference loss
    sigma2 = rpn_sigma ** 2
    w_pos = (gt_label > 0).astype(jnp.float32)[:, None]
    d = w_pos * (loc[0] - gt_loc)
    ad = jnp.abs(d)
    fl = (ad < 1.0 / sigma2).astype(jnp.float32)
    y_ref = fl * (sigma2 / 2.0) * d * d + (1.0 - fl) * (ad - 0.5 / sigma2)
    denom = jnp.maximum((gt_label >= 0).sum().astype(jnp.float32), 1.0)
    loss_ref = jnp.sum(y_ref) / denom
    assert jnp.allclose(loss, loss_ref, atol=1e-5, rtol=1e-4), "loss mismatch"

    print("KERNEL_OK")
</pallas_src>

<mosaic_0001>
module attributes {stable_mosaic.version = 11 : i64} {
  func.func @_rpn_head_kernel(%arg0: i32, %arg1: memref<472x128xbf16, #tpu.memory_space<vmem>>, %arg2: memref<9x128x128xbf16, #tpu.memory_space<vmem>>, %arg3: memref<1x128xf32, #tpu.memory_space<vmem>>, %arg4: memref<128x128xbf16, #tpu.memory_space<vmem>>, %arg5: memref<1x128xf32, #tpu.memory_space<vmem>>, %arg6: memref<216x128xf32, #tpu.memory_space<vmem>>) attributes {dimension_semantics = [#tpu.dimension_semantics<parallel>], iteration_bounds = array<i64: 2>, scalar_prefetch = 0 : i64, scratch_operands = 0 : i64, tpu.core_type = #tpu.core_type<tc>, window_params = [{pipeline_mode = #tpu.pipeline_mode<synchronous>, transform_indices = @transform_0, window_bounds = array<i64: 472, 128>}, {pipeline_mode = #tpu.pipeline_mode<synchronous>, transform_indices = @transform_1, window_bounds = array<i64: 9, 128, 128>}, {pipeline_mode = #tpu.pipeline_mode<synchronous>, transform_indices = @transform_2, window_bounds = array<i64: 1, 128>}, {pipeline_mode = #tpu.pipeline_mode<synchronous>, transform_indices = @transform_3, window_bounds = array<i64: 128, 128>}, {pipeline_mode = #tpu.pipeline_mode<synchronous>, transform_indices = @transform_4, window_bounds = array<i64: 1, 128>}, {transform_indices = @transform_5, window_bounds = array<i64: 216, 128>}]} {
    %c216_i32 = arith.constant 216 : i32
    %0 = arith.muli %arg0, %c216_i32 : i32
    %1 = tpu.assume_multiple %0, 8 : i32
    %2 = arith.index_cast %1 : i32 to index
    %c0 = arith.constant 0 : index
    %3 = vector.load %arg1[%2, %c0] : memref<472x128xbf16, #tpu.memory_space<vmem>>, vector<254x128xbf16>
    %4 = arith.extf %3 : vector<254x128xbf16> to vector<254x128xf32>
    %c0_0 = arith.constant 0 : index
    %c0_1 = arith.constant 0 : index
    %5 = vector.load %arg3[%c0_0, %c0_1] : memref<1x128xf32, #tpu.memory_space<vmem>>, vector<1x128xf32>
    %6 = vector.shape_cast %5 : vector<1x128xf32> to vector<1x128xf32>
    %7 = vector.broadcast %6 : vector<1x128xf32> to vector<216x128xf32>
    %8 = vector.extract_strided_slice %4 {offsets = [0, 0], sizes = [216, 128], strides = [1, 1]} : vector<254x128xf32> to vector<216x128xf32>
    %9 = arith.truncf %8 : vector<216x128xf32> to vector<216x128xbf16>
    %c0_2 = arith.constant 0 : index
    %c0_3 = arith.constant 0 : index
    %c0_4 = arith.constant 0 : index
    %10 = vector.load %arg2[%c0_2, %c0_3, %c0_4] : memref<9x128x128xbf16, #tpu.memory_space<vmem>>, vector<1x128x128xbf16>
    %11 = vector.shape_cast %10 : vector<1x128x128xbf16> to vector<128x128xbf16>
    %cst = arith.constant dense<0.000000e+00> : vector<216x128xf32>
    %12 = tpu.matmul %9, %11, %cst {dimension_numbers = #tpu.dot_dimension_numbers<[1], [0], [0], [1], [0, 0, 1, 1], [], []>} : vector<216x128xbf16>, vector<128x128xbf16>, vector<216x128xf32> -> vector<216x128xf32>
    %13 = arith.addf %7, %12 : vector<216x128xf32>
    %14 = vector.extract_strided_slice %4 {offsets = [1, 0], sizes = [216, 128], strides = [1, 1]} : vector<254x128xf32> to vector<216x128xf32>
    %15 = arith.truncf %14 : vector<216x128xf32> to vector<216x128xbf16>
    %c1 = arith.constant 1 : index
    %c0_5 = arith.constant 0 : index
    %c0_6 = arith.constant 0 : index
    %16 = vector.load %arg2[%c1, %c0_5, %c0_6] : memref<9x128x128xbf16, #tpu.memory_space<vmem>>, vector<1x128x128xbf16>
    %17 = vector.shape_cast %16 : vector<1x128x128xbf16> to vector<128x128xbf16>
    %cst_7 = arith.constant dense<0.000000e+00> : vector<216x128xf32>
    %18 = tpu.matmul %15, %17, %cst_7 {dimension_numbers = #tpu.dot_dimension_numbers<[1], [0], [0], [1], [0, 0, 1, 1], [], []>} : vector<216x128xbf16>, vector<128x128xbf16>, vector<216x128xf32> -> vector<216x128xf32>
    %19 = arith.addf %13, %18 : vector<216x128xf32>
    %20 = vector.extract_strided_slice %4 {offsets = [2, 0], sizes = [216, 128], strides = [1, 1]} : vector<254x128xf32> to vector<216x128xf32>
    %21 = arith.truncf %20 : vector<216x128xf32> to vector<216x128xbf16>
    %c2 = arith.constant 2 : index
    %c0_8 = arith.constant 0 : index
    %c0_9 = arith.constant 0 : index
    %22 = vector.load %arg2[%c2, %c0_8, %c0_9] : memref<9x128x128xbf16, #tpu.memory_space<vmem>>, vector<1x128x128xbf16>
    %23 = vector.shape_cast %22 : vector<1x128x128xbf16> to vector<128x128xbf16>
    %cst_10 = arith.constant dense<0.000000e+00> : vector<216x128xf32>
    %24 = tpu.matmul %21, %23, %cst_10 {dimension_numbers = #tpu.dot_dimension_numbers<[1], [0], [0], [1], [0, 0, 1, 1], [], []>} : vector<216x128xbf16>, vector<128x128xbf16>, vector<216x128xf32> -> vector<216x128xf32>
    %25 = arith.addf %19, %24 : vector<216x128xf32>
    %26 = vector.extract_strided_slice %4 {offsets = [18, 0], sizes = [216, 128], strides = [1, 1]} : vector<254x128xf32> to vector<216x128xf32>
    %27 = arith.truncf %26 : vector<216x128xf32> to vector<216x128xbf16>
    %c3 = arith.constant 3 : index
    %c0_11 = arith.constant 0 : index
    %c0_12 = arith.constant 0 : index
    %28 = vector.load %arg2[%c3, %c0_11, %c0_12] : memref<9x128x128xbf16, #tpu.memory_space<vmem>>, vector<1x128x128xbf16>
    %29 = vector.shape_cast %28 : vector<1x128x128xbf16> to vector<128x128xbf16>
    %cst_13 = arith.constant dense<0.000000e+00> : vector<216x128xf32>
    %30 = tpu.matmul %27, %29, %cst_13 {dimension_numbers = #tpu.dot_dimension_numbers<[1], [0], [0], [1], [0, 0, 1, 1], [], []>} : vector<216x128xbf16>, vector<128x128xbf16>, vector<216x128xf32> -> vector<216x128xf32>
    %31 = arith.addf %25, %30 : vector<216x128xf32>
    %32 = vector.extract_strided_slice %4 {offsets = [19, 0], sizes = [216, 128], strides = [1, 1]} : vector<254x128xf32> to vector<216x128xf32>
    %33 = arith.truncf %32 : vector<216x128xf32> to vector<216x128xbf16>
    %c4 = arith.constant 4 : index
    %c0_14 = arith.constant 0 : index
    %c0_15 = arith.constant 0 : index
    %34 = vector.load %arg2[%c4, %c0_14, %c0_15] : memref<9x128x128xbf16, #tpu.memory_space<vmem>>, vector<1x128x128xbf16>
    %35 = vector.shape_cast %34 : vector<1x128x128xbf16> to vector<128x128xbf16>
    %cst_16 = arith.constant dense<0.000000e+00> : vector<216x128xf32>
    %36 = tpu.matmul %33, %35, %cst_16 {dimension_numbers = #tpu.dot_dimension_numbers<[1], [0], [0], [1], [0, 0, 1, 1], [], []>} : vector<216x128xbf16>, vector<128x128xbf16>, vector<216x128xf32> -> vector<216x128xf32>
    %37 = arith.addf %31, %36 : vector<216x128xf32>
    %38 = vector.extract_strided_slice %4 {offsets = [20, 0], sizes = [216, 128], strides = [1, 1]} : vector<254x128xf32> to vector<216x128xf32>
    %39 = arith.truncf %38 : vector<216x128xf32> to vector<216x128xbf16>
    %c5 = arith.constant 5 : index
    %c0_17 = arith.constant 0 : index
    %c0_18 = arith.constant 0 : index
    %40 = vector.load %arg2[%c5, %c0_17, %c0_18] : memref<9x128x128xbf16, #tpu.memory_space<vmem>>, vector<1x128x128xbf16>
    %41 = vector.shape_cast %40 : vector<1x128x128xbf16> to vector<128x128xbf16>
    %cst_19 = arith.constant dense<0.000000e+00> : vector<216x128xf32>
    %42 = tpu.matmul %39, %41, %cst_19 {dimension_numbers = #tpu.dot_dimension_numbers<[1], [0], [0], [1], [0, 0, 1, 1], [], []>} : vector<216x128xbf16>, vector<128x128xbf16>, vector<216x128xf32> -> vector<216x128xf32>
    %43 = arith.addf %37, %42 : vector<216x128xf32>
    %44 = vector.extract_strided_slice %4 {offsets = [36, 0], sizes = [216, 128], strides = [1, 1]} : vector<254x128xf32> to vector<216x128xf32>
    %45 = arith.truncf %44 : vector<216x128xf32> to vector<216x128xbf16>
    %c6 = arith.constant 6 : index
    %c0_20 = arith.constant 0 : index
    %c0_21 = arith.constant 0 : index
    %46 = vector.load %arg2[%c6, %c0_20, %c0_21] : memref<9x128x128xbf16, #tpu.memory_space<vmem>>, vector<1x128x128xbf16>
    %47 = vector.shape_cast %46 : vector<1x128x128xbf16> to vector<128x128xbf16>
    %cst_22 = arith.constant dense<0.000000e+00> : vector<216x128xf32>
    %48 = tpu.matmul %45, %47, %cst_22 {dimension_numbers = #tpu.dot_dimension_numbers<[1], [0], [0], [1], [0, 0, 1, 1], [], []>} : vector<216x128xbf16>, vector<128x128xbf16>, vector<216x128xf32> -> vector<216x128xf32>
    %49 = arith.addf %43, %48 : vector<216x128xf32>
    %50 = vector.extract_strided_slice %4 {offsets = [37, 0], sizes = [216, 128], strides = [1, 1]} : vector<254x128xf32> to vector<216x128xf32>
    %51 = arith.truncf %50 : vector<216x128xf32> to vector<216x128xbf16>
    %c7 = arith.constant 7 : index
    %c0_23 = arith.constant 0 : index
    %c0_24 = arith.constant 0 : index
    %52 = vector.load %arg2[%c7, %c0_23, %c0_24] : memref<9x128x128xbf16, #tpu.memory_space<vmem>>, vector<1x128x128xbf16>
    %53 = vector.shape_cast %52 : vector<1x128x128xbf16> to vector<128x128xbf16>
    %cst_25 = arith.constant dense<0.000000e+00> : vector<216x128xf32>
    %54 = tpu.matmul %51, %53, %cst_25 {dimension_numbers = #tpu.dot_dimension_numbers<[1], [0], [0], [1], [0, 0, 1, 1], [], []>} : vector<216x128xbf16>, vector<128x128xbf16>, vector<216x128xf32> -> vector<216x128xf32>
    %55 = arith.addf %49, %54 : vector<216x128xf32>
    %56 = vector.extract_strided_slice %4 {offsets = [38, 0], sizes = [216, 128], strides = [1, 1]} : vector<254x128xf32> to vector<216x128xf32>
    %57 = arith.truncf %56 : vector<216x128xf32> to vector<216x128xbf16>
    %c8 = arith.constant 8 : index
    %c0_26 = arith.constant 0 : index
    %c0_27 = arith.constant 0 : index
    %58 = vector.load %arg2[%c8, %c0_26, %c0_27] : memref<9x128x128xbf16, #tpu.memory_space<vmem>>, vector<1x128x128xbf16>
    %59 = vector.shape_cast %58 : vector<1x128x128xbf16> to vector<128x128xbf16>
    %cst_28 = arith.constant dense<0.000000e+00> : vector<216x128xf32>
    %60 = tpu.matmul %57, %59, %cst_28 {dimension_numbers = #tpu.dot_dimension_numbers<[1], [0], [0], [1], [0, 0, 1, 1], [], []>} : vector<216x128xbf16>, vector<128x128xbf16>, vector<216x128xf32> -> vector<216x128xf32>
    %61 = arith.addf %55, %60 : vector<216x128xf32>
    %cst_29 = arith.constant 0.000000e+00 : f32
    %62 = vector.broadcast %cst_29 : f32 to vector<216x128xf32>
    %63 = arith.maximumf %61, %62 : vector<216x128xf32>
    %64 = arith.truncf %63 : vector<216x128xf32> to vector<216x128xbf16>
    %c0_30 = arith.constant 0 : index
    %c0_31 = arith.constant 0 : index
    %65 = vector.load %arg4[%c0_30, %c0_31] : memref<128x128xbf16, #tpu.memory_space<vmem>>, vector<128x128xbf16>
    %cst_32 = arith.constant dense<0.000000e+00> : vector<216x128xf32>
    %66 = tpu.matmul %64, %65, %cst_32 {dimension_numbers = #tpu.dot_dimension_numbers<[1], [0], [0], [1], [0, 0, 1, 1], [], []>} : vector<216x128xbf16>, vector<128x128xbf16>, vector<216x128xf32> -> vector<216x128xf32>
    %c0_33 = arith.constant 0 : index
    %c0_34 = arith.constant 0 : index
    %67 = vector.load %arg5[%c0_33, %c0_34] : memref<1x128xf32, #tpu.memory_space<vmem>>, vector<1x128xf32>
    %68 = vector.broadcast %67 : vector<1x128xf32> to vector<216x128xf32>
    %69 = arith.addf %66, %68 : vector<216x128xf32>
    %cst_35 = arith.constant 5.000000e-01 : f32
    %70 = vector.broadcast %cst_35 : f32 to vector<216x128xf32>
    %71 = arith.mulf %70, %69 : vector<216x128xf32>
    %72 = math.tanh %71 : vector<216x128xf32>
    %cst_36 = arith.constant 1.000000e+00 : f32
    %73 = vector.broadcast %cst_36 : f32 to vector<216x128xf32>
    %74 = arith.addf %72, %73 : vector<216x128xf32>
    %cst_37 = arith.constant 5.000000e-01 : f32
    %75 = vector.broadcast %cst_37 : f32 to vector<216x128xf32>
    %76 = arith.mulf %75, %74 : vector<216x128xf32>
    %77 = tpu.iota {dimensions = array<i32: 1>} : vector<216x128xi32>
    %c18_i32 = arith.constant 18 : i32
    %78 = vector.broadcast %c18_i32 : i32 to vector<216x128xi32>
    %79 = arith.cmpi sge, %77, %78 : vector<216x128xi32>
    %c21_i32 = arith.constant 21 : i32
    %80 = vector.broadcast %c21_i32 : i32 to vector<216x128xi32>
    %81 = arith.cmpi slt, %77, %80 : vector<216x128xi32>
    %82 = arith.andi %79, %81 : vector<216x128xi1>
    %83 = arith.select %82, %76, %69 : vector<216x128xi1>, vector<216x128xf32>
    %c0_38 = arith.constant 0 : index
    %c0_39 = arith.constant 0 : index
    %84 = vector.load %arg6[%c0_38, %c0_39] : memref<216x128xf32, #tpu.memory_space<vmem>>, vector<216x128xf32>
    tpu.vector_store %arg6[%c0_38, %c0_39], %83 {strides = array<i32>} : memref<216x128xf32, #tpu.memory_space<vmem>>, vector<216x128xf32>,
    return
  }
  func.func @transform_0(%arg0: i32) -> (i32, i32) {
    %c0_i32 = arith.constant 0 : i32
    %c0_i32_0 = arith.constant 0 : i32
    %c0_i32_1 = arith.constant 0 : i32
    return %c0_i32, %c0_i32_0 : i32, i32
  }
  func.func @transform_1(%arg0: i32) -> (i32, i32, i32) {
    %c0_i32 = arith.constant 0 : i32
    %c0_i32_0 = arith.constant 0 : i32
    %c0_i32_1 = arith.constant 0 : i32
    %c0_i32_2 = arith.constant 0 : i32
    return %c0_i32, %c0_i32_0, %c0_i32_1 : i32, i32, i32
  }
  func.func @transform_2(%arg0: i32) -> (i32, i32) {
    %c0_i32 = arith.constant 0 : i32
    %c0_i32_0 = arith.constant 0 : i32
    %c0_i32_1 = arith.constant 0 : i32
    return %c0_i32, %c0_i32_0 : i32, i32
  }
  func.func @transform_3(%arg0: i32) -> (i32, i32) {
    %c0_i32 = arith.constant 0 : i32
    %c0_i32_0 = arith.constant 0 : i32
    %c0_i32_1 = arith.constant 0 : i32
    return %c0_i32, %c0_i32_0 : i32, i32
  }
  func.func @transform_4(%arg0: i32) -> (i32, i32) {
    %c0_i32 = arith.constant 0 : i32
    %c0_i32_0 = arith.constant 0 : i32
    %c0_i32_1 = arith.constant 0 : i32
    return %c0_i32, %c0_i32_0 : i32, i32
  }
  func.func @transform_5(%arg0: i32) -> (i32, i32) {
    %c0_i32 = arith.constant 0 : i32
    %c0_i32_0 = arith.constant 0 : i32
    return %arg0, %c0_i32 : i32, i32
  }
}

</mosaic_0001>

<llo_original>
// kernel: tpu_custom_call.1
$region0: #{tpu_custom_call.1}
  #allocation0 [shape = 'u32[]', space=smem, size = 0x4, offset = 0x4, fixed_abs, tag = 'smem constant byte address 0x4 - core index']
  #allocation1 [shape = 'u32[144,128]{1,0:T(1,128)}', space=vmem, size = 0x12000, scoped, tag = 'internal scratch']
  %s0 = inlined_call_operand.hbm [shape: bf16[472,128], index: 0, kind: input, shape index: {}]
  %s1 = inlined_call_operand.hbm [shape: bf16[9,128,128], index: 1, kind: input, shape index: {}]
  %s2 = inlined_call_operand.vmem [shape: f32[1,128], index: 2, kind: input, shape index: {}]
  %s3 = inlined_call_operand.hbm [shape: bf16[128,128], index: 3, kind: input, shape index: {}]
  %s4 = inlined_call_operand.vmem [shape: f32[1,128], index: 4, kind: input, shape index: {}]
  %s5 = inlined_call_operand.hbm [shape: f32[432,128], index: 5, kind: output, shape index: {}]
  %s6 = sld [smem:[#allocation0]]
  $region65: #{tpu_custom_call.1} parent=0
    _
  %s8 = ssub.s32 1, %s6
  %s9 = scalar_select 0, %s8, %s6
  $region1: #{tpu_custom_call.1} parent=0
    #allocation2 [shape = 'u8[120832]{0}', space=vmem, size = 0x1d800, scoped, tag = 'input window, operand 0, single buffered']
    #allocation3 [shape = 's32[2]{0}', space=sflag, size = 0x8, scoped, tag = 'scoped memory for tpu_custom_call.1']
    #allocation4 [shape = 's32[2]{0}', space=sflag, size = 0x8, scoped, tag = 'scoped memory for tpu_custom_call.1']
    #allocation5 [shape = 'u8[294912]{0}', space=vmem, size = 0x48000, scoped, tag = 'input window, operand 1, single buffered']
    #allocation6 [shape = 's32[1]{0}', space=sflag, size = 0x4, scoped, tag = 'scoped memory for tpu_custom_call.1']
    #allocation7 [shape = 'u8[32768]{0}', space=vmem, size = 0x8000, scoped, tag = 'input window, operand 3, single buffered']
    #allocation8 [shape = 'u8[221184]{0}', space=vmem, size = 0x36000, scoped, tag = 'output window, operand 0']
    %10 = vsyncpa [#allocation3], 0
    %11 = vsyncpa [#allocation6], 0
    %12 = vsyncpa [#allocation4], 0
    %s13 = scalar_lea.sflag [#allocation4], 1
    %14 = vsyncpa %s13, 0
    loop: start=0, step=1, limit=4
    $region2: #{tpu_custom_call.1} parent=1 // loop_pre_header
      _
    $region3: #{tpu_custom_call.1} parent=1 // loop_header
      %s16 = sphi 0, %s20
      %p17 = scmp.ge.s32.totalorder %s16, 4
      %s24 = sphi 0, %s24
      %s26 = sphi 0, %s24
      %s27 = sphi 0, %s26
      %s41 = sphi 0, %s27
      %s45 = sphi 0, %s45
      %s47 = sphi 0, %s45
      %s48 = sphi 0, %s47
      %s62 = sphi 0, %s48
      %s66 = sphi 0, %s66
      %s68 = sphi 0, %s66
      %s69 = sphi 0, %s68
      %s83 = sphi 0, %s69
      %s87 = sphi 0, %s87
      %s89 = sphi 0, %s87
      %s90 = sphi 0, %s89
      %s104 = sphi 0, %s90
      %s108 = sphi 0, %s108
      %s110 = sphi 0, %s108
      %s111 = sphi 0, %s110
      %s125 = sphi 0, %s111
      %s131 = sphi 0, %s133
      %s134 = sphi 0, %s131
      %s135 = sphi 0, %s134
      %s151 = sphi 0, %s135
    $region4: #{tpu_custom_call.1} parent=1 // loop_header_branch
      %19 = sbr.rel (%p17) target = $region8
    $region5: #{tpu_custom_call.1} parent=1 // loop_body
      %s21 = ssub.s32 %s16, 1
      %s22 = ssub.s32 %s16, 2
      %s23 = sadd.s32 %s16, 1
      %s25 = sadd.s32 %s24, 1
      %p28 = scmp.eq.s32.totalorder %s16, 1
      %p29 = scmp.ne.s32.totalorder %s24, %s26
      %p30 = scmp.eq.s32.totalorder %s16, 0
      %p31 = por %p29, %p30
      %p32 = scmp.ne.s32.totalorder %s24, %s26
      %p33 = scmp.eq.s32.totalorder %s21, 1
      %p34 = por %p32, %p33
      %p35 = scmp.ne.s32.totalorder %s26, %s27
      %p36 = scmp.eq.s32.totalorder %s21, 0
      %p37 = por %p35, %p36
      %p38 = scmp.ne.s32.totalorder %s26, %s27
      %p39 = scmp.eq.s32.totalorder %s22, 1
      %p40 = por %p38, %p39
      %p42 = scmp.ne.s32.totalorder %s27, %s41
      %p43 = scmp.eq.s32.totalorder %s22, 0
      %p44 = por %p42, %p43
      %s46 = sadd.s32 %s45, 1
      %p49 = scmp.eq.s32.totalorder %s16, 1
      %p50 = scmp.ne.s32.totalorder %s45, %s47
      %p51 = scmp.eq.s32.totalorder %s16, 0
      %p52 = por %p50, %p51
      %p53 = scmp.ne.s32.totalorder %s45, %s47
      %p54 = scmp.eq.s32.totalorder %s21, 1
      %p55 = por %p53, %p54
      %p56 = scmp.ne.s32.totalorder %s47, %s48
      %p57 = scmp.eq.s32.totalorder %s21, 0
      %p58 = por %p56, %p57
      %p59 = scmp.ne.s32.totalorder %s47, %s48
      %p60 = scmp.eq.s32.totalorder %s22, 1
      %p61 = por %p59, %p60
      %p63 = scmp.ne.s32.totalorder %s48, %s62
      %p64 = scmp.eq.s32.totalorder %s22, 0
      %p65 = por %p63, %p64
      %s67 = sadd.s32 %s66, 1
      %p70 = scmp.eq.s32.totalorder %s16, 1
      %p71 = scmp.ne.s32.totalorder %s66, %s68
      %p72 = scmp.eq.s32.totalorder %s16, 0
      %p73 = por %p71, %p72
      %p74 = scmp.ne.s32.totalorder %s66, %s68
      %p75 = scmp.eq.s32.totalorder %s21, 1
      %p76 = por %p74, %p75
      %p77 = scmp.ne.s32.totalorder %s68, %s69
      %p78 = scmp.eq.s32.totalorder %s21, 0
      %p79 = por %p77, %p78
      %p80 = scmp.ne.s32.totalorder %s68, %s69
      %p81 = scmp.eq.s32.totalorder %s22, 1
      %p82 = por %p80, %p81
      %p84 = scmp.ne.s32.totalorder %s69, %s83
      %p85 = scmp.eq.s32.totalorder %s22, 0
      %p86 = por %p84, %p85
      %s88 = sadd.s32 %s87, 1
      %p91 = scmp.eq.s32.totalorder %s16, 1
      %p92 = scmp.ne.s32.totalorder %s87, %s89
      %p93 = scmp.eq.s32.totalorder %s16, 0
      %p94 = por %p92, %p93
      %p95 = scmp.ne.s32.totalorder %s87, %s89
      %p96 = scmp.eq.s32.totalorder %s21, 1
      %p97 = por %p95, %p96
      %p98 = scmp.ne.s32.totalorder %s89, %s90
      %p99 = scmp.eq.s32.totalorder %s21, 0
      %p100 = por %p98, %p99
      %p101 = scmp.ne.s32.totalorder %s89, %s90
      %p102 = scmp.eq.s32.totalorder %s22, 1
      %p103 = por %p101, %p102
      %p105 = scmp.ne.s32.totalorder %s90, %s104
      %p106 = scmp.eq.s32.totalorder %s22, 0
      %p107 = por %p105, %p106
      %s109 = sadd.s32 %s108, 1
      %p112 = scmp.eq.s32.totalorder %s16, 1
      %p113 = scmp.ne.s32.totalorder %s108, %s110
      %p114 = scmp.eq.s32.totalorder %s16, 0
      %p115 = por %p113, %p114
      %p116 = scmp.ne.s32.totalorder %s108, %s110
      %p117 = scmp.eq.s32.totalorder %s21, 1
      %p118 = por %p116, %p117
      %p119 = scmp.ne.s32.totalorder %s110, %s111
      %p120 = scmp.eq.s32.totalorder %s21, 0
      %p121 = por %p119, %p120
      %p122 = scmp.ne.s32.totalorder %s110, %s111
      %p123 = scmp.eq.s32.totalorder %s22, 1
      %p124 = por %p122, %p123
      %p126 = scmp.ne.s32.totalorder %s111, %s125
      %p127 = scmp.eq.s32.totalorder %s22, 0
      %p128 = por %p126, %p127
      %s129 = ssub.s32 %s16, %s23
      %p130 = scmp.eq.s32.totalorder %s129, 0
      %s132 = sadd.s32 %s131, 1
      %s133 = scalar_select %p130, %s131, %s132
      %p136 = pneg %p130
      %p137 = scmp.eq.s32.totalorder %s16, 1
      %p138 = por %p136, %p137
      %p139 = scmp.ne.s32.totalorder %s131, %s134
      %p140 = scmp.eq.s32.totalorder %s16, 0
      %p141 = por %p139, %p140
      %p142 = scmp.ne.s32.totalorder %s131, %s134
      %p143 = scmp.eq.s32.totalorder %s21, 1
      %p144 = por %p142, %p143
      %p145 = scmp.ne.s32.totalorder %s134, %s135
      %p146 = scmp.eq.s32.totalorder %s21, 0
      %p147 = por %p145, %p146
      %p148 = scmp.ne.s32.totalorder %s134, %s135
      %p149 = scmp.eq.s32.totalorder %s22, 1
      %p150 = por %p148, %p149
      %p152 = scmp.ne.s32.totalorder %s135, %s151
      %p153 = scmp.eq.s32.totalorder %s22, 0
      %p154 = por %p152, %p153
      %p155 = scmp.le.s32.totalorder 1, %s16
      %p156 = scmp.lt.s32.totalorder %s16, 3
      %p157 = pnand %p155, %p156
      %p158 = pneg %p157
      // Predicated region
      $region9: #{tpu_custom_call.1} parent=5 // pred_check
        _
      $region10: #{tpu_custom_call.1} parent=5 // pred_check_branch
        %160 = sbr.rel (%p157) target = $region12
      $region11: #{tpu_custom_call.1} parent=5 // pred_region
        %s161 = ssub.s32 %s16, 1
        // Predicated region
        $region13: #{tpu_custom_call.1} parent=11 // pred_check
          %p162 = pneg %p37
        $region14: #{tpu_custom_call.1} parent=11 // pred_check_branch
          %164 = sbr.rel (%p162) target = $region16
        $region15: #{tpu_custom_call.1} parent=11 // pred_region
          %s166 = ssub.s32 3776, 3776
          %167 = vsyncadd [#allocation3], %s166
          %s168 = sshll.u32 [#allocation2], 4
          %s169 = int_to_ptr.vmem [resolvable:$true] %s168
          %174 = dma.hbm_to_vmem [thread:$0]  %s0, 3776, %s169, [#allocation3], 64, 64, 4
        $region16: #{tpu_custom_call.1} parent=11 // pred_fallthru
          _
        // Predicated region
        $region17: #{tpu_custom_call.1} parent=11 // pred_check
          %p175 = pneg %p58
        $region18: #{tpu_custom_call.1} parent=11 // pred_check_branch
          %177 = sbr.rel (%p175) target = $region20
        $region19: #{tpu_custom_call.1} parent=11 // pred_region
          %s179 = ssub.s32 9216, 9216
          %180 = vsyncadd [#allocation6], %s179
          %s181 = sshll.u32 [#allocation5], 4
          %s182 = int_to_ptr.vmem [resolvable:$true] %s181
          %187 = dma.hbm_to_vmem [thread:$0]  %s1, 9216, %s182, [#allocation6], 64, 64, 4
        $region20: #{tpu_custom_call.1} parent=11 // pred_fallthru
          _
        // Predicated region
        $region21: #{tpu_custom_call.1} parent=11 // pred_check
          %p188 = pneg %p79
        $region22: #{tpu_custom_call.1} parent=11 // pred_check_branch
          %190 = sbr.rel (%p188) target = $region24
        $region23: #{tpu_custom_call.1} parent=11 // pred_region
          _
        $region24: #{tpu_custom_call.1} parent=11 // pred_fallthru
          _
        // Predicated region
        $region25: #{tpu_custom_call.1} parent=11 // pred_check
          %p191 = pneg %p100
        $region26: #{tpu_custom_call.1} parent=11 // pred_check_branch
          %193 = sbr.rel (%p191) target = $region28
        $region27: #{tpu_custom_call.1} parent=11 // pred_region
          %s195 = ssub.s32 1024, 1024
          %196 = vsyncadd [#allocation6], %s195
          %s197 = sshll.u32 [#allocation7], 4
          %s198 = int_to_ptr.vmem [resolvable:$true] %s197
          %203 = dma.hbm_to_vmem [thread:$0]  %s3, 1024, %s198, [#allocation6], 64, 64, 4
        $region28: #{tpu_custom_call.1} parent=11 // pred_fallthru
          _
        // Predicated region
        $region29: #{tpu_custom_call.1} parent=11 // pred_check
          %p204 = pneg %p121
        $region30: #{tpu_custom_call.1} parent=11 // pred_check_branch
          %206 = sbr.rel (%p204) target = $region32
        $region31: #{tpu_custom_call.1} parent=11 // pred_region
          _
        $region32: #{tpu_custom_call.1} parent=11 // pred_fallthru
          _
      $region12: #{tpu_custom_call.1} parent=5 // pred_fallthru
        _
      %p207 = scmp.lt.s32.totalorder %s16, 2
      // Predicated region
      $region33: #{tpu_custom_call.1} parent=5 // pred_check
        %p208 = pneg %p207
      $region34: #{tpu_custom_call.1} parent=5 // pred_check_branch
        %210 = sbr.rel (%p208) target = $region36
      $region35: #{tpu_custom_call.1} parent=5 // pred_region
        _
      $region36: #{tpu_custom_call.1} parent=5 // pred_fallthru
        _
      %p211 = scmp.le.s32.totalorder 1, %s16
      %p212 = scmp.lt.s32.totalorder %s16, 3
      %p213 = pnand %p211, %p212
      %p214 = pneg %p213
      // Predicated region
      $region37: #{tpu_custom_call.1} parent=5 // pred_check
        _
      $region38: #{tpu_custom_call.1} parent=5 // pred_check_branch
        %216 = sbr.rel (%p213) target = $region40
      $region39: #{tpu_custom_call.1} parent=5 // pred_region
        %s217 = ssub.s32 %s16, 1
        // Predicated region
        $region41: #{tpu_custom_call.1} parent=39 // pred_check
          %p218 = pneg %p37
        $region42: #{tpu_custom_call.1} parent=39 // pred_check_branch
          %220 = sbr.rel (%p218) target = $region44
        $region43: #{tpu_custom_call.1} parent=39 // pred_region
          %221 = dma.done [#allocation3], 3776
        $region44: #{tpu_custom_call.1} parent=39 // pred_fallthru
          _
        // Predicated region
        $region45: #{tpu_custom_call.1} parent=39 // pred_check
          %p222 = pneg %p58
        $region46: #{tpu_custom_call.1} parent=39 // pred_check_branch
          %224 = sbr.rel (%p222) target = $region48
        $region47: #{tpu_custom_call.1} parent=39 // pred_region
          %225 = dma.done [#allocation6], 9216
        $region48: #{tpu_custom_call.1} parent=39 // pred_fallthru
          _
        // Predicated region
        $region49: #{tpu_custom_call.1} parent=39 // pred_check
          %p226 = pneg %p100
        $region50: #{tpu_custom_call.1} parent=39 // pred_check_branch
          %228 = sbr.rel (%p226) target = $region52
        $region51: #{tpu_custom_call.1} parent=39 // pred_region
          %229 = dma.done [#allocation6], 1024
        $region52: #{tpu_custom_call.1} parent=39 // pred_fallthru
          _
        %p230 = pneg %p37
        %p231 = pneg %p34
        %p232 = pneg %p58
        %p233 = pneg %p55
        %p234 = pneg %p79
        %p235 = pneg %p76
        %p236 = pneg %p100
        %p237 = pneg %p97
        %p238 = pneg %p121
        %p239 = pneg %p118
        %p240 = pneg %p147
        %p241 = pneg %p144
        %s242 = sand.u32 %s134, 1
        %s243 = scalar_lea.sflag [#allocation4], %s242
        %s244 = sand.u32 %s134, 1
        %s245 = smul.addr %s244, 216
        %s246 = scalar_lea.vmem [#allocation8], %s245
        %s247 = smul.u32 27, %s21
        %s249 = smul.u32 %s21, 216
        %s250 = sshra.s32 %s249, 3
        %s251 = sand.u32 %s249, 7
        %s252 = smul.addr %s250, 4
        %s253 = scalar_lea.vmem [#allocation2], %s252
        %v254 = vld [vmem:[%s253] sm:$0xf]
        %v255 = vld [vmem:[%s253 + $0x4] sm:$0xf]
        %v256 = vld [vmem:[%s253 + $0x8] sm:$0xf]
        %v257 = vld [vmem:[%s253 + $0xc] sm:$0xf]
        %v258 = vld [vmem:[%s253 + $0x10] sm:$0xf]
        %v259 = vld [vmem:[%s253 + $0x14] sm:$0xf]
        %v260 = vld [vmem:[%s253 + $0x18] sm:$0xf]
        %v261 = vld [vmem:[%s253 + $0x1c] sm:$0xf]
        %v262 = vld [vmem:[%s253 + $0x20] sm:$0xf]
        %v263 = vld [vmem:[%s253 + $0x24] sm:$0xf]
        %v264 = vld [vmem:[%s253 + $0x28] sm:$0xf]
        %v265 = vld [vmem:[%s253 + $0x2c] sm:$0xf]
        %v266 = vld [vmem:[%s253 + $0x30] sm:$0xf]
        %v267 = vld [vmem:[%s253 + $0x34] sm:$0xf]
        %v268 = vld [vmem:[%s253 + $0x38] sm:$0xf]
        %v269 = vld [vmem:[%s253 + $0x3c] sm:$0xf]
        %v270 = vld [vmem:[%s253 + $0x40] sm:$0xf]
        %v271 = vld [vmem:[%s253 + $0x44] sm:$0xf]
        %v272 = vld [vmem:[%s253 + $0x48] sm:$0xf]
        %v273 = vld [vmem:[%s253 + $0x4c] sm:$0xf]
        %v274 = vld [vmem:[%s253 + $0x50] sm:$0xf]
        %v275 = vld [vmem:[%s253 + $0x54] sm:$0xf]
        %v276 = vld [vmem:[%s253 + $0x58] sm:$0xf]
        %v277 = vld [vmem:[%s253 + $0x5c] sm:$0xf]
        %v278 = vld [vmem:[%s253 + $0x60] sm:$0xf]
        %v279 = vld [vmem:[%s253 + $0x64] sm:$0xf]
        %v280 = vld [vmem:[%s253 + $0x68] sm:$0xf]
        %v281 = vld [vmem:[%s253 + $0x6c] sm:$0xf]
        %v282 = vld [vmem:[%s253 + $0x70] sm:$0xf]
        %v283 = vld [vmem:[%s253 + $0x74] sm:$0xf]
        %v284 = vld [vmem:[%s253 + $0x78] sm:$0xf]
        %v285 = vld [vmem:[%s253 + $0x7c] sm:$0x7]
        %v286 = vunpack.c.l.bf16 %v254
        %v287 = vunpack.c.l.bf16 %v255
        %v288 = vunpack.c.l.bf16 %v256
        %v289 = vunpack.c.l.bf16 %v257
        %v290 = vunpack.c.l.bf16 %v258
        %v291 = vunpack.c.l.bf16 %v259
        %v292 = vunpack.c.l.bf16 %v260
        %v293 = vunpack.c.l.bf16 %v261
        %v294 = vunpack.c.l.bf16 %v262
        %v295 = vunpack.c.l.bf16 %v263
        %v296 = vunpack.c.l.bf16 %v264
        %v297 = vunpack.c.l.bf16 %v265
        %v298 = vunpack.c.l.bf16 %v266
        %v299 = vunpack.c.l.bf16 %v267
        %v300 = vunpack.c.l.bf16 %v268
        %v301 = vunpack.c.l.bf16 %v269
        %v302 = vunpack.c.l.bf16 %v270
        %v303 = vunpack.c.l.bf16 %v271
        %v304 = vunpack.c.l.bf16 %v272
        %v305 = vunpack.c.l.bf16 %v273
        %v306 = vunpack.c.l.bf16 %v274
        %v307 = vunpack.c.l.bf16 %v275
        %v308 = vunpack.c.l.bf16 %v276
        %v309 = vunpack.c.l.bf16 %v277
        %v310 = vunpack.c.l.bf16 %v278
        %v311 = vunpack.c.l.bf16 %v279
        %v312 = vunpack.c.l.bf16 %v280
        %v313 = vunpack.c.l.bf16 %v281
        %v314 = vunpack.c.l.bf16 %v282
        %v315 = vunpack.c.l.bf16 %v283
        %v316 = vunpack.c.l.bf16 %v284
        %v317 = vunpack.c.l.bf16 %v285
        %v318 = vld [vmem:[%s2] sm:$0x1]
        %v320 = vlaneseq
        %v321 = vshrl.u32 %v320, 7
        %v322 = vsub.s32 0, %v321
        %v323 = vrot.slane %v318, %v322
        %v325 = vpack.c.bf16 %v287, %v286
        %v326 = vpack.c.bf16 %v289, %v288
        %v327 = vpack.c.bf16 %v291, %v290
        %v328 = vpack.c.bf16 %v293, %v292
        %v329 = vpack.c.bf16 %v295, %v294
        %v330 = vpack.c.bf16 %v297, %v296
        %v331 = vpack.c.bf16 %v299, %v298
        %v332 = vpack.c.bf16 %v301, %v300
        %v333 = vpack.c.bf16 %v303, %v302
        %v334 = vpack.c.bf16 %v305, %v304
        %v335 = vpack.c.bf16 %v307, %v306
        %v336 = vpack.c.bf16 %v309, %v308
        %v337 = vpack.c.bf16 %v311, %v310
        %v338 = vpack.c.bf16 %v312, %v312
        %v339 = vld [vmem:[#allocation5] sm:$0xf]
        %v340 = vld [vmem:[#allocation5 + $0x4] sm:$0xf]
        %v341 = vld [vmem:[#allocation5 + $0x8] sm:$0xf]
        %v342 = vld [vmem:[#allocation5 + $0xc] sm:$0xf]
        %v343 = vld [vmem:[#allocation5 + $0x10] sm:$0xf]
        %v344 = vld [vmem:[#allocation5 + $0x14] sm:$0xf]
        %v345 = vld [vmem:[#allocation5 + $0x18] sm:$0xf]
        %v346 = vld [vmem:[#allocation5 + $0x1c] sm:$0xf]
        %v347 = vld [vmem:[#allocation5 + $0x20] sm:$0xf]
        %v348 = vld [vmem:[#allocation5 + $0x24] sm:$0xf]
        %v349 = vld [vmem:[#allocation5 + $0x28] sm:$0xf]
        %v350 = vld [vmem:[#allocation5 + $0x2c] sm:$0xf]
        %v351 = vld [vmem:[#allocation5 + $0x30] sm:$0xf]
        %v352 = vld [vmem:[#allocation5 + $0x34] sm:$0xf]
        %v353 = vld [vmem:[#allocation5 + $0x38] sm:$0xf]
        %v354 = vld [vmem:[#allocation5 + $0x3c] sm:$0xf]
        %v371 = vunpack.c.l.b16 %v339
        %v372 = vunpack.c.l.b16 %v340
        %v373 = vunpack.c.l.b16 %v341
        %v374 = vunpack.c.l.b16 %v342
        %v375 = vunpack.c.l.b16 %v343
        %v376 = vunpack.c.l.b16 %v344
        %v377 = vunpack.c.l.b16 %v345
        %v378 = vunpack.c.l.b16 %v346
        %v379 = vunpack.c.l.b16 %v347
        %v380 = vunpack.c.l.b16 %v348
        %v381 = vunpack.c.l.b16 %v349
        %v382 = vunpack.c.l.b16 %v350
        %v383 = vunpack.c.l.b16 %v351
        %v384 = vunpack.c.l.b16 %v352
        %v385 = vunpack.c.l.b16 %v353
        %v386 = vunpack.c.l.b16 %v354
        %v387 = vpack.c.b16 %v372, %v371
        %v388 = vpack.c.b16 %v374, %v373
        %v389 = vpack.c.b16 %v376, %v375
        %v390 = vpack.c.b16 %v378, %v377
        %v391 = vpack.c.b16 %v380, %v379
        %v392 = vpack.c.b16 %v382, %v381
        %v393 = vpack.c.b16 %v384, %v383
        %v394 = vpack.c.b16 %v386, %v385
        %403 = vmatprep.subr.bf16.mxu0 0
        %404 = vmatpush1.bf16.msra.mxu0 %v387
        %405 = vmatprep.subr.bf16.mxu0 0
        %406 = vmatpush1.bf16.msra.mxu0 %v388
        %407 = vmatprep.subr.bf16.mxu0 0
        %408 = vmatpush1.bf16.msra.mxu0 %v389
        %409 = vmatprep.subr.bf16.mxu0 0
        %410 = vmatpush1.bf16.msra.mxu0 %v390
        %411 = vmatprep.subr.bf16.mxu0 0
        %412 = vmatpush1.bf16.msra.mxu0 %v391
        %413 = vmatprep.subr.bf16.mxu0 0
        %414 = vmatpush1.bf16.msra.mxu0 %v392
        %415 = vmatprep.subr.bf16.mxu0 0
        %416 = vmatpush1.bf16.msra.mxu0 %v393
        %417 = vmatprep.subr.bf16.mxu0 0
        %418 = vmatpush1.bf16.msra.mxu0 %v394
        %419 = vmatprep.subr.bf16.mxu0 0
        %420 = vmatpush1.bf16.msra.mxu0 0
        %421 = vmatprep.subr.bf16.mxu0 0
        %422 = vmatpush1.bf16.msra.mxu0 0
        %423 = vmatprep.subr.bf16.mxu0 0
        %424 = vmatpush1.bf16.msra.mxu0 0
        %425 = vmatprep.subr.bf16.mxu0 0
        %426 = vmatpush1.bf16.msra.mxu0 0
        %427 = vmatprep.subr.bf16.mxu0 0
        %428 = vmatpush1.bf16.msra.mxu0 0
        %429 = vmatprep.subr.bf16.mxu0 0
        %430 = vmatpush1.bf16.msra.mxu0 0
        %431 = vmatprep.subr.bf16.mxu0 0
        %432 = vmatpush1.bf16.msra.mxu0 0
        %433 = vmatprep.subr.bf16.mxu0 0
        %434 = vmatpush1.bf16.msra.mxu0 0
        %435 = vmatprep.mubr.bf16.mxu0 0
        %436 = vmatmul.mubr.bf16.gmra.mrb[0].mxu0 %v325
        %v437 = vpop.f32.mrb[0].mxu0
        %v438 = vadd.f32 0.0, %v437
        %v439 = vpop.f32.mrb[0].mxu0
        %v440 = vpop.f32.mrb[0].mxu0
        %v441 = vadd.f32 0.0, %v440
        %v442 = vpop.f32.mrb[0].mxu0
        %443 = vmatprep.mubr.bf16.mxu0 0
        %444 = vmatmul.mubr.bf16.gmra.mrb[0].mxu0 %v326
        %v445 = vpop.f32.mrb[0].mxu0
        %v446 = vadd.f32 0.0, %v445
        %v447 = vpop.f32.mrb[0].mxu0
        %v448 = vpop.f32.mrb[0].mxu0
        %v449 = vadd.f32 0.0, %v448
        %v450 = vpop.f32.mrb[0].mxu0
        %451 = vmatprep.mubr.bf16.mxu0 0
        %452 = vmatmul.mubr.bf16.gmra.mrb[0].mxu0 %v327
        %v453 = vpop.f32.mrb[0].mxu0
        %v454 = vadd.f32 0.0, %v453
        %v455 = vpop.f32.mrb[0].mxu0
        %v456 = vpop.f32.mrb[0].mxu0
        %v457 = vadd.f32 0.0, %v456
        %v458 = vpop.f32.mrb[0].mxu0
        %459 = vmatprep.mubr.bf16.mxu0 0
        %460 = vmatmul.mubr.bf16.gmra.mrb[0].mxu0 %v328
        %v461 = vpop.f32.mrb[0].mxu0
        %v462 = vadd.f32 0.0, %v461
        %v463 = vpop.f32.mrb[0].mxu0
        %v464 = vpop.f32.mrb[0].mxu0
        %v465 = vadd.f32 0.0, %v464
        %v466 = vpop.f32.mrb[0].mxu0
        %467 = vmatprep.mubr.bf16.mxu0 0
        %468 = vmatmul.mubr.bf16.gmra.mrb[0].mxu0 %v329
        %v469 = vpop.f32.mrb[0].mxu0
        %v470 = vadd.f32 0.0, %v469
        %v471 = vpop.f32.mrb[0].mxu0
        %v472 = vpop.f32.mrb[0].mxu0
        %v473 = vadd.f32 0.0, %v472
        %v474 = vpop.f32.mrb[0].mxu0
        %475 = vmatprep.mubr.bf16.mxu0 0
        %476 = vmatmul.mubr.bf16.gmra.mrb[0].mxu0 %v330
        %v477 = vpop.f32.mrb[0].mxu0
        %v478 = vadd.f32 0.0, %v477
        %v479 = vpop.f32.mrb[0].mxu0
        %v480 = vpop.f32.mrb[0].mxu0
        %v481 = vadd.f32 0.0, %v480
        %v482 = vpop.f32.mrb[0].mxu0
        %483 = vmatprep.mubr.bf16.mxu0 0
        %484 = vmatmul.mubr.bf16.gmra.mrb[0].mxu0 %v331
        %v485 = vpop.f32.mrb[0].mxu0
        %v486 = vadd.f32 0.0, %v485
        %v487 = vpop.f32.mrb[0].mxu0
        %v488 = vpop.f32.mrb[0].mxu0
        %v489 = vadd.f32 0.0, %v488
        %v490 = vpop.f32.mrb[0].mxu0
        %491 = vmatprep.mubr.bf16.mxu0 0
        %492 = vmatmul.mubr.bf16.gmra.mrb[0].mxu0 %v332
        %v493 = vpop.f32.mrb[0].mxu0
        %v494 = vadd.f32 0.0, %v493
        %v495 = vpop.f32.mrb[0].mxu0
        %v496 = vpop.f32.mrb[0].mxu0
        %v497 = vadd.f32 0.0, %v496
        %v498 = vpop.f32.mrb[0].mxu0
        %499 = vmatprep.mubr.bf16.mxu0 0
        %500 = vmatmul.mubr.bf16.gmra.mrb[0].mxu0 %v333
        %v501 = vpop.f32.mrb[0].mxu0
        %v502 = vadd.f32 0.0, %v501
        %v503 = vpop.f32.mrb[0].mxu0
        %v504 = vpop.f32.mrb[0].mxu0
        %v505 = vadd.f32 0.0, %v504
        %v506 = vpop.f32.mrb[0].mxu0
        %507 = vmatprep.mubr.bf16.mxu0 0
        %508 = vmatmul.mubr.bf16.gmra.mrb[0].mxu0 %v334
        %v509 = vpop.f32.mrb[0].mxu0
        %v510 = vadd.f32 0.0, %v509
        %v511 = vpop.f32.mrb[0].mxu0
        %v512 = vpop.f32.mrb[0].mxu0
        %v513 = vadd.f32 0.0, %v512
        %v514 = vpop.f32.mrb[0].mxu0
        %515 = vmatprep.mubr.bf16.mxu0 0
        %516 = vmatmul.mubr.bf16.gmra.mrb[0].mxu0 %v335
        %v517 = vpop.f32.mrb[0].mxu0
        %v518 = vadd.f32 0.0, %v517
        %v519 = vpop.f32.mrb[0].mxu0
        %v520 = vpop.f32.mrb[0].mxu0
        %v521 = vadd.f32 0.0, %v520
        %v522 = vpop.f32.mrb[0].mxu0
        %523 = vmatprep.mubr.bf16.mxu0 0
        %524 = vmatmul.mubr.bf16.gmra.mrb[0].mxu0 %v336
        %v525 = vpop.f32.mrb[0].mxu0
        %v526 = vadd.f32 0.0, %v525
        %v527 = vpop.f32.mrb[0].mxu0
        %v528 = vpop.f32.mrb[0].mxu0
        %v529 = vadd.f32 0.0, %v528
        %v530 = vpop.f32.mrb[0].mxu0
        %531 = vmatprep.mubr.bf16.mxu0 0
        %532 = vmatmul.mubr.bf16.gmra.mrb[0].mxu0 %v337
        %v533 = vpop.f32.mrb[0].mxu0
        %v534 = vadd.f32 0.0, %v533
        %v535 = vpop.f32.mrb[0].mxu0
        %v536 = vpop.f32.mrb[0].mxu0
        %v537 = vadd.f32 0.0, %v536
        %v538 = vpop.f32.mrb[0].mxu0
        %539 = vmatprep.mubr.bf16.mxu0 0
        %540 = vmatmul.mubr.bf16.gmra.mrb[0].mxu0 %v338
        %v541 = vpop.f32.mrb[0].mxu0
        %v542 = vadd.f32 0.0, %v541
        %v543 = vpop.f32.mrb[0].mxu0
        %v544 = vpop.f32.mrb[0].mxu0
        %v545 = vpop.f32.mrb[0].mxu0
        %546 = vdwg.mxu0
        %v547 = vadd.f32 %v323, %v438
        %v548 = vadd.f32 %v323, %v441
        %v549 = vadd.f32 %v323, %v446
        %v550 = vadd.f32 %v323, %v449
        %v551 = vadd.f32 %v323, %v454
        %v552 = vadd.f32 %v323, %v457
        %v553 = vadd.f32 %v323, %v462
        %v554 = vadd.f32 %v323, %v465
        %v555 = vadd.f32 %v323, %v470
        %v556 = vadd.f32 %v323, %v473
        %v557 = vadd.f32 %v323, %v478
        %v558 = vadd.f32 %v323, %v481
        %v559 = vadd.f32 %v323, %v486
        %v560 = vadd.f32 %v323, %v489
        %v561 = vadd.f32 %v323, %v494
        %v562 = vadd.f32 %v323, %v497
        %v563 = vadd.f32 %v323, %v502
        %v564 = vadd.f32 %v323, %v505
        %v565 = vadd.f32 %v323, %v510
        %v566 = vadd.f32 %v323, %v513
        %v567 = vadd.f32 %v323, %v518
        %v568 = vadd.f32 %v323, %v521
        %v569 = vadd.f32 %v323, %v526
        %v570 = vadd.f32 %v323, %v529
        %v571 = vadd.f32 %v323, %v534
        %v572 = vadd.f32 %v323, %v537
        %v573 = vadd.f32 %v323, %v542
        %v574 = vpack.c.bf16 %v313, %v312
        %s575 = scalar_lea.vmem [#allocation5], 64
        %v576 = vld [vmem:[%s575] sm:$0xf]
        %v577 = vld [vmem:[%s575 + $0x4] sm:$0xf]
        %v578 = vld [vmem:[%s575 + $0x8] sm:$0xf]
        %v579 = vld [vmem:[%s575 + $0xc] sm:$0xf]
        %v580 = vld [vmem:[%s575 + $0x10] sm:$0xf]
        %v581 = vld [vmem:[%s575 + $0x14] sm:$0xf]
        %v582 = vld [vmem:[%s575 + $0x18] sm:$0xf]
        %v583 = vld [vmem:[%s575 + $0x1c] sm:$0xf]
        %v584 = vld [vmem:[%s575 + $0x20] sm:$0xf]
        %v585 = vld [vmem:[%s575 + $0x24] sm:$0xf]
        %v586 = vld [vmem:[%s575 + $0x28] sm:$0xf]
        %v587 = vld [vmem:[%s575 + $0x2c] sm:$0xf]
        %v588 = vld [vmem:[%s575 + $0x30] sm:$0xf]
        %v589 = vld [vmem:[%s575 + $0x34] sm:$0xf]
        %v590 = vld [vmem:[%s575 + $0x38] sm:$0xf]
        %v591 = vld [vmem:[%s575 + $0x3c] sm:$0xf]
        %vm592 = vsmask.f32 7424
        %v594 = vshrl.u32 %v325, 16
        %v596 = vshll.u32 %v325, 16
        %v598 = vrot.slane %v596, 1
        %v599 = vor.u32 %v594, %v598
        %v601 = vshll.u32 %v326, 16
        %v603 = vrot.slane %v601, 1
        %v604 = vsel %vm592, %v599, %v603
        %v605 = vshrl.u32 %v326, 16
        %v607 = vor.u32 %v605, %v603
        %v609 = vshll.u32 %v327, 16
        %v611 = vrot.slane %v609, 1
        %v612 = vsel %vm592, %v607, %v611
        %v613 = vshrl.u32 %v327, 16
        %v615 = vor.u32 %v613, %v611
        %v617 = vshll.u32 %v328, 16
        %v619 = vrot.slane %v617, 1
        %v620 = vsel %vm592, %v615, %v619
        %v621 = vshrl.u32 %v328, 16
        %v623 = vor.u32 %v621, %v619
        %v625 = vshll.u32 %v329, 16
        %v627 = vrot.slane %v625, 1
        %v628 = vsel %vm592, %v623, %v627
        %v629 = vshrl.u32 %v329, 16
        %v631 = vor.u32 %v629, %v627
        %v633 = vshll.u32 %v330, 16
        %v635 = vrot.slane %v633, 1
        %v636 = vsel %vm592, %v631, %v635
        %v637 = vshrl.u32 %v330, 16
        %v639 = vor.u32 %v637, %v635
        %v641 = vshll.u32 %v331, 16
        %v643 = vrot.slane %v641, 1
        %v644 = vsel %vm592, %v639, %v643
        %v645 = vshrl.u32 %v331, 16
        %v647 = vor.u32 %v645, %v643
        %v649 = vshll.u32 %v332, 16
        %v651 = vrot.slane %v649, 1
        %v652 = vsel %vm592, %v647, %v651
        %v653 = vshrl.u32 %v332, 16
        %v655 = vor.u32 %v653, %v651
        %v657 = vshll.u32 %v333, 16
        %v659 = vrot.slane %v657, 1
        %v660 = vsel %vm592, %v655, %v659
        %v661 = vshrl.u32 %v333, 16
        %v663 = vor.u32 %v661, %v659
        %v665 = vshll.u32 %v334, 16
        %v667 = vrot.slane %v665, 1
        %v668 = vsel %vm592, %v663, %v667
        %v669 = vshrl.u32 %v334, 16
        %v671 = vor.u32 %v669, %v667
        %v673 = vshll.u32 %v335, 16
        %v675 = vrot.slane %v673, 1
        %v676 = vsel %vm592, %v671, %v675
        %v677 = vshrl.u32 %v335, 16
        %v679 = vor.u32 %v677, %v675
        %v681 = vshll.u32 %v336, 16
        %v683 = vrot.slane %v681, 1
        %v684 = vsel %vm592, %v679, %v683
        %v685 = vshrl.u32 %v336, 16
        %v687 = vor.u32 %v685, %v683
        %v689 = vshll.u32 %v337, 16
        %v691 = vrot.slane %v689, 1
        %v692 = vsel %vm592, %v687, %v691
        %v693 = vshrl.u32 %v337, 16
        %v695 = vor.u32 %v693, %v691
        %v697 = vshll.u32 %v574, 16
        %v699 = vrot.slane %v697, 1
        %v700 = vsel %vm592, %v695, %v699
        %v701 = vshrl.u32 %v574, 16
        %v703 = vor.u32 %v701, %v699
        %v734 = vunpack.c.l.b16 %v576
        %v735 = vunpack.c.l.b16 %v577
        %v736 = vunpack.c.l.b16 %v578
        %v737 = vunpack.c.l.b16 %v579
        %v738 = vunpack.c.l.b16 %v580
        %v739 = vunpack.c.l.b16 %v581
        %v740 = vunpack.c.l.b16 %v582
        %v741 = vunpack.c.l.b16 %v583
        %v742 = vunpack.c.l.b16 %v584
        %v743 = vunpack.c.l.b16 %v585
        %v744 = vunpack.c.l.b16 %v586
        %v745 = vunpack.c.l.b16 %v587
        %v746 = vunpack.c.l.b16 %v588
        %v747 = vunpack.c.l.b16 %v589
        %v748 = vunpack.c.l.b16 %v590
        %v749 = vunpack.c.l.b16 %v591
        %v750 = vpack.c.b16 %v735, %v734
        %v751 = vpack.c.b16 %v737, %v736
        %v752 = vpack.c.b16 %v739, %v738
        %v753 = vpack.c.b16 %v741, %v740
        %v754 = vpack.c.b16 %v743, %v742
        %v755 = vpack.c.b16 %v745, %v744
        %v756 = vpack.c.b16 %v747, %v746
        %v757 = vpack.c.b16 %v749, %v748
        %766 = vmatprep.subr.bf16.mxu0 0
        %767 = vmatpush1.bf16.msra.mxu0 %v750
        %768 = vmatprep.subr.bf16.mxu0 0
        %769 = vmatpush1.bf16.msra.mxu0 %v751
        %770 = vmatprep.subr.bf16.mxu0 0
        %771 = vmatpush1.bf16.msra.mxu0 %v752
        %772 = vmatprep.subr.bf16.mxu0 0
        %773 = vmatpush1.bf16.msra.mxu0 %v753
        %774 = vmatprep.subr.bf16.mxu0 0
        %775 = vmatpush1.bf16.msra.mxu0 %v754
        %776 = vmatprep.subr.bf16.mxu0 0
        %777 = vmatpush1.bf16.msra.mxu0 %v755
        %778 = vmatprep.subr.bf16.mxu0 0
        %779 = vmatpush1.bf16.msra.mxu0 %v756
        %780 = vmatprep.subr.bf16.mxu0 0
        %781 = vmatpush1.bf16.msra.mxu0 %v757
        %782 = vmatprep.subr.bf16.mxu0 0
        %783 = vmatpush1.bf16.msra.mxu0 0
        %784 = vmatprep.subr.bf16.mxu0 0
        %785 = vmatpush1.bf16.msra.mxu0 0
        %786 = vmatprep.subr.bf16.mxu0 0
        %787 = vmatpush1.bf16.msra.mxu0 0
        %788 = vmatprep.subr.bf16.mxu0 0
        %789 = vmatpush1.bf16.msra.mxu0 0
        %790 = vmatprep.subr.bf16.mxu0 0
        %791 = vmatpush1.bf16.msra.mxu0 0
        %792 = vmatprep.subr.bf16.mxu0 0
        %793 = vmatpush1.bf16.msra.mxu0 0
        %794 = vmatprep.subr.bf16.mxu0 0
        %795 = vmatpush1.bf16.msra.mxu0 0
        %796 = vmatprep.subr.bf16.mxu0 0
        %797 = vmatpush1.bf16.msra.mxu0 0
        %798 = vmatprep.mubr.bf16.mxu0 0
        %799 = vmatmul.mubr.bf16.gmra.mrb[0].mxu0 %v604
        %v800 = vpop.f32.mrb[0].mxu0
        %v801 = vadd.f32 0.0, %v800
        %v802 = vpop.f32.mrb[0].mxu0
        %v803 = vpop.f32.mrb[0].mxu0
        %v804 = vadd.f32 0.0, %v803
        %v805 = vpop.f32.mrb[0].mxu0
        %806 = vmatprep.mubr.bf16.mxu0 0
        %807 = vmatmul.mubr.bf16.gmra.mrb[0].mxu0 %v612
        %v808 = vpop.f32.mrb[0].mxu0
        %v809 = vadd.f32 0.0, %v808
        %v810 = vpop.f32.mrb[0].mxu0
        %v811 = vpop.f32.mrb[0].mxu0
        %v812 = vadd.f32 0.0, %v811
        %v813 = vpop.f32.mrb[0].mxu0
        %814 = vmatprep.mubr.bf16.mxu0 0
        %815 = vmatmul.mubr.bf16.gmra.mrb[0].mxu0 %v620
        %v816 = vpop.f32.mrb[0].mxu0
        %v817 = vadd.f32 0.0, %v816
        %v818 = vpop.f32.mrb[0].mxu0
        %v819 = vpop.f32.mrb[0].mxu0
        %v820 = vadd.f32 0.0, %v819
        %v821 = vpop.f32.mrb[0].mxu0
        %822 = vmatprep.mubr.bf16.mxu0 0
        %823 = vmatmul.mubr.bf16.gmra.mrb[0].mxu0 %v628
        %v824 = vpop.f32.mrb[0].mxu0
        %v825 = vadd.f32 0.0, %v824
        %v826 = vpop.f32.mrb[0].mxu0
        %v827 = vpop.f32.mrb[0].mxu0
        %v828 = vadd.f32 0.0, %v827
        %v829 = vpop.f32.mrb[0].mxu0
        %830 = vmatprep.mubr.bf16.mxu0 0
        %831 = vmatmul.mubr.bf16.gmra.mrb[0].mxu0 %v636
        %v832 = vpop.f32.mrb[0].mxu0
        %v833 = vadd.f32 0.0, %v832
        %v834 = vpop.f32.mrb[0].mxu0
        %v835 = vpop.f32.mrb[0].mxu0
        %v836 = vadd.f32 0.0, %v835
        %v837 = vpop.f32.mrb[0].mxu0
        %838 = vmatprep.mubr.bf16.mxu0 0
        %839 = vmatmul.mubr.bf16.gmra.mrb[0].mxu0 %v644
        %v840 = vpop.f32.mrb[0].mxu0
        %v841 = vadd.f32 0.0, %v840
        %v842 = vpop.f32.mrb[0].mxu0
        %v843 = vpop.f32.mrb[0].mxu0
        %v844 = vadd.f32 0.0, %v843
        %v845 = vpop.f32.mrb[0].mxu0
        %846 = vmatprep.mubr.bf16.mxu0 0
        %847 = vmatmul.mubr.bf16.gmra.mrb[0].mxu0 %v652
        %v848 = vpop.f32.mrb[0].mxu0
        %v849 = vadd.f32 0.0, %v848
        %v850 = vpop.f32.mrb[0].mxu0
        %v851 = vpop.f32.mrb[0].mxu0
        %v852 = vadd.f32 0.0, %v851
        %v853 = vpop.f32.mrb[0].mxu0
        %854 = vmatprep.mubr.bf16.mxu0 0
        %855 = vmatmul.mubr.bf16.gmra.mrb[0].mxu0 %v660
        %v856 = vpop.f32.mrb[0].mxu0
        %v857 = vadd.f32 0.0, %v856
        %v858 = vpop.f32.mrb[0].mxu0
        %v859 = vpop.f32.mrb[0].mxu0
        %v860 = vadd.f32 0.0, %v859
        %v861 = vpop.f32.mrb[0].mxu0
        %862 = vmatprep.mubr.bf16.mxu0 0
        %863 = vmatmul.mubr.bf16.gmra.mrb[0].mxu0 %v668
        %v864 = vpop.f32.mrb[0].mxu0
        %v865 = vadd.f32 0.0, %v864
        %v866 = vpop.f32.mrb[0].mxu0
        %v867 = vpop.f32.mrb[0].mxu0
        %v868 = vadd.f32 0.0, %v867
        %v869 = vpop.f32.mrb[0].mxu0
        %870 = vmatprep.mubr.bf16.mxu0 0
        %871 = vmatmul.mubr.bf16.gmra.mrb[0].mxu0 %v676
        %v872 = vpop.f32.mrb[0].mxu0
        %v873 = vadd.f32 0.0, %v872
        %v874 = vpop.f32.mrb[0].mxu0
        %v875 = vpop.f32.mrb[0].mxu0
        %v876 = vadd.f32 0.0, %v875
        %v877 = vpop.f32.mrb[0].mxu0
        %878 = vmatprep.mubr.bf16.mxu0 0
        %879 = vmatmul.mubr.bf16.gmra.mrb[0].mxu0 %v684
        %v880 = vpop.f32.mrb[0].mxu0
        %v881 = vadd.f32 0.0, %v880
        %v882 = vpop.f32.mrb[0].mxu0
        %v883 = vpop.f32.mrb[0].mxu0
        %v884 = vadd.f32 0.0, %v883
        %v885 = vpop.f32.mrb[0].mxu0
        %886 = vmatprep.mubr.bf16.mxu0 0
        %887 = vmatmul.mubr.bf16.gmra.mrb[0].mxu0 %v692
        %v888 = vpop.f32.mrb[0].mxu0
        %v889 = vadd.f32 0.0, %v888
        %v890 = vpop.f32.mrb[0].mxu0
        %v891 = vpop.f32.mrb[0].mxu0
        %v892 = vadd.f32 0.0, %v891
        %v893 = vpop.f32.mrb[0].mxu0
        %894 = vmatprep.mubr.bf16.mxu0 0
        %895 = vmatmul.mubr.bf16.gmra.mrb[0].mxu0 %v700
        %v896 = vpop.f32.mrb[0].mxu0
        %v897 = vadd.f32 0.0, %v896
        %v898 = vpop.f32.mrb[0].mxu0
        %v899 = vpop.f32.mrb[0].mxu0
        %v900 = vadd.f32 0.0, %v899
        %v901 = vpop.f32.mrb[0].mxu0
        %902 = vmatprep.mubr.bf16.mxu0 0
        %903 = vmatmul.mubr.bf16.gmra.mrb[0].mxu0 %v703
        %v904 = vpop.f32.mrb[0].mxu0
        %v905 = vadd.f32 0.0, %v904
        %v906 = vpop.f32.mrb[0].mxu0
        %v907 = vpop.f32.mrb[0].mxu0
        %v908 = vpop.f32.mrb[0].mxu0
        %909 = vdwg.mxu0
        %v910 = vadd.f32 %v547, %v801
        %v911 = vadd.f32 %v548, %v804
        %v912 = vadd.f32 %v549, %v809
        %v913 = vadd.f32 %v550, %v812
        %v914 = vadd.f32 %v551, %v817
        %v915 = vadd.f32 %v552, %v820
        %v916 = vadd.f32 %v553, %v825
        %v917 = vadd.f32 %v554, %v828
        %v918 = vadd.f32 %v555, %v833
        %v919 = vadd.f32 %v556, %v836
        %v920 = vadd.f32 %v557, %v841
        %v921 = vadd.f32 %v558, %v844
        %v922 = vadd.f32 %v559, %v849
        %v923 = vadd.f32 %v560, %v852
        %v924 = vadd.f32 %v561, %v857
        %v925 = vadd.f32 %v562, %v860
        %v926 = vadd.f32 %v563, %v865
        %v927 = vadd.f32 %v564, %v868
        %v928 = vadd.f32 %v565, %v873
        %v929 = vadd.f32 %v566, %v876
        %v930 = vadd.f32 %v567, %v881
        %v931 = vadd.f32 %v568, %v884
        %v932 = vadd.f32 %v569, %v889
        %v933 = vadd.f32 %v570, %v892
        %v934 = vadd.f32 %v571, %v897
        %v935 = vadd.f32 %v572, %v900
        %v936 = vadd.f32 %v573, %v905
        %s937 = scalar_lea.vmem [#allocation5], 128
        %v938 = vld [vmem:[%s937] sm:$0xf]
        %v939 = vld [vmem:[%s937 + $0x4] sm:$0xf]
        %v940 = vld [vmem:[%s937 + $0x8] sm:$0xf]
        %v941 = vld [vmem:[%s937 + $0xc] sm:$0xf]
        %v942 = vld [vmem:[%s937 + $0x10] sm:$0xf]
        %v943 = vld [vmem:[%s937 + $0x14] sm:$0xf]
        %v944 = vld [vmem:[%s937 + $0x18] sm:$0xf]
        %v945 = vld [vmem:[%s937 + $0x1c] sm:$0xf]
        %v946 = vld [vmem:[%s937 + $0x20] sm:$0xf]
        %v947 = vld [vmem:[%s937 + $0x24] sm:$0xf]
        %v948 = vld [vmem:[%s937 + $0x28] sm:$0xf]
        %v949 = vld [vmem:[%s937 + $0x2c] sm:$0xf]
        %v950 = vld [vmem:[%s937 + $0x30] sm:$0xf]
        %v951 = vld [vmem:[%s937 + $0x34] sm:$0xf]
        %v952 = vld [vmem:[%s937 + $0x38] sm:$0xf]
        %v953 = vld [vmem:[%s937 + $0x3c] sm:$0xf]
        %vm968 = vcmask 1046528
        %v969 = vrot.slane %v325, 1
        %v970 = vrot.slane %v326, 1
        %v971 = vsel %vm968, %v969, %v970
        %v972 = vrot.slane %v327, 1
        %v973 = vsel %vm968, %v970, %v972
        %v974 = vrot.slane %v328, 1
        %v975 = vsel %vm968, %v972, %v974
        %v976 = vrot.slane %v329, 1
        %v977 = vsel %vm968, %v974, %v976
        %v978 = vrot.slane %v330, 1
        %v979 = vsel %vm968, %v976, %v978
        %v980 = vrot.slane %v331, 1
        %v981 = vsel %vm968, %v978, %v980
        %v982 = vrot.slane %v332, 1
        %v983 = vsel %vm968, %v980, %v982
        %v984 = vrot.slane %v333, 1
        %v985 = vsel %vm968, %v982, %v984
        %v986 = vrot.slane %v334, 1
        %v987 = vsel %vm968, %v984, %v986
        %v988 = vrot.slane %v335, 1
        %v989 = vsel %vm968, %v986, %v988
        %v990 = vrot.slane %v336, 1
        %v991 = vsel %vm968, %v988, %v990
        %v992 = vrot.slane %v337, 1
        %v993 = vsel %vm968, %v990, %v992
        %v994 = vrot.slane %v574, 1
        %v995 = vsel %vm968, %v992, %v994
        %v1026 = vunpack.c.l.b16 %v938
        %v1027 = vunpack.c.l.b16 %v939
        %v1028 = vunpack.c.l.b16 %v940
        %v1029 = vunpack.c.l.b16 %v941
        %v1030 = vunpack.c.l.b16 %v942
        %v1031 = vunpack.c.l.b16 %v943
        %v1032 = vunpack.c.l.b16 %v944
        %v1033 = vunpack.c.l.b16 %v945
        %v1034 = vunpack.c.l.b16 %v946
        %v1035 = vunpack.c.l.b16 %v947
        %v1036 = vunpack.c.l.b16 %v948
        %v1037 = vunpack.c.l.b16 %v949
        %v1038 = vunpack.c.l.b16 %v950
        %v1039 = vunpack.c.l.b16 %v951
        %v1040 = vunpack.c.l.b16 %v952
        %v1041 = vunpack.c.l.b16 %v953
        %v1042 = vpack.c.b16 %v1027, %v1026
        %v1043 = vpack.c.b16 %v1029, %v1028
        %v1044 = vpack.c.b16 %v1031, %v1030
        %v1045 = vpack.c.b16 %v1033, %v1032
        %v1046 = vpack.c.b16 %v1035, %v1034
        %v1047 = vpack.c.b16 %v1037, %v1036
        %v1048 = vpack.c.b16 %v1039, %v1038
        %v1049 = vpack.c.b16 %v1041, %v1040
        %1058 = vmatprep.subr.bf16.mxu0 0
        %1059 = vmatpush1.bf16.msra.mxu0 %v1042
        %1060 = vmatprep.subr.bf16.mxu0 0
        %1061 = vmatpush1.bf16.msra.mxu0 %v1043
        %1062 = vmatprep.subr.bf16.mxu0 0
        %1063 = vmatpush1.bf16.msra.mxu0 %v1044
        %1064 = vmatprep.subr.bf16.mxu0 0
        %1065 = vmatpush1.bf16.msra.mxu0 %v1045
        %1066 = vmatprep.subr.bf16.mxu0 0
        %1067 = vmatpush1.bf16.msra.mxu0 %v1046
        %1068 = vmatprep.subr.bf16.mxu0 0
        %1069 = vmatpush1.bf16.msra.mxu0 %v1047
        %1070 = vmatprep.subr.bf16.mxu0 0
        %1071 = vmatpush1.bf16.msra.mxu0 %v1048
        %1072 = vmatprep.subr.bf16.mxu0 0
        %1073 = vmatpush1.bf16.msra.mxu0 %v1049
        %1074 = vmatprep.subr.bf16.mxu0 0
        %1075 = vmatpush1.bf16.msra.mxu0 0
        %1076 = vmatprep.subr.bf16.mxu0 0
        %1077 = vmatpush1.bf16.msra.mxu0 0
        %1078 = vmatprep.subr.bf16.mxu0 0
        %1079 = vmatpush1.bf16.msra.mxu0 0
        %1080 = vmatprep.subr.bf16.mxu0 0
        %1081 = vmatpush1.bf16.msra.mxu0 0
        %1082 = vmatprep.subr.bf16.mxu0 0
        %1083 = vmatpush1.bf16.msra.mxu0 0
        %1084 = vmatprep.subr.bf16.mxu0 0
        %1085 = vmatpush1.bf16.msra.mxu0 0
        %1086 = vmatprep.subr.bf16.mxu0 0
        %1087 = vmatpush1.bf16.msra.mxu0 0
        %1088 = vmatprep.subr.bf16.mxu0 0
        %1089 = vmatpush1.bf16.msra.mxu0 0
        %1090 = vmatprep.mubr.bf16.mxu0 0
        %1091 = vmatmul.mubr.bf16.gmra.mrb[0].mxu0 %v971
        %v1092 = vpop.f32.mrb[0].mxu0
        %v1093 = vadd.f32 0.0, %v1092
        %v1094 = vpop.f32.mrb[0].mxu0
        %v1095 = vpop.f32.mrb[0].mxu0
        %v1096 = vadd.f32 0.0, %v1095
        %v1097 = vpop.f32.mrb[0].mxu0
        %1098 = vmatprep.mubr.bf16.mxu0 0
        %1099 = vmatmul.mubr.bf16.gmra.mrb[0].mxu0 %v973
        %v1100 = vpop.f32.mrb[0].mxu0
        %v1101 = vadd.f32 0.0, %v1100
        %v1102 = vpop.f32.mrb[0].mxu0
        %v1103 = vpop.f32.mrb[0].mxu0
        %v1104 = vadd.f32 0.0, %v1103
        %v1105 = vpop.f32.mrb[0].mxu0
        %1106 = vmatprep.mubr.bf16.mxu0 0
        %1107 = vmatmul.mubr.bf16.gmra.mrb[0].mxu0 %v975
        %v1108 = vpop.f32.mrb[0].mxu0
        %v1109 = vadd.f32 0.0, %v1108
        %v1110 = vpop.f32.mrb[0].mxu0
        %v1111 = vpop.f32.mrb[0].mxu0
        %v1112 = vadd.f32 0.0, %v1111
        %v1113 = vpop.f32.mrb[0].mxu0
        %1114 = vmatprep.mubr.bf16.mxu0 0
        %1115 = vmatmul.mubr.bf16.gmra.mrb[0].mxu0 %v977
        %v1116 = vpop.f32.mrb[0].mxu0
        %v1117 = vadd.f32 0.0, %v1116
        %v1118 = vpop.f32.mrb[0].mxu0
        %v1119 = vpop.f32.mrb[0].mxu0
        %v1120 = vadd.f32 0.0, %v1119
        %v1121 = vpop.f32.mrb[0].mxu0
        %1122 = vmatprep.mubr.bf16.mxu0 0
        %1123 = vmatmul.mubr.bf16.gmra.mrb[0].mxu0 %v979
        %v1124 = vpop.f32.mrb[0].mxu0
        %v1125 = vadd.f32 0.0, %v1124
        %v1126 = vpop.f32.mrb[0].mxu0
        %v1127 = vpop.f32.mrb[0].mxu0
        %v1128 = vadd.f32 0.0, %v1127
        %v1129 = vpop.f32.mrb[0].mxu0
        %1130 = vmatprep.mubr.bf16.mxu0 0
        %1131 = vmatmul.mubr.bf16.gmra.mrb[0].mxu0 %v981
        %v1132 = vpop.f32.mrb[0].mxu0
        %v1133 = vadd.f32 0.0, %v1132
        %v1134 = vpop.f32.mrb[0].mxu0
        %v1135 = vpop.f32.mrb[0].mxu0
        %v1136 = vadd.f32 0.0, %v1135
        %v1137 = vpop.f32.mrb[0].mxu0
        %1138 = vmatprep.mubr.bf16.mxu0 0
        %1139 = vmatmul.mubr.bf16.gmra.mrb[0].mxu0 %v983
        %v1140 = vpop.f32.mrb[0].mxu0
        %v1141 = vadd.f32 0.0, %v1140
        %v1142 = vpop.f32.mrb[0].mxu0
        %v1143 = vpop.f32.mrb[0].mxu0
        %v1144 = vadd.f32 0.0, %v1143
        %v1145 = vpop.f32.mrb[0].mxu0
        %1146 = vmatprep.mubr.bf16.mxu0 0
        %1147 = vmatmul.mubr.bf16.gmra.mrb[0].mxu0 %v985
        %v1148 = vpop.f32.mrb[0].mxu0
        %v1149 = vadd.f32 0.0, %v1148
        %v1150 = vpop.f32.mrb[0].mxu0
        %v1151 = vpop.f32.mrb[0].mxu0
        %v1152 = vadd.f32 0.0, %v1151
        %v1153 = vpop.f32.mrb[0].mxu0
        %1154 = vmatprep.mubr.bf16.mxu0 0
        %1155 = vmatmul.mubr.bf16.gmra.mrb[0].mxu0 %v987
        %v1156 = vpop.f32.mrb[0].mxu0
        %v1157 = vadd.f32 0.0, %v1156
        %v1158 = vpop.f32.mrb[0].mxu0
        %v1159 = vpop.f32.mrb[0].mxu0
        %v1160 = vadd.f32 0.0, %v1159
        %v1161 = vpop.f32.mrb[0].mxu0
        %1162 = vmatprep.mubr.bf16.mxu0 0
        %1163 = vmatmul.mubr.bf16.gmra.mrb[0].mxu0 %v989
        %v1164 = vpop.f32.mrb[0].mxu0
        %v1165 = vadd.f32 0.0, %v1164
        %v1166 = vpop.f32.mrb[0].mxu0
        %v1167 = vpop.f32.mrb[0].mxu0
        %v1168 = vadd.f32 0.0, %v1167
        %v1169 = vpop.f32.mrb[0].mxu0
        %1170 = vmatprep.mubr.bf16.mxu0 0
        %1171 = vmatmul.mubr.bf16.gmra.mrb[0].mxu0 %v991
        %v1172 = vpop.f32.mrb[0].mxu0
        %v1173 = vadd.f32 0.0, %v1172
        %v1174 = vpop.f32.mrb[0].mxu0
        %v1175 = vpop.f32.mrb[0].mxu0
        %v1176 = vadd.f32 0.0, %v1175
        %v1177 = vpop.f32.mrb[0].mxu0
        %1178 = vmatprep.mubr.bf16.mxu0 0
        %1179 = vmatmul.mubr.bf16.gmra.mrb[0].mxu0 %v993
        %v1180 = vpop.f32.mrb[0].mxu0
        %v1181 = vadd.f32 0.0, %v1180
        %v1182 = vpop.f32.mrb[0].mxu0
        %v1183 = vpop.f32.mrb[0].mxu0
        %v1184 = vadd.f32 0.0, %v1183
        %v1185 = vpop.f32.mrb[0].mxu0
        %1186 = vmatprep.mubr.bf16.mxu0 0
        %1187 = vmatmul.mubr.bf16.gmra.mrb[0].mxu0 %v995
        %v1188 = vpop.f32.mrb[0].mxu0
        %v1189 = vadd.f32 0.0, %v1188
        %v1190 = vpop.f32.mrb[0].mxu0
        %v1191 = vpop.f32.mrb[0].mxu0
        %v1192 = vadd.f32 0.0, %v1191
        %v1193 = vpop.f32.mrb[0].mxu0
        %1194 = vmatprep.mubr.bf16.mxu0 0
        %1195 = vmatmul.mubr.bf16.gmra.mrb[0].mxu0 %v994
        %v1196 = vpop.f32.mrb[0].mxu0
        %v1197 = vadd.f32 0.0, %v1196
        %v1198 = vpop.f32.mrb[0].mxu0
        %v1199 = vpop.f32.mrb[0].mxu0
        %v1200 = vpop.f32.mrb[0].mxu0
        %1201 = vdwg.mxu0
        %v1202 = vadd.f32 %v910, %v1093
        %v1203 = vadd.f32 %v911, %v1096
        %v1204 = vadd.f32 %v912, %v1101
        %v1205 = vadd.f32 %v913, %v1104
        %v1206 = vadd.f32 %v914, %v1109
        %v1207 = vadd.f32 %v915, %v1112
        %v1208 = vadd.f32 %v916, %v1117
        %v1209 = vadd.f32 %v917, %v1120
        %v1210 = vadd.f32 %v918, %v1125
        %v1211 = vadd.f32 %v919, %v1128
        %v1212 = vadd.f32 %v920, %v1133
        %v1213 = vadd.f32 %v921, %v1136
        %v1214 = vadd.f32 %v922, %v1141
        %v1215 = vadd.f32 %v923, %v1144
        %v1216 = vadd.f32 %v924, %v1149
        %v1217 = vadd.f32 %v925, %v1152
        %v1218 = vadd.f32 %v926, %v1157
        %v1219 = vadd.f32 %v927, %v1160
        %v1220 = vadd.f32 %v928, %v1165
        %v1221 = vadd.f32 %v929, %v1168
        %v1222 = vadd.f32 %v930, %v1173
        %v1223 = vadd.f32 %v931, %v1176
        %v1224 = vadd.f32 %v932, %v1181
        %v1225 = vadd.f32 %v933, %v1184
        %v1226 = vadd.f32 %v934, %v1189
        %v1227 = vadd.f32 %v935, %v1192
        %v1228 = vadd.f32 %v936, %v1197
        %v1229 = vpack.c.bf16 %v315, %v314
        %s1230 = scalar_lea.vmem [#allocation5], 192
        %v1231 = vld [vmem:[%s1230] sm:$0xf]
        %v1232 = vld [vmem:[%s1230 + $0x4] sm:$0xf]
        %v1233 = vld [vmem:[%s1230 + $0x8] sm:$0xf]
        %v1234 = vld [vmem:[%s1230 + $0xc] sm:$0xf]
        %v1235 = vld [vmem:[%s1230 + $0x10] sm:$0xf]
        %v1236 = vld [vmem:[%s1230 + $0x14] sm:$0xf]
        %v1237 = vld [vmem:[%s1230 + $0x18] sm:$0xf]
        %v1238 = vld [vmem:[%s1230 + $0x1c] sm:$0xf]
        %v1239 = vld [vmem:[%s1230 + $0x20] sm:$0xf]
        %v1240 = vld [vmem:[%s1230 + $0x24] sm:$0xf]
        %v1241 = vld [vmem:[%s1230 + $0x28] sm:$0xf]
        %v1242 = vld [vmem:[%s1230 + $0x2c] sm:$0xf]
        %v1243 = vld [vmem:[%s1230 + $0x30] sm:$0xf]
        %v1244 = vld [vmem:[%s1230 + $0x34] sm:$0xf]
        %v1245 = vld [vmem:[%s1230 + $0x38] sm:$0xf]
        %v1246 = vld [vmem:[%s1230 + $0x3c] sm:$0xf]
        %v1248 = vrot.slane %v1229, 1
        %v1249 = vsel %vm968, %v994, %v1248
        %v1268 = vunpack.c.l.b16 %v1231
        %v1269 = vunpack.c.l.b16 %v1232
        %v1270 = vunpack.c.l.b16 %v1233
        %v1271 = vunpack.c.l.b16 %v1234
        %v1272 = vunpack.c.l.b16 %v1235
        %v1273 = vunpack.c.l.b16 %v1236
        %v1274 = vunpack.c.l.b16 %v1237
        %v1275 = vunpack.c.l.b16 %v1238
        %v1276 = vunpack.c.l.b16 %v1239
        %v1277 = vunpack.c.l.b16 %v1240
        %v1278 = vunpack.c.l.b16 %v1241
        %v1279 = vunpack.c.l.b16 %v1242
        %v1280 = vunpack.c.l.b16 %v1243
        %v1281 = vunpack.c.l.b16 %v1244
        %v1282 = vunpack.c.l.b16 %v1245
        %v1283 = vunpack.c.l.b16 %v1246
        %v1284 = vpack.c.b16 %v1269, %v1268
        %v1285 = vpack.c.b16 %v1271, %v1270
        %v1286 = vpack.c.b16 %v1273, %v1272
        %v1287 = vpack.c.b16 %v1275, %v1274
        %v1288 = vpack.c.b16 %v1277, %v1276
        %v1289 = vpack.c.b16 %v1279, %v1278
        %v1290 = vpack.c.b16 %v1281, %v1280
        %v1291 = vpack.c.b16 %v1283, %v1282
        %1300 = vmatprep.subr.bf16.mxu0 0
        %1301 = vmatpush1.bf16.msra.mxu0 %v1284
        %1302 = vmatprep.subr.bf16.mxu0 0
        %1303 = vmatpush1.bf16.msra.mxu0 %v1285
        %1304 = vmatprep.subr.bf16.mxu0 0
        %1305 = vmatpush1.bf16.msra.mxu0 %v1286
        %1306 = vmatprep.subr.bf16.mxu0 0
        %1307 = vmatpush1.bf16.msra.mxu0 %v1287
        %1308 = vmatprep.subr.bf16.mxu0 0
        %1309 = vmatpush1.bf16.msra.mxu0 %v1288
        %1310 = vmatprep.subr.bf16.mxu0 0
        %1311 = vmatpush1.bf16.msra.mxu0 %v1289
        %1312 = vmatprep.subr.bf16.mxu0 0
        %1313 = vmatpush1.bf16.msra.mxu0 %v1290
        %1314 = vmatprep.subr.bf16.mxu0 0
        %1315 = vmatpush1.bf16.msra.mxu0 %v1291
        %1316 = vmatprep.subr.bf16.mxu0 0
        %1317 = vmatpush1.bf16.msra.mxu0 0
        %1318 = vmatprep.subr.bf16.mxu0 0
        %1319 = vmatpush1.bf16.msra.mxu0 0
        %1320 = vmatprep.subr.bf16.mxu0 0
        %1321 = vmatpush1.bf16.msra.mxu0 0
        %1322 = vmatprep.subr.bf16.mxu0 0
        %1323 = vmatpush1.bf16.msra.mxu0 0
        %1324 = vmatprep.subr.bf16.mxu0 0
        %1325 = vmatpush1.bf16.msra.mxu0 0
        %1326 = vmatprep.subr.bf16.mxu0 0
        %1327 = vmatpush1.bf16.msra.mxu0 0
        %1328 = vmatprep.subr.bf16.mxu0 0
        %1329 = vmatpush1.bf16.msra.mxu0 0
        %1330 = vmatprep.subr.bf16.mxu0 0
        %1331 = vmatpush1.bf16.msra.mxu0 0
        %1332 = vmatprep.mubr.bf16.mxu0 0
        %1333 = vmatmul.mubr.bf16.gmra.mrb[0].mxu0 %v973
        %v1334 = vpop.f32.mrb[0].mxu0
        %v1335 = vadd.f32 0.0, %v1334
        %v1336 = vpop.f32.mrb[0].mxu0
        %v1337 = vpop.f32.mrb[0].mxu0
        %v1338 = vadd.f32 0.0, %v1337
        %v1339 = vpop.f32.mrb[0].mxu0
        %1340 = vmatprep.mubr.bf16.mxu0 0
        %1341 = vmatmul.mubr.bf16.gmra.mrb[0].mxu0 %v975
        %v1342 = vpop.f32.mrb[0].mxu0
        %v1343 = vadd.f32 0.0, %v1342
        %v1344 = vpop.f32.mrb[0].mxu0
        %v1345 = vpop.f32.mrb[0].mxu0
        %v1346 = vadd.f32 0.0, %v1345
        %v1347 = vpop.f32.mrb[0].mxu0
        %1348 = vmatprep.mubr.bf16.mxu0 0
        %1349 = vmatmul.mubr.bf16.gmra.mrb[0].mxu0 %v977
        %v1350 = vpop.f32.mrb[0].mxu0
        %v1351 = vadd.f32 0.0, %v1350
        %v1352 = vpop.f32.mrb[0].mxu0
        %v1353 = vpop.f32.mrb[0].mxu0
        %v1354 = vadd.f32 0.0, %v1353
        %v1355 = vpop.f32.mrb[0].mxu0
        %1356 = vmatprep.mubr.bf16.mxu0 0
        %1357 = vmatmul.mubr.bf16.gmra.mrb[0].mxu0 %v979
        %v1358 = vpop.f32.mrb[0].mxu0
        %v1359 = vadd.f32 0.0, %v1358
        %v1360 = vpop.f32.mrb[0].mxu0
        %v1361 = vpop.f32.mrb[0].mxu0
        %v1362 = vadd.f32 0.0, %v1361
        %v1363 = vpop.f32.mrb[0].mxu0
        %1364 = vmatprep.mubr.bf16.mxu0 0
        %1365 = vmatmul.mubr.bf16.gmra.mrb[0].mxu0 %v981
        %v1366 = vpop.f32.mrb[0].mxu0
        %v1367 = vadd.f32 0.0, %v1366
        %v1368 = vpop.f32.mrb[0].mxu0
        %v1369 = vpop.f32.mrb[0].mxu0
        %v1370 = vadd.f32 0.0, %v1369
        %v1371 = vpop.f32.mrb[0].mxu0
        %1372 = vmatprep.mubr.bf16.mxu0 0
        %1373 = vmatmul.mubr.bf16.gmra.mrb[0].mxu0 %v983
        %v1374 = vpop.f32.mrb[0].mxu0
        %v1375 = vadd.f32 0.0, %v1374
        %v1376 = vpop.f32.mrb[0].mxu0
        %v1377 = vpop.f32.mrb[0].mxu0
        %v1378 = vadd.f32 0.0, %v1377
        %v1379 = vpop.f32.mrb[0].mxu0
        %1380 = vmatprep.mubr.bf16.mxu0 0
        %1381 = vmatmul.mubr.bf16.gmra.mrb[0].mxu0 %v985
        %v1382 = vpop.f32.mrb[0].mxu0
        %v1383 = vadd.f32 0.0, %v1382
        %v1384 = vpop.f32.mrb[0].mxu0
        %v1385 = vpop.f32.mrb[0].mxu0
        %v1386 = vadd.f32 0.0, %v1385
        %v1387 = vpop.f32.mrb[0].mxu0
        %1388 = vmatprep.mubr.bf16.mxu0 0
        %1389 = vmatmul.mubr.bf16.gmra.mrb[0].mxu0 %v987
        %v1390 = vpop.f32.mrb[0].mxu0
        %v1391 = vadd.f32 0.0, %v1390
        %v1392 = vpop.f32.mrb[0].mxu0
        %v1393 = vpop.f32.mrb[0].mxu0
        %v1394 = vadd.f32 0.0, %v1393
        %v1395 = vpop.f32.mrb[0].mxu0
        %1396 = vmatprep.mubr.bf16.mxu0 0
        %1397 = vmatmul.mubr.bf16.gmra.mrb[0].mxu0 %v989
        %v1398 = vpop.f32.mrb[0].mxu0
        %v1399 = vadd.f32 0.0, %v1398
        %v1400 = vpop.f32.mrb[0].mxu0
        %v1401 = vpop.f32.mrb[0].mxu0
        %v1402 = vadd.f32 0.0, %v1401
        %v1403 = vpop.f32.mrb[0].mxu0
        %1404 = vmatprep.mubr.bf16.mxu0 0
        %1405 = vmatmul.mubr.bf16.gmra.mrb[0].mxu0 %v991
        %v1406 = vpop.f32.mrb[0].mxu0
        %v1407 = vadd.f32 0.0, %v1406
        %v1408 = vpop.f32.mrb[0].mxu0
        %v1409 = vpop.f32.mrb[0].mxu0
        %v1410 = vadd.f32 0.0, %v1409
        %v1411 = vpop.f32.mrb[0].mxu0
        %1412 = vmatprep.mubr.bf16.mxu0 0
        %1413 = vmatmul.mubr.bf16.gmra.mrb[0].mxu0 %v993
        %v1414 = vpop.f32.mrb[0].mxu0
        %v1415 = vadd.f32 0.0, %v1414
        %v1416 = vpop.f32.mrb[0].mxu0
        %v1417 = vpop.f32.mrb[0].mxu0
        %v1418 = vadd.f32 0.0, %v1417
        %v1419 = vpop.f32.mrb[0].mxu0
        %1420 = vmatprep.mubr.bf16.mxu0 0
        %1421 = vmatmul.mubr.bf16.gmra.mrb[0].mxu0 %v995
        %v1422 = vpop.f32.mrb[0].mxu0
        %v1423 = vadd.f32 0.0, %v1422
        %v1424 = vpop.f32.mrb[0].mxu0
        %v1425 = vpop.f32.mrb[0].mxu0
        %v1426 = vadd.f32 0.0, %v1425
        %v1427 = vpop.f32.mrb[0].mxu0
        %1428 = vmatprep.mubr.bf16.mxu0 0
        %1429 = vmatmul.mubr.bf16.gmra.mrb[0].mxu0 %v1249
        %v1430 = vpop.f32.mrb[0].mxu0
        %v1431 = vadd.f32 0.0, %v1430
        %v1432 = vpop.f32.mrb[0].mxu0
        %v1433 = vpop.f32.mrb[0].mxu0
        %v1434 = vadd.f32 0.0, %v1433
        %v1435 = vpop.f32.mrb[0].mxu0
        %1436 = vmatprep.mubr.bf16.mxu0 0
        %1437 = vmatmul.mubr.bf16.gmra.mrb[0].mxu0 %v1248
        %v1438 = vpop.f32.mrb[0].mxu0
        %v1439 = vadd.f32 0.0, %v1438
        %v1440 = vpop.f32.mrb[0].mxu0
        %v1441 = vpop.f32.mrb[0].mxu0
        %v1442 = vpop.f32.mrb[0].mxu0
        %1443 = vdwg.mxu0
        %v1444 = vadd.f32 %v1202, %v1335
        %v1445 = vadd.f32 %v1203, %v1338
        %v1446 = vadd.f32 %v1204, %v1343
        %v1447 = vadd.f32 %v1205, %v1346
        %v1448 = vadd.f32 %v1206, %v1351
        %v1449 = vadd.f32 %v1207, %v1354
        %v1450 = vadd.f32 %v1208, %v1359
        %v1451 = vadd.f32 %v1209, %v1362
        %v1452 = vadd.f32 %v1210, %v1367
        %v1453 = vadd.f32 %v1211, %v1370
        %v1454 = vadd.f32 %v1212, %v1375
        %v1455 = vadd.f32 %v1213, %v1378
        %v1456 = vadd.f32 %v1214, %v1383
        %v1457 = vadd.f32 %v1215, %v1386
        %v1458 = vadd.f32 %v1216, %v1391
        %v1459 = vadd.f32 %v1217, %v1394
        %v1460 = vadd.f32 %v1218, %v1399
        %v1461 = vadd.f32 %v1219, %v1402
        %v1462 = vadd.f32 %v1220, %v1407
        %v1463 = vadd.f32 %v1221, %v1410
        %v1464 = vadd.f32 %v1222, %v1415
        %v1465 = vadd.f32 %v1223, %v1418
        %v1466 = vadd.f32 %v1224, %v1423
        %v1467 = vadd.f32 %v1225, %v1426
        %v1468 = vadd.f32 %v1226, %v1431
        %v1469 = vadd.f32 %v1227, %v1434
        %v1470 = vadd.f32 %v1228, %v1439
        %s1471 = scalar_lea.vmem [#allocation5], 256
        %v1472 = vld [vmem:[%s1471] sm:$0xf]
        %v1473 = vld [vmem:[%s1471 + $0x4] sm:$0xf]
        %v1474 = vld [vmem:[%s1471 + $0x8] sm:$0xf]
        %v1475 = vld [vmem:[%s1471 + $0xc] sm:$0xf]
        %v1476 = vld [vmem:[%s1471 + $0x10] sm:$0xf]
        %v1477 = vld [vmem:[%s1471 + $0x14] sm:$0xf]
        %v1478 = vld [vmem:[%s1471 + $0x18] sm:$0xf]
        %v1479 = vld [vmem:[%s1471 + $0x1c] sm:$0xf]
        %v1480 = vld [vmem:[%s1471 + $0x20] sm:$0xf]
        %v1481 = vld [vmem:[%s1471 + $0x24] sm:$0xf]
        %v1482 = vld [vmem:[%s1471 + $0x28] sm:$0xf]
        %v1483 = vld [vmem:[%s1471 + $0x2c] sm:$0xf]
        %v1484 = vld [vmem:[%s1471 + $0x30] sm:$0xf]
        %v1485 = vld [vmem:[%s1471 + $0x34] sm:$0xf]
        %v1486 = vld [vmem:[%s1471 + $0x38] sm:$0xf]
        %v1487 = vld [vmem:[%s1471 + $0x3c] sm:$0xf]
        %vm1488 = vsmask.f32 6400
        %v1489 = vrot.slane %v605, 1
        %v1490 = vrot.slane %v601, 2
        %v1491 = vor.u32 %v1489, %v1490
        %v1492 = vrot.slane %v613, 1
        %v1493 = vrot.slane %v609, 2
        %v1494 = vor.u32 %v1492, %v1493
        %v1495 = vsel %vm1488, %v1491, %v1494
        %v1496 = vrot.slane %v621, 1
        %v1497 = vrot.slane %v617, 2
        %v1498 = vor.u32 %v1496, %v1497
        %v1499 = vsel %vm1488, %v1494, %v1498
        %v1500 = vrot.slane %v629, 1
        %v1501 = vrot.slane %v625, 2
        %v1502 = vor.u32 %v1500, %v1501
        %v1503 = vsel %vm1488, %v1498, %v1502
        %v1504 = vrot.slane %v637, 1
        %v1505 = vrot.slane %v633, 2
        %v1506 = vor.u32 %v1504, %v1505
        %v1507 = vsel %vm1488, %v1502, %v1506
        %v1508 = vrot.slane %v645, 1
        %v1509 = vrot.slane %v641, 2
        %v1510 = vor.u32 %v1508, %v1509
        %v1511 = vsel %vm1488, %v1506, %v1510
        %v1512 = vrot.slane %v653, 1
        %v1513 = vrot.slane %v649, 2
        %v1514 = vor.u32 %v1512, %v1513
        %v1515 = vsel %vm1488, %v1510, %v1514
        %v1516 = vrot.slane %v661, 1
        %v1517 = vrot.slane %v657, 2
        %v1518 = vor.u32 %v1516, %v1517
        %v1519 = vsel %vm1488, %v1514, %v1518
        %v1520 = vrot.slane %v669, 1
        %v1521 = vrot.slane %v665, 2
        %v1522 = vor.u32 %v1520, %v1521
        %v1523 = vsel %vm1488, %v1518, %v1522
        %v1524 = vrot.slane %v677, 1
        %v1525 = vrot.slane %v673, 2
        %v1526 = vor.u32 %v1524, %v1525
        %v1527 = vsel %vm1488, %v1522, %v1526
        %v1528 = vrot.slane %v685, 1
        %v1529 = vrot.slane %v681, 2
        %v1530 = vor.u32 %v1528, %v1529
        %v1531 = vsel %vm1488, %v1526, %v1530
        %v1532 = vrot.slane %v693, 1
        %v1533 = vrot.slane %v689, 2
        %v1534 = vor.u32 %v1532, %v1533
        %v1535 = vsel %vm1488, %v1530, %v1534
        %v1536 = vrot.slane %v701, 1
        %v1537 = vrot.slane %v697, 2
        %v1538 = vor.u32 %v1536, %v1537
        %v1539 = vsel %vm1488, %v1534, %v1538
        %v1541 = vshrl.u32 %v1229, 16
        %v1543 = vrot.slane %v1541, 1
        %v1544 = vshll.u32 %v1229, 16
        %v1546 = vrot.slane %v1544, 2
        %v1547 = vor.u32 %v1543, %v1546
        %v1548 = vsel %vm1488, %v1538, %v1547
        %v1579 = vunpack.c.l.b16 %v1472
        %v1580 = vunpack.c.l.b16 %v1473
        %v1581 = vunpack.c.l.b16 %v1474
        %v1582 = vunpack.c.l.b16 %v1475
        %v1583 = vunpack.c.l.b16 %v1476
        %v1584 = vunpack.c.l.b16 %v1477
        %v1585 = vunpack.c.l.b16 %v1478
        %v1586 = vunpack.c.l.b16 %v1479
        %v1587 = vunpack.c.l.b16 %v1480
        %v1588 = vunpack.c.l.b16 %v1481
        %v1589 = vunpack.c.l.b16 %v1482
        %v1590 = vunpack.c.l.b16 %v1483
        %v1591 = vunpack.c.l.b16 %v1484
        %v1592 = vunpack.c.l.b16 %v1485
        %v1593 = vunpack.c.l.b16 %v1486
        %v1594 = vunpack.c.l.b16 %v1487
        %v1595 = vpack.c.b16 %v1580, %v1579
        %v1596 = vpack.c.b16 %v1582, %v1581
        %v1597 = vpack.c.b16 %v1584, %v1583
        %v1598 = vpack.c.b16 %v1586, %v1585
        %v1599 = vpack.c.b16 %v1588, %v1587
        %v1600 = vpack.c.b16 %v1590, %v1589
        %v1601 = vpack.c.b16 %v1592, %v1591
        %v1602 = vpack.c.b16 %v1594, %v1593
        %1611 = vmatprep.subr.bf16.mxu0 0
        %1612 = vmatpush1.bf16.msra.mxu0 %v1595
        %1613 = vmatprep.subr.bf16.mxu0 0
        %1614 = vmatpush1.bf16.msra.mxu0 %v1596
        %1615 = vmatprep.subr.bf16.mxu0 0
        %1616 = vmatpush1.bf16.msra.mxu0 %v1597
        %1617 = vmatprep.subr.bf16.mxu0 0
        %1618 = vmatpush1.bf16.msra.mxu0 %v1598
        %1619 = vmatprep.subr.bf16.mxu0 0
        %1620 = vmatpush1.bf16.msra.mxu0 %v1599
        %1621 = vmatprep.subr.bf16.mxu0 0
        %1622 = vmatpush1.bf16.msra.mxu0 %v1600
        %1623 = vmatprep.subr.bf16.mxu0 0
        %1624 = vmatpush1.bf16.msra.mxu0 %v1601
        %1625 = vmatprep.subr.bf16.mxu0 0
        %1626 = vmatpush1.bf16.msra.mxu0 %v1602
        %1627 = vmatprep.subr.bf16.mxu0 0
        %1628 = vmatpush1.bf16.msra.mxu0 0
        %1629 = vmatprep.subr.bf16.mxu0 0
        %1630 = vmatpush1.bf16.msra.mxu0 0
        %1631 = vmatprep.subr.bf16.mxu0 0
        %1632 = vmatpush1.bf16.msra.mxu0 0
        %1633 = vmatprep.subr.bf16.mxu0 0
        %1634 = vmatpush1.bf16.msra.mxu0 0
        %1635 = vmatprep.subr.bf16.mxu0 0
        %1636 = vmatpush1.bf16.msra.mxu0 0
        %1637 = vmatprep.subr.bf16.mxu0 0
        %1638 = vmatpush1.bf16.msra.mxu0 0
        %1639 = vmatprep.subr.bf16.mxu0 0
        %1640 = vmatpush1.bf16.msra.mxu0 0
        %1641 = vmatprep.subr.bf16.mxu0 0
        %1642 = vmatpush1.bf16.msra.mxu0 0
        %1643 = vmatprep.mubr.bf16.mxu0 0
        %1644 = vmatmul.mubr.bf16.gmra.mrb[0].mxu0 %v1495
        %v1645 = vpop.f32.mrb[0].mxu0
        %v1646 = vadd.f32 0.0, %v1645
        %v1647 = vpop.f32.mrb[0].mxu0
        %v1648 = vpop.f32.mrb[0].mxu0
        %v1649 = vadd.f32 0.0, %v1648
        %v1650 = vpop.f32.mrb[0].mxu0
        %1651 = vmatprep.mubr.bf16.mxu0 0
        %1652 = vmatmul.mubr.bf16.gmra.mrb[0].mxu0 %v1499
        %v1653 = vpop.f32.mrb[0].mxu0
        %v1654 = vadd.f32 0.0, %v1653
        %v1655 = vpop.f32.mrb[0].mxu0
        %v1656 = vpop.f32.mrb[0].mxu0
        %v1657 = vadd.f32 0.0, %v1656
        %v1658 = vpop.f32.mrb[0].mxu0
        %1659 = vmatprep.mubr.bf16.mxu0 0
        %1660 = vmatmul.mubr.bf16.gmra.mrb[0].mxu0 %v1503
        %v1661 = vpop.f32.mrb[0].mxu0
        %v1662 = vadd.f32 0.0, %v1661
        %v1663 = vpop.f32.mrb[0].mxu0
        %v1664 = vpop.f32.mrb[0].mxu0
        %v1665 = vadd.f32 0.0, %v1664
        %v1666 = vpop.f32.mrb[0].mxu0
        %1667 = vmatprep.mubr.bf16.mxu0 0
        %1668 = vmatmul.mubr.bf16.gmra.mrb[0].mxu0 %v1507
        %v1669 = vpop.f32.mrb[0].mxu0
        %v1670 = vadd.f32 0.0, %v1669
        %v1671 = vpop.f32.mrb[0].mxu0
        %v1672 = vpop.f32.mrb[0].mxu0
        %v1673 = vadd.f32 0.0, %v1672
        %v1674 = vpop.f32.mrb[0].mxu0
        %1675 = vmatprep.mubr.bf16.mxu0 0
        %1676 = vmatmul.mubr.bf16.gmra.mrb[0].mxu0 %v1511
        %v1677 = vpop.f32.mrb[0].mxu0
        %v1678 = vadd.f32 0.0, %v1677
        %v1679 = vpop.f32.mrb[0].mxu0
        %v1680 = vpop.f32.mrb[0].mxu0
        %v1681 = vadd.f32 0.0, %v1680
        %v1682 = vpop.f32.mrb[0].mxu0
        %1683 = vmatprep.mubr.bf16.mxu0 0
        %1684 = vmatmul.mubr.bf16.gmra.mrb[0].mxu0 %v1515
        %v1685 = vpop.f32.mrb[0].mxu0
        %v1686 = vadd.f32 0.0, %v1685
        %v1687 = vpop.f32.mrb[0].mxu0
        %v1688 = vpop.f32.mrb[0].mxu0
        %v1689 = vadd.f32 0.0, %v1688
        %v1690 = vpop.f32.mrb[0].mxu0
        %1691 = vmatprep.mubr.bf16.mxu0 0
        %1692 = vmatmul.mubr.bf16.gmra.mrb[0].mxu0 %v1519
        %v1693 = vpop.f32.mrb[0].mxu0
        %v1694 = vadd.f32 0.0, %v1693
        %v1695 = vpop.f32.mrb[0].mxu0
        %v1696 = vpop.f32.mrb[0].mxu0
        %v1697 = vadd.f32 0.0, %v1696
        %v1698 = vpop.f32.mrb[0].mxu0
        %1699 = vmatprep.mubr.bf16.mxu0 0
        %1700 = vmatmul.mubr.bf16.gmra.mrb[0].mxu0 %v1523
        %v1701 = vpop.f32.mrb[0].mxu0
        %v1702 = vadd.f32 0.0, %v1701
        %v1703 = vpop.f32.mrb[0].mxu0
        %v1704 = vpop.f32.mrb[0].mxu0
        %v1705 = vadd.f32 0.0, %v1704
        %v1706 = vpop.f32.mrb[0].mxu0
        %1707 = vmatprep.mubr.bf16.mxu0 0
        %1708 = vmatmul.mubr.bf16.gmra.mrb[0].mxu0 %v1527
        %v1709 = vpop.f32.mrb[0].mxu0
        %v1710 = vadd.f32 0.0, %v1709
        %v1711 = vpop.f32.mrb[0].mxu0
        %v1712 = vpop.f32.mrb[0].mxu0
        %v1713 = vadd.f32 0.0, %v1712
        %v1714 = vpop.f32.mrb[0].mxu0
        %1715 = vmatprep.mubr.bf16.mxu0 0
        %1716 = vmatmul.mubr.bf16.gmra.mrb[0].mxu0 %v1531
        %v1717 = vpop.f32.mrb[0].mxu0
        %v1718 = vadd.f32 0.0, %v1717
        %v1719 = vpop.f32.mrb[0].mxu0
        %v1720 = vpop.f32.mrb[0].mxu0
        %v1721 = vadd.f32 0.0, %v1720
        %v1722 = vpop.f32.mrb[0].mxu0
        %1723 = vmatprep.mubr.bf16.mxu0 0
        %1724 = vmatmul.mubr.bf16.gmra.mrb[0].mxu0 %v1535
        %v1725 = vpop.f32.mrb[0].mxu0
        %v1726 = vadd.f32 0.0, %v1725
        %v1727 = vpop.f32.mrb[0].mxu0
        %v1728 = vpop.f32.mrb[0].mxu0
        %v1729 = vadd.f32 0.0, %v1728
        %v1730 = vpop.f32.mrb[0].mxu0
        %1731 = vmatprep.mubr.bf16.mxu0 0
        %1732 = vmatmul.mubr.bf16.gmra.mrb[0].mxu0 %v1539
        %v1733 = vpop.f32.mrb[0].mxu0
        %v1734 = vadd.f32 0.0, %v1733
        %v1735 = vpop.f32.mrb[0].mxu0
        %v1736 = vpop.f32.mrb[0].mxu0
        %v1737 = vadd.f32 0.0, %v1736
        %v1738 = vpop.f32.mrb[0].mxu0
        %1739 = vmatprep.mubr.bf16.mxu0 0
        %1740 = vmatmul.mubr.bf16.gmra.mrb[0].mxu0 %v1548
        %v1741 = vpop.f32.mrb[0].mxu0
        %v1742 = vadd.f32 0.0, %v1741
        %v1743 = vpop.f32.mrb[0].mxu0
        %v1744 = vpop.f32.mrb[0].mxu0
        %v1745 = vadd.f32 0.0, %v1744
        %v1746 = vpop.f32.mrb[0].mxu0
        %1747 = vmatprep.mubr.bf16.mxu0 0
        %1748 = vmatmul.mubr.bf16.gmra.mrb[0].mxu0 %v1547
        %v1749 = vpop.f32.mrb[0].mxu0
        %v1750 = vadd.f32 0.0, %v1749
        %v1751 = vpop.f32.mrb[0].mxu0
        %v1752 = vpop.f32.mrb[0].mxu0
        %v1753 = vpop.f32.mrb[0].mxu0
        %1754 = vdwg.mxu0
        %v1755 = vadd.f32 %v1444, %v1646
        %v1756 = vadd.f32 %v1445, %v1649
        %v1757 = vadd.f32 %v1446, %v1654
        %v1758 = vadd.f32 %v1447, %v1657
        %v1759 = vadd.f32 %v1448, %v1662
        %v1760 = vadd.f32 %v1449, %v1665
        %v1761 = vadd.f32 %v1450, %v1670
        %v1762 = vadd.f32 %v1451, %v1673
        %v1763 = vadd.f32 %v1452, %v1678
        %v1764 = vadd.f32 %v1453, %v1681
        %v1765 = vadd.f32 %v1454, %v1686
        %v1766 = vadd.f32 %v1455, %v1689
        %v1767 = vadd.f32 %v1456, %v1694
        %v1768 = vadd.f32 %v1457, %v1697
        %v1769 = vadd.f32 %v1458, %v1702
        %v1770 = vadd.f32 %v1459, %v1705
        %v1771 = vadd.f32 %v1460, %v1710
        %v1772 = vadd.f32 %v1461, %v1713
        %v1773 = vadd.f32 %v1462, %v1718
        %v1774 = vadd.f32 %v1463, %v1721
        %v1775 = vadd.f32 %v1464, %v1726
        %v1776 = vadd.f32 %v1465, %v1729
        %v1777 = vadd.f32 %v1466, %v1734
        %v1778 = vadd.f32 %v1467, %v1737
        %v1779 = vadd.f32 %v1468, %v1742
        %v1780 = vadd.f32 %v1469, %v1745
        %v1781 = vadd.f32 %v1470, %v1750
        %s1782 = scalar_lea.vmem [#allocation5], 320
        %v1783 = vld [vmem:[%s1782] sm:$0xf]
        %v1784 = vld [vmem:[%s1782 + $0x4] sm:$0xf]
        %v1785 = vld [vmem:[%s1782 + $0x8] sm:$0xf]
        %v1786 = vld [vmem:[%s1782 + $0xc] sm:$0xf]
        %v1787 = vld [vmem:[%s1782 + $0x10] sm:$0xf]
        %v1788 = vld [vmem:[%s1782 + $0x14] sm:$0xf]
        %v1789 = vld [vmem:[%s1782 + $0x18] sm:$0xf]
        %v1790 = vld [vmem:[%s1782 + $0x1c] sm:$0xf]
        %v1791 = vld [vmem:[%s1782 + $0x20] sm:$0xf]
        %v1792 = vld [vmem:[%s1782 + $0x24] sm:$0xf]
        %v1793 = vld [vmem:[%s1782 + $0x28] sm:$0xf]
        %v1794 = vld [vmem:[%s1782 + $0x2c] sm:$0xf]
        %v1795 = vld [vmem:[%s1782 + $0x30] sm:$0xf]
        %v1796 = vld [vmem:[%s1782 + $0x34] sm:$0xf]
        %v1797 = vld [vmem:[%s1782 + $0x38] sm:$0xf]
        %v1798 = vld [vmem:[%s1782 + $0x3c] sm:$0xf]
        %vm1799 = vcmask 1045504
        %v1800 = vrot.slane %v326, 2
        %v1801 = vrot.slane %v327, 2
        %v1802 = vsel %vm1799, %v1800, %v1801
        %v1803 = vrot.slane %v328, 2
        %v1804 = vsel %vm1799, %v1801, %v1803
        %v1805 = vrot.slane %v329, 2
        %v1806 = vsel %vm1799, %v1803, %v1805
        %v1807 = vrot.slane %v330, 2
        %v1808 = vsel %vm1799, %v1805, %v1807
        %v1809 = vrot.slane %v331, 2
        %v1810 = vsel %vm1799, %v1807, %v1809
        %v1811 = vrot.slane %v332, 2
        %v1812 = vsel %vm1799, %v1809, %v1811
        %v1813 = vrot.slane %v333, 2
        %v1814 = vsel %vm1799, %v1811, %v1813
        %v1815 = vrot.slane %v334, 2
        %v1816 = vsel %vm1799, %v1813, %v1815
        %v1817 = vrot.slane %v335, 2
        %v1818 = vsel %vm1799, %v1815, %v1817
        %v1819 = vrot.slane %v336, 2
        %v1820 = vsel %vm1799, %v1817, %v1819
        %v1821 = vrot.slane %v337, 2
        %v1822 = vsel %vm1799, %v1819, %v1821
        %v1823 = vrot.slane %v574, 2
        %v1824 = vsel %vm1799, %v1821, %v1823
        %v1825 = vrot.slane %v1229, 2
        %v1826 = vsel %vm1799, %v1823, %v1825
        %v1857 = vunpack.c.l.b16 %v1783
        %v1858 = vunpack.c.l.b16 %v1784
        %v1859 = vunpack.c.l.b16 %v1785
        %v1860 = vunpack.c.l.b16 %v1786
        %v1861 = vunpack.c.l.b16 %v1787
        %v1862 = vunpack.c.l.b16 %v1788
        %v1863 = vunpack.c.l.b16 %v1789
        %v1864 = vunpack.c.l.b16 %v1790
        %v1865 = vunpack.c.l.b16 %v1791
        %v1866 = vunpack.c.l.b16 %v1792
        %v1867 = vunpack.c.l.b16 %v1793
        %v1868 = vunpack.c.l.b16 %v1794
        %v1869 = vunpack.c.l.b16 %v1795
        %v1870 = vunpack.c.l.b16 %v1796
        %v1871 = vunpack.c.l.b16 %v1797
        %v1872 = vunpack.c.l.b16 %v1798
        %v1873 = vpack.c.b16 %v1858, %v1857
        %v1874 = vpack.c.b16 %v1860, %v1859
        %v1875 = vpack.c.b16 %v1862, %v1861
        %v1876 = vpack.c.b16 %v1864, %v1863
        %v1877 = vpack.c.b16 %v1866, %v1865
        %v1878 = vpack.c.b16 %v1868, %v1867
        %v1879 = vpack.c.b16 %v1870, %v1869
        %v1880 = vpack.c.b16 %v1872, %v1871
        %1889 = vmatprep.subr.bf16.mxu0 0
        %1890 = vmatpush1.bf16.msra.mxu0 %v1873
        %1891 = vmatprep.subr.bf16.mxu0 0
        %1892 = vmatpush1.bf16.msra.mxu0 %v1874
        %1893 = vmatprep.subr.bf16.mxu0 0
        %1894 = vmatpush1.bf16.msra.mxu0 %v1875
        %1895 = vmatprep.subr.bf16.mxu0 0
        %1896 = vmatpush1.bf16.msra.mxu0 %v1876
        %1897 = vmatprep.subr.bf16.mxu0 0
        %1898 = vmatpush1.bf16.msra.mxu0 %v1877
        %1899 = vmatprep.subr.bf16.mxu0 0
        %1900 = vmatpush1.bf16.msra.mxu0 %v1878
        %1901 = vmatprep.subr.bf16.mxu0 0
        %1902 = vmatpush1.bf16.msra.mxu0 %v1879
        %1903 = vmatprep.subr.bf16.mxu0 0
        %1904 = vmatpush1.bf16.msra.mxu0 %v1880
        %1905 = vmatprep.subr.bf16.mxu0 0
        %1906 = vmatpush1.bf16.msra.mxu0 0
        %1907 = vmatprep.subr.bf16.mxu0 0
        %1908 = vmatpush1.bf16.msra.mxu0 0
        %1909 = vmatprep.subr.bf16.mxu0 0
        %1910 = vmatpush1.bf16.msra.mxu0 0
        %1911 = vmatprep.subr.bf16.mxu0 0
        %1912 = vmatpush1.bf16.msra.mxu0 0
        %1913 = vmatprep.subr.bf16.mxu0 0
        %1914 = vmatpush1.bf16.msra.mxu0 0
        %1915 = vmatprep.subr.bf16.mxu0 0
        %1916 = vmatpush1.bf16.msra.mxu0 0
        %1917 = vmatprep.subr.bf16.mxu0 0
        %1918 = vmatpush1.bf16.msra.mxu0 0
        %1919 = vmatprep.subr.bf16.mxu0 0
        %1920 = vmatpush1.bf16.msra.mxu0 0
        %1921 = vmatprep.mubr.bf16.mxu0 0
        %1922 = vmatmul.mubr.bf16.gmra.mrb[0].mxu0 %v1802
        %v1923 = vpop.f32.mrb[0].mxu0
        %v1924 = vadd.f32 0.0, %v1923
        %v1925 = vpop.f32.mrb[0].mxu0
        %v1926 = vpop.f32.mrb[0].mxu0
        %v1927 = vadd.f32 0.0, %v1926
        %v1928 = vpop.f32.mrb[0].mxu0
        %1929 = vmatprep.mubr.bf16.mxu0 0
        %1930 = vmatmul.mubr.bf16.gmra.mrb[0].mxu0 %v1804
        %v1931 = vpop.f32.mrb[0].mxu0
        %v1932 = vadd.f32 0.0, %v1931
        %v1933 = vpop.f32.mrb[0].mxu0
        %v1934 = vpop.f32.mrb[0].mxu0
        %v1935 = vadd.f32 0.0, %v1934
        %v1936 = vpop.f32.mrb[0].mxu0
        %1937 = vmatprep.mubr.bf16.mxu0 0
        %1938 = vmatmul.mubr.bf16.gmra.mrb[0].mxu0 %v1806
        %v1939 = vpop.f32.mrb[0].mxu0
        %v1940 = vadd.f32 0.0, %v1939
        %v1941 = vpop.f32.mrb[0].mxu0
        %v1942 = vpop.f32.mrb[0].mxu0
        %v1943 = vadd.f32 0.0, %v1942
        %v1944 = vpop.f32.mrb[0].mxu0
        %1945 = vmatprep.mubr.bf16.mxu0 0
        %1946 = vmatmul.mubr.bf16.gmra.mrb[0].mxu0 %v1808
        %v1947 = vpop.f32.mrb[0].mxu0
        %v1948 = vadd.f32 0.0, %v1947
        %v1949 = vpop.f32.mrb[0].mxu0
        %v1950 = vpop.f32.mrb[0].mxu0
        %v1951 = vadd.f32 0.0, %v1950
        %v1952 = vpop.f32.mrb[0].mxu0
        %1953 = vmatprep.mubr.bf16.mxu0 0
        %1954 = vmatmul.mubr.bf16.gmra.mrb[0].mxu0 %v1810
        %v1955 = vpop.f32.mrb[0].mxu0
        %v1956 = vadd.f32 0.0, %v1955
        %v1957 = vpop.f32.mrb[0].mxu0
        %v1958 = vpop.f32.mrb[0].mxu0
        %v1959 = vadd.f32 0.0, %v1958
        %v1960 = vpop.f32.mrb[0].mxu0
        %1961 = vmatprep.mubr.bf16.mxu0 0
        %1962 = vmatmul.mubr.bf16.gmra.mrb[0].mxu0 %v1812
        %v1963 = vpop.f32.mrb[0].mxu0
        %v1964 = vadd.f32 0.0, %v1963
        %v1965 = vpop.f32.mrb[0].mxu0
        %v1966 = vpop.f32.mrb[0].mxu0
        %v1967 = vadd.f32 0.0, %v1966
        %v1968 = vpop.f32.mrb[0].mxu0
        %1969 = vmatprep.mubr.bf16.mxu0 0
        %1970 = vmatmul.mubr.bf16.gmra.mrb[0].mxu0 %v1814
        %v1971 = vpop.f32.mrb[0].mxu0
        %v1972 = vadd.f32 0.0, %v1971
        %v1973 = vpop.f32.mrb[0].mxu0
        %v1974 = vpop.f32.mrb[0].mxu0
        %v1975 = vadd.f32 0.0, %v1974
        %v1976 = vpop.f32.mrb[0].mxu0
        %1977 = vmatprep.mubr.bf16.mxu0 0
        %1978 = vmatmul.mubr.bf16.gmra.mrb[0].mxu0 %v1816
        %v1979 = vpop.f32.mrb[0].mxu0
        %v1980 = vadd.f32 0.0, %v1979
        %v1981 = vpop.f32.mrb[0].mxu0
        %v1982 = vpop.f32.mrb[0].mxu0
        %v1983 = vadd.f32 0.0, %v1982
        %v1984 = vpop.f32.mrb[0].mxu0
        %1985 = vmatprep.mubr.bf16.mxu0 0
        %1986 = vmatmul.mubr.bf16.gmra.mrb[0].mxu0 %v1818
        %v1987 = vpop.f32.mrb[0].mxu0
        %v1988 = vadd.f32 0.0, %v1987
        %v1989 = vpop.f32.mrb[0].mxu0
        %v1990 = vpop.f32.mrb[0].mxu0
        %v1991 = vadd.f32 0.0, %v1990
        %v1992 = vpop.f32.mrb[0].mxu0
        %1993 = vmatprep.mubr.bf16.mxu0 0
        %1994 = vmatmul.mubr.bf16.gmra.mrb[0].mxu0 %v1820
        %v1995 = vpop.f32.mrb[0].mxu0
        %v1996 = vadd.f32 0.0, %v1995
        %v1997 = vpop.f32.mrb[0].mxu0
        %v1998 = vpop.f32.mrb[0].mxu0
        %v1999 = vadd.f32 0.0, %v1998
        %v2000 = vpop.f32.mrb[0].mxu0
        %2001 = vmatprep.mubr.bf16.mxu0 0
        %2002 = vmatmul.mubr.bf16.gmra.mrb[0].mxu0 %v1822
        %v2003 = vpop.f32.mrb[0].mxu0
        %v2004 = vadd.f32 0.0, %v2003
        %v2005 = vpop.f32.mrb[0].mxu0
        %v2006 = vpop.f32.mrb[0].mxu0
        %v2007 = vadd.f32 0.0, %v2006
        %v2008 = vpop.f32.mrb[0].mxu0
        %2009 = vmatprep.mubr.bf16.mxu0 0
        %2010 = vmatmul.mubr.bf16.gmra.mrb[0].mxu0 %v1824
        %v2011 = vpop.f32.mrb[0].mxu0
        %v2012 = vadd.f32 0.0, %v2011
        %v2013 = vpop.f32.mrb[0].mxu0
        %v2014 = vpop.f32.mrb[0].mxu0
        %v2015 = vadd.f32 0.0, %v2014
        %v2016 = vpop.f32.mrb[0].mxu0
        %2017 = vmatprep.mubr.bf16.mxu0 0
        %2018 = vmatmul.mubr.bf16.gmra.mrb[0].mxu0 %v1826
        %v2019 = vpop.f32.mrb[0].mxu0
        %v2020 = vadd.f32 0.0, %v2019
        %v2021 = vpop.f32.mrb[0].mxu0
        %v2022 = vpop.f32.mrb[0].mxu0
        %v2023 = vadd.f32 0.0, %v2022
        %v2024 = vpop.f32.mrb[0].mxu0
        %2025 = vmatprep.mubr.bf16.mxu0 0
        %2026 = vmatmul.mubr.bf16.gmra.mrb[0].mxu0 %v1825
        %v2027 = vpop.f32.mrb[0].mxu0
        %v2028 = vadd.f32 0.0, %v2027
        %v2029 = vpop.f32.mrb[0].mxu0
        %v2030 = vpop.f32.mrb[0].mxu0
        %v2031 = vpop.f32.mrb[0].mxu0
        %2032 = vdwg.mxu0
        %v2033 = vadd.f32 %v1755, %v1924
        %v2034 = vadd.f32 %v1756, %v1927
        %v2035 = vadd.f32 %v1757, %v1932
        %v2036 = vadd.f32 %v1758, %v1935
        %v2037 = vadd.f32 %v1759, %v1940
        %v2038 = vadd.f32 %v1760, %v1943
        %v2039 = vadd.f32 %v1761, %v1948
        %v2040 = vadd.f32 %v1762, %v1951
        %v2041 = vadd.f32 %v1763, %v1956
        %v2042 = vadd.f32 %v1764, %v1959
        %v2043 = vadd.f32 %v1765, %v1964
        %v2044 = vadd.f32 %v1766, %v1967
        %v2045 = vadd.f32 %v1767, %v1972
        %v2046 = vadd.f32 %v1768, %v1975
        %v2047 = vadd.f32 %v1769, %v1980
        %v2048 = vadd.f32 %v1770, %v1983
        %v2049 = vadd.f32 %v1771, %v1988
        %v2050 = vadd.f32 %v1772, %v1991
        %v2051 = vadd.f32 %v1773, %v1996
        %v2052 = vadd.f32 %v1774, %v1999
        %v2053 = vadd.f32 %v1775, %v2004
        %v2054 = vadd.f32 %v1776, %v2007
        %v2055 = vadd.f32 %v1777, %v2012
        %v2056 = vadd.f32 %v1778, %v2015
        %v2057 = vadd.f32 %v1779, %v2020
        %v2058 = vadd.f32 %v1780, %v2023
        %v2059 = vadd.f32 %v1781, %v2028
        %v2060 = vpack.c.bf16 %v317, %v316
        %s2061 = scalar_lea.vmem [#allocation5], 384
        %v2062 = vld [vmem:[%s2061] sm:$0xf]
        %v2063 = vld [vmem:[%s2061 + $0x4] sm:$0xf]
        %v2064 = vld [vmem:[%s2061 + $0x8] sm:$0xf]
        %v2065 = vld [vmem:[%s2061 + $0xc] sm:$0xf]
        %v2066 = vld [vmem:[%s2061 + $0x10] sm:$0xf]
        %v2067 = vld [vmem:[%s2061 + $0x14] sm:$0xf]
        %v2068 = vld [vmem:[%s2061 + $0x18] sm:$0xf]
        %v2069 = vld [vmem:[%s2061 + $0x1c] sm:$0xf]
        %v2070 = vld [vmem:[%s2061 + $0x20] sm:$0xf]
        %v2071 = vld [vmem:[%s2061 + $0x24] sm:$0xf]
        %v2072 = vld [vmem:[%s2061 + $0x28] sm:$0xf]
        %v2073 = vld [vmem:[%s2061 + $0x2c] sm:$0xf]
        %v2074 = vld [vmem:[%s2061 + $0x30] sm:$0xf]
        %v2075 = vld [vmem:[%s2061 + $0x34] sm:$0xf]
        %v2076 = vld [vmem:[%s2061 + $0x38] sm:$0xf]
        %v2077 = vld [vmem:[%s2061 + $0x3c] sm:$0xf]
        %v2079 = vrot.slane %v2060, 2
        %v2080 = vsel %vm1799, %v1825, %v2079
        %v2099 = vunpack.c.l.b16 %v2062
        %v2100 = vunpack.c.l.b16 %v2063
        %v2101 = vunpack.c.l.b16 %v2064
        %v2102 = vunpack.c.l.b16 %v2065
        %v2103 = vunpack.c.l.b16 %v2066
        %v2104 = vunpack.c.l.b16 %v2067
        %v2105 = vunpack.c.l.b16 %v2068
        %v2106 = vunpack.c.l.b16 %v2069
        %v2107 = vunpack.c.l.b16 %v2070
        %v2108 = vunpack.c.l.b16 %v2071
        %v2109 = vunpack.c.l.b16 %v2072
        %v2110 = vunpack.c.l.b16 %v2073
        %v2111 = vunpack.c.l.b16 %v2074
        %v2112 = vunpack.c.l.b16 %v2075
        %v2113 = vunpack.c.l.b16 %v2076
        %v2114 = vunpack.c.l.b16 %v2077
        %v2115 = vpack.c.b16 %v2100, %v2099
        %v2116 = vpack.c.b16 %v2102, %v2101
        %v2117 = vpack.c.b16 %v2104, %v2103
        %v2118 = vpack.c.b16 %v2106, %v2105
        %v2119 = vpack.c.b16 %v2108, %v2107
        %v2120 = vpack.c.b16 %v2110, %v2109
        %v2121 = vpack.c.b16 %v2112, %v2111
        %v2122 = vpack.c.b16 %v2114, %v2113
        %2131 = vmatprep.subr.bf16.mxu0 0
        %2132 = vmatpush1.bf16.msra.mxu0 %v2115
        %2133 = vmatprep.subr.bf16.mxu0 0
        %2134 = vmatpush1.bf16.msra.mxu0 %v2116
        %2135 = vmatprep.subr.bf16.mxu0 0
        %2136 = vmatpush1.bf16.msra.mxu0 %v2117
        %2137 = vmatprep.subr.bf16.mxu0 0
        %2138 = vmatpush1.bf16.msra.mxu0 %v2118
        %2139 = vmatprep.subr.bf16.mxu0 0
        %2140 = vmatpush1.bf16.msra.mxu0 %v2119
        %2141 = vmatprep.subr.bf16.mxu0 0
        %2142 = vmatpush1.bf16.msra.mxu0 %v2120
        %2143 = vmatprep.subr.bf16.mxu0 0
        %2144 = vmatpush1.bf16.msra.mxu0 %v2121
        %2145 = vmatprep.subr.bf16.mxu0 0
        %2146 = vmatpush1.bf16.msra.mxu0 %v2122
        %2147 = vmatprep.subr.bf16.mxu0 0
        %2148 = vmatpush1.bf16.msra.mxu0 0
        %2149 = vmatprep.subr.bf16.mxu0 0
        %2150 = vmatpush1.bf16.msra.mxu0 0
        %2151 = vmatprep.subr.bf16.mxu0 0
        %2152 = vmatpush1.bf16.msra.mxu0 0
        %2153 = vmatprep.subr.bf16.mxu0 0
        %2154 = vmatpush1.bf16.msra.mxu0 0
        %2155 = vmatprep.subr.bf16.mxu0 0
        %2156 = vmatpush1.bf16.msra.mxu0 0
        %2157 = vmatprep.subr.bf16.mxu0 0
        %2158 = vmatpush1.bf16.msra.mxu0 0
        %2159 = vmatprep.subr.bf16.mxu0 0
        %2160 = vmatpush1.bf16.msra.mxu0 0
        %2161 = vmatprep.subr.bf16.mxu0 0
        %2162 = vmatpush1.bf16.msra.mxu0 0
        %2163 = vmatprep.mubr.bf16.mxu0 0
        %2164 = vmatmul.mubr.bf16.gmra.mrb[0].mxu0 %v1804
        %v2165 = vpop.f32.mrb[0].mxu0
        %v2166 = vadd.f32 0.0, %v2165
        %v2167 = vpop.f32.mrb[0].mxu0
        %v2168 = vpop.f32.mrb[0].mxu0
        %v2169 = vadd.f32 0.0, %v2168
        %v2170 = vpop.f32.mrb[0].mxu0
        %2171 = vmatprep.mubr.bf16.mxu0 0
        %2172 = vmatmul.mubr.bf16.gmra.mrb[0].mxu0 %v1806
        %v2173 = vpop.f32.mrb[0].mxu0
        %v2174 = vadd.f32 0.0, %v2173
        %v2175 = vpop.f32.mrb[0].mxu0
        %v2176 = vpop.f32.mrb[0].mxu0
        %v2177 = vadd.f32 0.0, %v2176
        %v2178 = vpop.f32.mrb[0].mxu0
        %2179 = vmatprep.mubr.bf16.mxu0 0
        %2180 = vmatmul.mubr.bf16.gmra.mrb[0].mxu0 %v1808
        %v2181 = vpop.f32.mrb[0].mxu0
        %v2182 = vadd.f32 0.0, %v2181
        %v2183 = vpop.f32.mrb[0].mxu0
        %v2184 = vpop.f32.mrb[0].mxu0
        %v2185 = vadd.f32 0.0, %v2184
        %v2186 = vpop.f32.mrb[0].mxu0
        %2187 = vmatprep.mubr.bf16.mxu0 0
        %2188 = vmatmul.mubr.bf16.gmra.mrb[0].mxu0 %v1810
        %v2189 = vpop.f32.mrb[0].mxu0
        %v2190 = vadd.f32 0.0, %v2189
        %v2191 = vpop.f32.mrb[0].mxu0
        %v2192 = vpop.f32.mrb[0].mxu0
        %v2193 = vadd.f32 0.0, %v2192
        %v2194 = vpop.f32.mrb[0].mxu0
        %2195 = vmatprep.mubr.bf16.mxu0 0
        %2196 = vmatmul.mubr.bf16.gmra.mrb[0].mxu0 %v1812
        %v2197 = vpop.f32.mrb[0].mxu0
        %v2198 = vadd.f32 0.0, %v2197
        %v2199 = vpop.f32.mrb[0].mxu0
        %v2200 = vpop.f32.mrb[0].mxu0
        %v2201 = vadd.f32 0.0, %v2200
        %v2202 = vpop.f32.mrb[0].mxu0
        %2203 = vmatprep.mubr.bf16.mxu0 0
        %2204 = vmatmul.mubr.bf16.gmra.mrb[0].mxu0 %v1814
        %v2205 = vpop.f32.mrb[0].mxu0
        %v2206 = vadd.f32 0.0, %v2205
        %v2207 = vpop.f32.mrb[0].mxu0
        %v2208 = vpop.f32.mrb[0].mxu0
        %v2209 = vadd.f32 0.0, %v2208
        %v2210 = vpop.f32.mrb[0].mxu0
        %2211 = vmatprep.mubr.bf16.mxu0 0
        %2212 = vmatmul.mubr.bf16.gmra.mrb[0].mxu0 %v1816
        %v2213 = vpop.f32.mrb[0].mxu0
        %v2214 = vadd.f32 0.0, %v2213
        %v2215 = vpop.f32.mrb[0].mxu0
        %v2216 = vpop.f32.mrb[0].mxu0
        %v2217 = vadd.f32 0.0, %v2216
        %v2218 = vpop.f32.mrb[0].mxu0
        %2219 = vmatprep.mubr.bf16.mxu0 0
        %2220 = vmatmul.mubr.bf16.gmra.mrb[0].mxu0 %v1818
        %v2221 = vpop.f32.mrb[0].mxu0
        %v2222 = vadd.f32 0.0, %v2221
        %v2223 = vpop.f32.mrb[0].mxu0
        %v2224 = vpop.f32.mrb[0].mxu0
        %v2225 = vadd.f32 0.0, %v2224
        %v2226 = vpop.f32.mrb[0].mxu0
        %2227 = vmatprep.mubr.bf16.mxu0 0
        %2228 = vmatmul.mubr.bf16.gmra.mrb[0].mxu0 %v1820
        %v2229 = vpop.f32.mrb[0].mxu0
        %v2230 = vadd.f32 0.0, %v2229
        %v2231 = vpop.f32.mrb[0].mxu0
        %v2232 = vpop.f32.mrb[0].mxu0
        %v2233 = vadd.f32 0.0, %v2232
        %v2234 = vpop.f32.mrb[0].mxu0
        %2235 = vmatprep.mubr.bf16.mxu0 0
        %2236 = vmatmul.mubr.bf16.gmra.mrb[0].mxu0 %v1822
        %v2237 = vpop.f32.mrb[0].mxu0
        %v2238 = vadd.f32 0.0, %v2237
        %v2239 = vpop.f32.mrb[0].mxu0
        %v2240 = vpop.f32.mrb[0].mxu0
        %v2241 = vadd.f32 0.0, %v2240
        %v2242 = vpop.f32.mrb[0].mxu0
        %2243 = vmatprep.mubr.bf16.mxu0 0
        %2244 = vmatmul.mubr.bf16.gmra.mrb[0].mxu0 %v1824
        %v2245 = vpop.f32.mrb[0].mxu0
        %v2246 = vadd.f32 0.0, %v2245
        %v2247 = vpop.f32.mrb[0].mxu0
        %v2248 = vpop.f32.mrb[0].mxu0
        %v2249 = vadd.f32 0.0, %v2248
        %v2250 = vpop.f32.mrb[0].mxu0
        %2251 = vmatprep.mubr.bf16.mxu0 0
        %2252 = vmatmul.mubr.bf16.gmra.mrb[0].mxu0 %v1826
        %v2253 = vpop.f32.mrb[0].mxu0
        %v2254 = vadd.f32 0.0, %v2253
        %v2255 = vpop.f32.mrb[0].mxu0
        %v2256 = vpop.f32.mrb[0].mxu0
        %v2257 = vadd.f32 0.0, %v2256
        %v2258 = vpop.f32.mrb[0].mxu0
        %2259 = vmatprep.mubr.bf16.mxu0 0
        %2260 = vmatmul.mubr.bf16.gmra.mrb[0].mxu0 %v2080
        %v2261 = vpop.f32.mrb[0].mxu0
        %v2262 = vadd.f32 0.0, %v2261
        %v2263 = vpop.f32.mrb[0].mxu0
        %v2264 = vpop.f32.mrb[0].mxu0
        %v2265 = vadd.f32 0.0, %v2264
        %v2266 = vpop.f32.mrb[0].mxu0
        %2267 = vmatprep.mubr.bf16.mxu0 0
        %2268 = vmatmul.mubr.bf16.gmra.mrb[0].mxu0 %v2079
        %v2269 = vpop.f32.mrb[0].mxu0
        %v2270 = vadd.f32 0.0, %v2269
        %v2271 = vpop.f32.mrb[0].mxu0
        %v2272 = vpop.f32.mrb[0].mxu0
        %v2273 = vpop.f32.mrb[0].mxu0
        %2274 = vdwg.mxu0
        %v2275 = vadd.f32 %v2033, %v2166
        %v2276 = vadd.f32 %v2034, %v2169
        %v2277 = vadd.f32 %v2035, %v2174
        %v2278 = vadd.f32 %v2036, %v2177
        %v2279 = vadd.f32 %v2037, %v2182
        %v2280 = vadd.f32 %v2038, %v2185
        %v2281 = vadd.f32 %v2039, %v2190
        %v2282 = vadd.f32 %v2040, %v2193
        %v2283 = vadd.f32 %v2041, %v2198
        %v2284 = vadd.f32 %v2042, %v2201
        %v2285 = vadd.f32 %v2043, %v2206
        %v2286 = vadd.f32 %v2044, %v2209
        %v2287 = vadd.f32 %v2045, %v2214
        %v2288 = vadd.f32 %v2046, %v2217
        %v2289 = vadd.f32 %v2047, %v2222
        %v2290 = vadd.f32 %v2048, %v2225
        %v2291 = vadd.f32 %v2049, %v2230
        %v2292 = vadd.f32 %v2050, %v2233
        %v2293 = vadd.f32 %v2051, %v2238
        %v2294 = vadd.f32 %v2052, %v2241
        %v2295 = vadd.f32 %v2053, %v2246
        %v2296 = vadd.f32 %v2054, %v2249
        %v2297 = vadd.f32 %v2055, %v2254
        %v2298 = vadd.f32 %v2056, %v2257
        %v2299 = vadd.f32 %v2057, %v2262
        %v2300 = vadd.f32 %v2058, %v2265
        %v2301 = vadd.f32 %v2059, %v2270
        %s2302 = scalar_lea.vmem [#allocation5], 448
        %v2303 = vld [vmem:[%s2302] sm:$0xf]
        %v2304 = vld [vmem:[%s2302 + $0x4] sm:$0xf]
        %v2305 = vld [vmem:[%s2302 + $0x8] sm:$0xf]
        %v2306 = vld [vmem:[%s2302 + $0xc] sm:$0xf]
        %v2307 = vld [vmem:[%s2302 + $0x10] sm:$0xf]
        %v2308 = vld [vmem:[%s2302 + $0x14] sm:$0xf]
        %v2309 = vld [vmem:[%s2302 + $0x18] sm:$0xf]
        %v2310 = vld [vmem:[%s2302 + $0x1c] sm:$0xf]
        %v2311 = vld [vmem:[%s2302 + $0x20] sm:$0xf]
        %v2312 = vld [vmem:[%s2302 + $0x24] sm:$0xf]
        %v2313 = vld [vmem:[%s2302 + $0x28] sm:$0xf]
        %v2314 = vld [vmem:[%s2302 + $0x2c] sm:$0xf]
        %v2315 = vld [vmem:[%s2302 + $0x30] sm:$0xf]
        %v2316 = vld [vmem:[%s2302 + $0x34] sm:$0xf]
        %v2317 = vld [vmem:[%s2302 + $0x38] sm:$0xf]
        %v2318 = vld [vmem:[%s2302 + $0x3c] sm:$0xf]
        %vm2319 = vsmask.f32 5376
        %v2320 = vrot.slane %v613, 2
        %v2321 = vrot.slane %v609, 3
        %v2322 = vor.u32 %v2320, %v2321
        %v2323 = vrot.slane %v621, 2
        %v2324 = vrot.slane %v617, 3
        %v2325 = vor.u32 %v2323, %v2324
        %v2326 = vsel %vm2319, %v2322, %v2325
        %v2327 = vrot.slane %v629, 2
        %v2328 = vrot.slane %v625, 3
        %v2329 = vor.u32 %v2327, %v2328
        %v2330 = vsel %vm2319, %v2325, %v2329
        %v2331 = vrot.slane %v637, 2
        %v2332 = vrot.slane %v633, 3
        %v2333 = vor.u32 %v2331, %v2332
        %v2334 = vsel %vm2319, %v2329, %v2333
        %v2335 = vrot.slane %v645, 2
        %v2336 = vrot.slane %v641, 3
        %v2337 = vor.u32 %v2335, %v2336
        %v2338 = vsel %vm2319, %v2333, %v2337
        %v2339 = vrot.slane %v653, 2
        %v2340 = vrot.slane %v649, 3
        %v2341 = vor.u32 %v2339, %v2340
        %v2342 = vsel %vm2319, %v2337, %v2341
        %v2343 = vrot.slane %v661, 2
        %v2344 = vrot.slane %v657, 3
        %v2345 = vor.u32 %v2343, %v2344
        %v2346 = vsel %vm2319, %v2341, %v2345
        %v2347 = vrot.slane %v669, 2
        %v2348 = vrot.slane %v665, 3
        %v2349 = vor.u32 %v2347, %v2348
        %v2350 = vsel %vm2319, %v2345, %v2349
        %v2351 = vrot.slane %v677, 2
        %v2352 = vrot.slane %v673, 3
        %v2353 = vor.u32 %v2351, %v2352
        %v2354 = vsel %vm2319, %v2349, %v2353
        %v2355 = vrot.slane %v685, 2
        %v2356 = vrot.slane %v681, 3
        %v2357 = vor.u32 %v2355, %v2356
        %v2358 = vsel %vm2319, %v2353, %v2357
        %v2359 = vrot.slane %v693, 2
        %v2360 = vrot.slane %v689, 3
        %v2361 = vor.u32 %v2359, %v2360
        %v2362 = vsel %vm2319, %v2357, %v2361
        %v2363 = vrot.slane %v701, 2
        %v2364 = vrot.slane %v697, 3
        %v2365 = vor.u32 %v2363, %v2364
        %v2366 = vsel %vm2319, %v2361, %v2365
        %v2367 = vrot.slane %v1541, 2
        %v2368 = vrot.slane %v1544, 3
        %v2369 = vor.u32 %v2367, %v2368
        %v2370 = vsel %vm2319, %v2365, %v2369
        %v2372 = vshrl.u32 %v2060, 16
        %v2374 = vrot.slane %v2372, 2
        %v2375 = vshll.u32 %v2060, 16
        %v2377 = vrot.slane %v2375, 3
        %v2378 = vor.u32 %v2374, %v2377
        %v2379 = vsel %vm2319, %v2369, %v2378
        %v2410 = vunpack.c.l.b16 %v2303
        %v2411 = vunpack.c.l.b16 %v2304
        %v2412 = vunpack.c.l.b16 %v2305
        %v2413 = vunpack.c.l.b16 %v2306
        %v2414 = vunpack.c.l.b16 %v2307
        %v2415 = vunpack.c.l.b16 %v2308
        %v2416 = vunpack.c.l.b16 %v2309
        %v2417 = vunpack.c.l.b16 %v2310
        %v2418 = vunpack.c.l.b16 %v2311
        %v2419 = vunpack.c.l.b16 %v2312
        %v2420 = vunpack.c.l.b16 %v2313
        %v2421 = vunpack.c.l.b16 %v2314
        %v2422 = vunpack.c.l.b16 %v2315
        %v2423 = vunpack.c.l.b16 %v2316
        %v2424 = vunpack.c.l.b16 %v2317
        %v2425 = vunpack.c.l.b16 %v2318
        %v2426 = vpack.c.b16 %v2411, %v2410
        %v2427 = vpack.c.b16 %v2413, %v2412
        %v2428 = vpack.c.b16 %v2415, %v2414
        %v2429 = vpack.c.b16 %v2417, %v2416
        %v2430 = vpack.c.b16 %v2419, %v2418
        %v2431 = vpack.c.b16 %v2421, %v2420
        %v2432 = vpack.c.b16 %v2423, %v2422
        %v2433 = vpack.c.b16 %v2425, %v2424
        %2442 = vmatprep.subr.bf16.mxu0 0
        %2443 = vmatpush1.bf16.msra.mxu0 %v2426
        %2444 = vmatprep.subr.bf16.mxu0 0
        %2445 = vmatpush1.bf16.msra.mxu0 %v2427
        %2446 = vmatprep.subr.bf16.mxu0 0
        %2447 = vmatpush1.bf16.msra.mxu0 %v2428
        %2448 = vmatprep.subr.bf16.mxu0 0
        %2449 = vmatpush1.bf16.msra.mxu0 %v2429
        %2450 = vmatprep.subr.bf16.mxu0 0
        %2451 = vmatpush1.bf16.msra.mxu0 %v2430
        %2452 = vmatprep.subr.bf16.mxu0 0
        %2453 = vmatpush1.bf16.msra.mxu0 %v2431
        %2454 = vmatprep.subr.bf16.mxu0 0
        %2455 = vmatpush1.bf16.msra.mxu0 %v2432
        %2456 = vmatprep.subr.bf16.mxu0 0
        %2457 = vmatpush1.bf16.msra.mxu0 %v2433
        %2458 = vmatprep.subr.bf16.mxu0 0
        %2459 = vmatpush1.bf16.msra.mxu0 0
        %2460 = vmatprep.subr.bf16.mxu0 0
        %2461 = vmatpush1.bf16.msra.mxu0 0
        %2462 = vmatprep.subr.bf16.mxu0 0
        %2463 = vmatpush1.bf16.msra.mxu0 0
        %2464 = vmatprep.subr.bf16.mxu0 0
        %2465 = vmatpush1.bf16.msra.mxu0 0
        %2466 = vmatprep.subr.bf16.mxu0 0
        %2467 = vmatpush1.bf16.msra.mxu0 0
        %2468 = vmatprep.subr.bf16.mxu0 0
        %2469 = vmatpush1.bf16.msra.mxu0 0
        %2470 = vmatprep.subr.bf16.mxu0 0
        %2471 = vmatpush1.bf16.msra.mxu0 0
        %2472 = vmatprep.subr.bf16.mxu0 0
        %2473 = vmatpush1.bf16.msra.mxu0 0
        %2474 = vmatprep.mubr.bf16.mxu0 0
        %2475 = vmatmul.mubr.bf16.gmra.mrb[0].mxu0 %v2326
        %v2476 = vpop.f32.mrb[0].mxu0
        %v2477 = vadd.f32 0.0, %v2476
        %v2478 = vpop.f32.mrb[0].mxu0
        %v2479 = vpop.f32.mrb[0].mxu0
        %v2480 = vadd.f32 0.0, %v2479
        %v2481 = vpop.f32.mrb[0].mxu0
        %2482 = vmatprep.mubr.bf16.mxu0 0
        %2483 = vmatmul.mubr.bf16.gmra.mrb[0].mxu0 %v2330
        %v2484 = vpop.f32.mrb[0].mxu0
        %v2485 = vadd.f32 0.0, %v2484
        %v2486 = vpop.f32.mrb[0].mxu0
        %v2487 = vpop.f32.mrb[0].mxu0
        %v2488 = vadd.f32 0.0, %v2487
        %v2489 = vpop.f32.mrb[0].mxu0
        %2490 = vmatprep.mubr.bf16.mxu0 0
        %2491 = vmatmul.mubr.bf16.gmra.mrb[0].mxu0 %v2334
        %v2492 = vpop.f32.mrb[0].mxu0
        %v2493 = vadd.f32 0.0, %v2492
        %v2494 = vpop.f32.mrb[0].mxu0
        %v2495 = vpop.f32.mrb[0].mxu0
        %v2496 = vadd.f32 0.0, %v2495
        %v2497 = vpop.f32.mrb[0].mxu0
        %2498 = vmatprep.mubr.bf16.mxu0 0
        %2499 = vmatmul.mubr.bf16.gmra.mrb[0].mxu0 %v2338
        %v2500 = vpop.f32.mrb[0].mxu0
        %v2501 = vadd.f32 0.0, %v2500
        %v2502 = vpop.f32.mrb[0].mxu0
        %v2503 = vpop.f32.mrb[0].mxu0
        %v2504 = vadd.f32 0.0, %v2503
        %v2505 = vpop.f32.mrb[0].mxu0
        %2506 = vmatprep.mubr.bf16.mxu0 0
        %2507 = vmatmul.mubr.bf16.gmra.mrb[0].mxu0 %v2342
        %v2508 = vpop.f32.mrb[0].mxu0
        %v2509 = vadd.f32 0.0, %v2508
        %v2510 = vpop.f32.mrb[0].mxu0
        %v2511 = vpop.f32.mrb[0].mxu0
        %v2512 = vadd.f32 0.0, %v2511
        %v2513 = vpop.f32.mrb[0].mxu0
        %2514 = vmatprep.mubr.bf16.mxu0 0
        %2515 = vmatmul.mubr.bf16.gmra.mrb[0].mxu0 %v2346
        %v2516 = vpop.f32.mrb[0].mxu0
        %v2517 = vadd.f32 0.0, %v2516
        %v2518 = vpop.f32.mrb[0].mxu0
        %v2519 = vpop.f32.mrb[0].mxu0
        %v2520 = vadd.f32 0.0, %v2519
        %v2521 = vpop.f32.mrb[0].mxu0
        %2522 = vmatprep.mubr.bf16.mxu0 0
        %2523 = vmatmul.mubr.bf16.gmra.mrb[0].mxu0 %v2350
        %v2524 = vpop.f32.mrb[0].mxu0
        %v2525 = vadd.f32 0.0, %v2524
        %v2526 = vpop.f32.mrb[0].mxu0
        %v2527 = vpop.f32.mrb[0].mxu0
        %v2528 = vadd.f32 0.0, %v2527
        %v2529 = vpop.f32.mrb[0].mxu0
        %2530 = vmatprep.mubr.bf16.mxu0 0
        %2531 = vmatmul.mubr.bf16.gmra.mrb[0].mxu0 %v2354
        %v2532 = vpop.f32.mrb[0].mxu0
        %v2533 = vadd.f32 0.0, %v2532
        %v2534 = vpop.f32.mrb[0].mxu0
        %v2535 = vpop.f32.mrb[0].mxu0
        %v2536 = vadd.f32 0.0, %v2535
        %v2537 = vpop.f32.mrb[0].mxu0
        %2538 = vmatprep.mubr.bf16.mxu0 0
        %2539 = vmatmul.mubr.bf16.gmra.mrb[0].mxu0 %v2358
        %v2540 = vpop.f32.mrb[0].mxu0
        %v2541 = vadd.f32 0.0, %v2540
        %v2542 = vpop.f32.mrb[0].mxu0
        %v2543 = vpop.f32.mrb[0].mxu0
        %v2544 = vadd.f32 0.0, %v2543
        %v2545 = vpop.f32.mrb[0].mxu0
        %2546 = vmatprep.mubr.bf16.mxu0 0
        %2547 = vmatmul.mubr.bf16.gmra.mrb[0].mxu0 %v2362
        %v2548 = vpop.f32.mrb[0].mxu0
        %v2549 = vadd.f32 0.0, %v2548
        %v2550 = vpop.f32.mrb[0].mxu0
        %v2551 = vpop.f32.mrb[0].mxu0
        %v2552 = vadd.f32 0.0, %v2551
        %v2553 = vpop.f32.mrb[0].mxu0
        %2554 = vmatprep.mubr.bf16.mxu0 0
        %2555 = vmatmul.mubr.bf16.gmra.mrb[0].mxu0 %v2366
        %v2556 = vpop.f32.mrb[0].mxu0
        %v2557 = vadd.f32 0.0, %v2556
        %v2558 = vpop.f32.mrb[0].mxu0
        %v2559 = vpop.f32.mrb[0].mxu0
        %v2560 = vadd.f32 0.0, %v2559
        %v2561 = vpop.f32.mrb[0].mxu0
        %2562 = vmatprep.mubr.bf16.mxu0 0
        %2563 = vmatmul.mubr.bf16.gmra.mrb[0].mxu0 %v2370
        %v2564 = vpop.f32.mrb[0].mxu0
        %v2565 = vadd.f32 0.0, %v2564
        %v2566 = vpop.f32.mrb[0].mxu0
        %v2567 = vpop.f32.mrb[0].mxu0
        %v2568 = vadd.f32 0.0, %v2567
        %v2569 = vpop.f32.mrb[0].mxu0
        %2570 = vmatprep.mubr.bf16.mxu0 0
        %2571 = vmatmul.mubr.bf16.gmra.mrb[0].mxu0 %v2379
        %v2572 = vpop.f32.mrb[0].mxu0
        %v2573 = vadd.f32 0.0, %v2572
        %v2574 = vpop.f32.mrb[0].mxu0
        %v2575 = vpop.f32.mrb[0].mxu0
        %v2576 = vadd.f32 0.0, %v2575
        %v2577 = vpop.f32.mrb[0].mxu0
        %2578 = vmatprep.mubr.bf16.mxu0 0
        %2579 = vmatmul.mubr.bf16.gmra.mrb[0].mxu0 %v2378
        %v2580 = vpop.f32.mrb[0].mxu0
        %v2581 = vadd.f32 0.0, %v2580
        %v2582 = vpop.f32.mrb[0].mxu0
        %v2583 = vpop.f32.mrb[0].mxu0
        %v2584 = vpop.f32.mrb[0].mxu0
        %2585 = vdwg.mxu0
        %v2586 = vadd.f32 %v2275, %v2477
        %v2587 = vadd.f32 %v2276, %v2480
        %v2588 = vadd.f32 %v2277, %v2485
        %v2589 = vadd.f32 %v2278, %v2488
        %v2590 = vadd.f32 %v2279, %v2493
        %v2591 = vadd.f32 %v2280, %v2496
        %v2592 = vadd.f32 %v2281, %v2501
        %v2593 = vadd.f32 %v2282, %v2504
        %v2594 = vadd.f32 %v2283, %v2509
        %v2595 = vadd.f32 %v2284, %v2512
        %v2596 = vadd.f32 %v2285, %v2517
        %v2597 = vadd.f32 %v2286, %v2520
        %v2598 = vadd.f32 %v2287, %v2525
        %v2599 = vadd.f32 %v2288, %v2528
        %v2600 = vadd.f32 %v2289, %v2533
        %v2601 = vadd.f32 %v2290, %v2536
        %v2602 = vadd.f32 %v2291, %v2541
        %v2603 = vadd.f32 %v2292, %v2544
        %v2604 = vadd.f32 %v2293, %v2549
        %v2605 = vadd.f32 %v2294, %v2552
        %v2606 = vadd.f32 %v2295, %v2557
        %v2607 = vadd.f32 %v2296, %v2560
        %v2608 = vadd.f32 %v2297, %v2565
        %v2609 = vadd.f32 %v2298, %v2568
        %v2610 = vadd.f32 %v2299, %v2573
        %v2611 = vadd.f32 %v2300, %v2576
        %v2612 = vadd.f32 %v2301, %v2581
        %s2613 = scalar_lea.vmem [#allocation5], 512
        %v2614 = vld [vmem:[%s2613] sm:$0xf]
        %v2615 = vld [vmem:[%s2613 + $0x4] sm:$0xf]
        %v2616 = vld [vmem:[%s2613 + $0x8] sm:$0xf]
        %v2617 = vld [vmem:[%s2613 + $0xc] sm:$0xf]
        %v2618 = vld [vmem:[%s2613 + $0x10] sm:$0xf]
        %v2619 = vld [vmem:[%s2613 + $0x14] sm:$0xf]
        %v2620 = vld [vmem:[%s2613 + $0x18] sm:$0xf]
        %v2621 = vld [vmem:[%s2613 + $0x1c] sm:$0xf]
        %v2622 = vld [vmem:[%s2613 + $0x20] sm:$0xf]
        %v2623 = vld [vmem:[%s2613 + $0x24] sm:$0xf]
        %v2624 = vld [vmem:[%s2613 + $0x28] sm:$0xf]
        %v2625 = vld [vmem:[%s2613 + $0x2c] sm:$0xf]
        %v2626 = vld [vmem:[%s2613 + $0x30] sm:$0xf]
        %v2627 = vld [vmem:[%s2613 + $0x34] sm:$0xf]
        %v2628 = vld [vmem:[%s2613 + $0x38] sm:$0xf]
        %v2629 = vld [vmem:[%s2613 + $0x3c] sm:$0xf]
        %vm2630 = vcmask 1044480
        %v2631 = vrot.slane %v327, 3
        %v2632 = vrot.slane %v328, 3
        %v2633 = vsel %vm2630, %v2631, %v2632
        %v2634 = vrot.slane %v329, 3
        %v2635 = vsel %vm2630, %v2632, %v2634
        %v2636 = vrot.slane %v330, 3
        %v2637 = vsel %vm2630, %v2634, %v2636
        %v2638 = vrot.slane %v331, 3
        %v2639 = vsel %vm2630, %v2636, %v2638
        %v2640 = vrot.slane %v332, 3
        %v2641 = vsel %vm2630, %v2638, %v2640
        %v2642 = vrot.slane %v333, 3
        %v2643 = vsel %vm2630, %v2640, %v2642
        %v2644 = vrot.slane %v334, 3
        %v2645 = vsel %vm2630, %v2642, %v2644
        %v2646 = vrot.slane %v335, 3
        %v2647 = vsel %vm2630, %v2644, %v2646
        %v2648 = vrot.slane %v336, 3
        %v2649 = vsel %vm2630, %v2646, %v2648
        %v2650 = vrot.slane %v337, 3
        %v2651 = vsel %vm2630, %v2648, %v2650
        %v2652 = vrot.slane %v574, 3
        %v2653 = vsel %vm2630, %v2650, %v2652
        %v2654 = vrot.slane %v1229, 3
        %v2655 = vsel %vm2630, %v2652, %v2654
        %v2656 = vrot.slane %v2060, 3
        %v2657 = vsel %vm2630, %v2654, %v2656
        %v2688 = vunpack.c.l.b16 %v2614
        %v2689 = vunpack.c.l.b16 %v2615
        %v2690 = vunpack.c.l.b16 %v2616
        %v2691 = vunpack.c.l.b16 %v2617
        %v2692 = vunpack.c.l.b16 %v2618
        %v2693 = vunpack.c.l.b16 %v2619
        %v2694 = vunpack.c.l.b16 %v2620
        %v2695 = vunpack.c.l.b16 %v2621
        %v2696 = vunpack.c.l.b16 %v2622
        %v2697 = vunpack.c.l.b16 %v2623
        %v2698 = vunpack.c.l.b16 %v2624
        %v2699 = vunpack.c.l.b16 %v2625
        %v2700 = vunpack.c.l.b16 %v2626
        %v2701 = vunpack.c.l.b16 %v2627
        %v2702 = vunpack.c.l.b16 %v2628
        %v2703 = vunpack.c.l.b16 %v2629
        %v2704 = vpack.c.b16 %v2689, %v2688
        %v2705 = vpack.c.b16 %v2691, %v2690
        %v2706 = vpack.c.b16 %v2693, %v2692
        %v2707 = vpack.c.b16 %v2695, %v2694
        %v2708 = vpack.c.b16 %v2697, %v2696
        %v2709 = vpack.c.b16 %v2699, %v2698
        %v2710 = vpack.c.b16 %v2701, %v2700
        %v2711 = vpack.c.b16 %v2703, %v2702
        %2720 = vmatprep.subr.bf16.mxu0 0
        %2721 = vmatpush1.bf16.msra.mxu0 %v2704
        %2722 = vmatprep.subr.bf16.mxu0 0
        %2723 = vmatpush1.bf16.msra.mxu0 %v2705
        %2724 = vmatprep.subr.bf16.mxu0 0
        %2725 = vmatpush1.bf16.msra.mxu0 %v2706
        %2726 = vmatprep.subr.bf16.mxu0 0
        %2727 = vmatpush1.bf16.msra.mxu0 %v2707
        %2728 = vmatprep.subr.bf16.mxu0 0
        %2729 = vmatpush1.bf16.msra.mxu0 %v2708
        %2730 = vmatprep.subr.bf16.mxu0 0
        %2731 = vmatpush1.bf16.msra.mxu0 %v2709
        %2732 = vmatprep.subr.bf16.mxu0 0
        %2733 = vmatpush1.bf16.msra.mxu0 %v2710
        %2734 = vmatprep.subr.bf16.mxu0 0
        %2735 = vmatpush1.bf16.msra.mxu0 %v2711
        %2736 = vmatprep.subr.bf16.mxu0 0
        %2737 = vmatpush1.bf16.msra.mxu0 0
        %2738 = vmatprep.subr.bf16.mxu0 0
        %2739 = vmatpush1.bf16.msra.mxu0 0
        %2740 = vmatprep.subr.bf16.mxu0 0
        %2741 = vmatpush1.bf16.msra.mxu0 0
        %2742 = vmatprep.subr.bf16.mxu0 0
        %2743 = vmatpush1.bf16.msra.mxu0 0
        %2744 = vmatprep.subr.bf16.mxu0 0
        %2745 = vmatpush1.bf16.msra.mxu0 0
        %2746 = vmatprep.subr.bf16.mxu0 0
        %2747 = vmatpush1.bf16.msra.mxu0 0
        %2748 = vmatprep.subr.bf16.mxu0 0
        %2749 = vmatpush1.bf16.msra.mxu0 0
        %2750 = vmatprep.subr.bf16.mxu0 0
        %2751 = vmatpush1.bf16.msra.mxu0 0
        %2752 = vmatprep.mubr.bf16.mxu0 0
        %2753 = vmatmul.mubr.bf16.gmra.mrb[0].mxu0 %v2633
        %v2754 = vpop.f32.mrb[0].mxu0
        %v2755 = vadd.f32 0.0, %v2754
        %v2756 = vpop.f32.mrb[0].mxu0
        %v2757 = vpop.f32.mrb[0].mxu0
        %v2758 = vadd.f32 0.0, %v2757
        %v2759 = vpop.f32.mrb[0].mxu0
        %2760 = vmatprep.mubr.bf16.mxu0 0
        %2761 = vmatmul.mubr.bf16.gmra.mrb[0].mxu0 %v2635
        %v2762 = vpop.f32.mrb[0].mxu0
        %v2763 = vadd.f32 0.0, %v2762
        %v2764 = vpop.f32.mrb[0].mxu0
        %v2765 = vpop.f32.mrb[0].mxu0
        %v2766 = vadd.f32 0.0, %v2765
        %v2767 = vpop.f32.mrb[0].mxu0
        %2768 = vmatprep.mubr.bf16.mxu0 0
        %2769 = vmatmul.mubr.bf16.gmra.mrb[0].mxu0 %v2637
        %v2770 = vpop.f32.mrb[0].mxu0
        %v2771 = vadd.f32 0.0, %v2770
        %v2772 = vpop.f32.mrb[0].mxu0
        %v2773 = vpop.f32.mrb[0].mxu0
        %v2774 = vadd.f32 0.0, %v2773
        %v2775 = vpop.f32.mrb[0].mxu0
        %2776 = vmatprep.mubr.bf16.mxu0 0
        %2777 = vmatmul.mubr.bf16.gmra.mrb[0].mxu0 %v2639
        %v2778 = vpop.f32.mrb[0].mxu0
        %v2779 = vadd.f32 0.0, %v2778
        %v2780 = vpop.f32.mrb[0].mxu0
        %v2781 = vpop.f32.mrb[0].mxu0
        %v2782 = vadd.f32 0.0, %v2781
        %v2783 = vpop.f32.mrb[0].mxu0
        %2784 = vmatprep.mubr.bf16.mxu0 0
        %2785 = vmatmul.mubr.bf16.gmra.mrb[0].mxu0 %v2641
        %v2786 = vpop.f32.mrb[0].mxu0
        %v2787 = vadd.f32 0.0, %v2786
        %v2788 = vpop.f32.mrb[0].mxu0
        %v2789 = vpop.f32.mrb[0].mxu0
        %v2790 = vadd.f32 0.0, %v2789
        %v2791 = vpop.f32.mrb[0].mxu0
        %2792 = vmatprep.mubr.bf16.mxu0 0
        %2793 = vmatmul.mubr.bf16.gmra.mrb[0].mxu0 %v2643
        %v2794 = vpop.f32.mrb[0].mxu0
        %v2795 = vadd.f32 0.0, %v2794
        %v2796 = vpop.f32.mrb[0].mxu0
        %v2797 = vpop.f32.mrb[0].mxu0
        %v2798 = vadd.f32 0.0, %v2797
        %v2799 = vpop.f32.mrb[0].mxu0
        %2800 = vmatprep.mubr.bf16.mxu0 0
        %2801 = vmatmul.mubr.bf16.gmra.mrb[0].mxu0 %v2645
        %v2802 = vpop.f32.mrb[0].mxu0
        %v2803 = vadd.f32 0.0, %v2802
        %v2804 = vpop.f32.mrb[0].mxu0
        %v2805 = vpop.f32.mrb[0].mxu0
        %v2806 = vadd.f32 0.0, %v2805
        %v2807 = vpop.f32.mrb[0].mxu0
        %2808 = vmatprep.mubr.bf16.mxu0 0
        %2809 = vmatmul.mubr.bf16.gmra.mrb[0].mxu0 %v2647
        %v2810 = vpop.f32.mrb[0].mxu0
        %v2811 = vadd.f32 0.0, %v2810
        %v2812 = vpop.f32.mrb[0].mxu0
        %v2813 = vpop.f32.mrb[0].mxu0
        %v2814 = vadd.f32 0.0, %v2813
        %v2815 = vpop.f32.mrb[0].mxu0
        %2816 = vmatprep.mubr.bf16.mxu0 0
        %2817 = vmatmul.mubr.bf16.gmra.mrb[0].mxu0 %v2649
        %v2818 = vpop.f32.mrb[0].mxu0
        %v2819 = vadd.f32 0.0, %v2818
        %v2820 = vpop.f32.mrb[0].mxu0
        %v2821 = vpop.f32.mrb[0].mxu0
        %v2822 = vadd.f32 0.0, %v2821
        %v2823 = vpop.f32.mrb[0].mxu0
        %2824 = vmatprep.mubr.bf16.mxu0 0
        %2825 = vmatmul.mubr.bf16.gmra.mrb[0].mxu0 %v2651
        %v2826 = vpop.f32.mrb[0].mxu0
        %v2827 = vadd.f32 0.0, %v2826
        %v2828 = vpop.f32.mrb[0].mxu0
        %v2829 = vpop.f32.mrb[0].mxu0
        %v2830 = vadd.f32 0.0, %v2829
        %v2831 = vpop.f32.mrb[0].mxu0
        %2832 = vmatprep.mubr.bf16.mxu0 0
        %2833 = vmatmul.mubr.bf16.gmra.mrb[0].mxu0 %v2653
        %v2834 = vpop.f32.mrb[0].mxu0
        %v2835 = vadd.f32 0.0, %v2834
        %v2836 = vpop.f32.mrb[0].mxu0
        %v2837 = vpop.f32.mrb[0].mxu0
        %v2838 = vadd.f32 0.0, %v2837
        %v2839 = vpop.f32.mrb[0].mxu0
        %2840 = vmatprep.mubr.bf16.mxu0 0
        %2841 = vmatmul.mubr.bf16.gmra.mrb[0].mxu0 %v2655
        %v2842 = vpop.f32.mrb[0].mxu0
        %v2843 = vadd.f32 0.0, %v2842
        %v2844 = vpop.f32.mrb[0].mxu0
        %v2845 = vpop.f32.mrb[0].mxu0
        %v2846 = vadd.f32 0.0, %v2845
        %v2847 = vpop.f32.mrb[0].mxu0
        %2848 = vmatprep.mubr.bf16.mxu0 0
        %2849 = vmatmul.mubr.bf16.gmra.mrb[0].mxu0 %v2657
        %v2850 = vpop.f32.mrb[0].mxu0
        %v2851 = vadd.f32 0.0, %v2850
        %v2852 = vpop.f32.mrb[0].mxu0
        %v2853 = vpop.f32.mrb[0].mxu0
        %v2854 = vadd.f32 0.0, %v2853
        %v2855 = vpop.f32.mrb[0].mxu0
        %2856 = vmatprep.mubr.bf16.mxu0 0
        %2857 = vmatmul.mubr.bf16.gmra.mrb[0].mxu0 %v2656
        %v2858 = vpop.f32.mrb[0].mxu0
        %v2859 = vadd.f32 0.0, %v2858
        %v2860 = vpop.f32.mrb[0].mxu0
        %v2861 = vpop.f32.mrb[0].mxu0
        %v2862 = vpop.f32.mrb[0].mxu0
        %2863 = vdwg.mxu0
        %v2864 = vadd.f32 %v2586, %v2755
        %v2865 = vadd.f32 %v2587, %v2758
        %v2866 = vadd.f32 %v2588, %v2763
        %v2867 = vadd.f32 %v2589, %v2766
        %v2868 = vadd.f32 %v2590, %v2771
        %v2869 = vadd.f32 %v2591, %v2774
        %v2870 = vadd.f32 %v2592, %v2779
        %v2871 = vadd.f32 %v2593, %v2782
        %v2872 = vadd.f32 %v2594, %v2787
        %v2873 = vadd.f32 %v2595, %v2790
        %v2874 = vadd.f32 %v2596, %v2795
        %v2875 = vadd.f32 %v2597, %v2798
        %v2876 = vadd.f32 %v2598, %v2803
        %v2877 = vadd.f32 %v2599, %v2806
        %v2878 = vadd.f32 %v2600, %v2811
        %v2879 = vadd.f32 %v2601, %v2814
        %v2880 = vadd.f32 %v2602, %v2819
        %v2881 = vadd.f32 %v2603, %v2822
        %v2882 = vadd.f32 %v2604, %v2827
        %v2883 = vadd.f32 %v2605, %v2830
        %v2884 = vadd.f32 %v2606, %v2835
        %v2885 = vadd.f32 %v2607, %v2838
        %v2886 = vadd.f32 %v2608, %v2843
        %v2887 = vadd.f32 %v2609, %v2846
        %v2888 = vadd.f32 %v2610, %v2851
        %v2889 = vadd.f32 %v2611, %v2854
        %v2890 = vadd.f32 %v2612, %v2859
        %v2891 = vmax.f32 %v2864, 0.0
        %v2892 = vmax.f32 %v2865, 0.0
        %v2893 = vmax.f32 %v2866, 0.0
        %v2894 = vmax.f32 %v2867, 0.0
        %v2895 = vmax.f32 %v2868, 0.0
        %v2896 = vmax.f32 %v2869, 0.0
        %v2897 = vmax.f32 %v2870, 0.0
        %v2898 = vmax.f32 %v2871, 0.0
        %v2899 = vmax.f32 %v2872, 0.0
        %v2900 = vmax.f32 %v2873, 0.0
        %v2901 = vmax.f32 %v2874, 0.0
        %v2902 = vmax.f32 %v2875, 0.0
        %v2903 = vmax.f32 %v2876, 0.0
        %v2904 = vmax.f32 %v2877, 0.0
        %v2905 = vmax.f32 %v2878, 0.0
        %v2906 = vmax.f32 %v2879, 0.0
        %v2907 = vmax.f32 %v2880, 0.0
        %v2908 = vmax.f32 %v2881, 0.0
        %v2909 = vmax.f32 %v2882, 0.0
        %v2910 = vmax.f32 %v2883, 0.0
        %v2911 = vmax.f32 %v2884, 0.0
        %v2912 = vmax.f32 %v2885, 0.0
        %v2913 = vmax.f32 %v2886, 0.0
        %v2914 = vmax.f32 %v2887, 0.0
        %v2915 = vmax.f32 %v2888, 0.0
        %v2916 = vmax.f32 %v2889, 0.0
        %v2917 = vmax.f32 %v2890, 0.0
        %v2918 = vpack.c.bf16 %v2892, %v2891
        %v2919 = vpack.c.bf16 %v2894, %v2893
        %v2920 = vpack.c.bf16 %v2896, %v2895
        %v2921 = vpack.c.bf16 %v2898, %v2897
        %v2922 = vpack.c.bf16 %v2900, %v2899
        %v2923 = vpack.c.bf16 %v2902, %v2901
        %v2924 = vpack.c.bf16 %v2904, %v2903
        %v2925 = vpack.c.bf16 %v2906, %v2905
        %v2926 = vpack.c.bf16 %v2908, %v2907
        %v2927 = vpack.c.bf16 %v2910, %v2909
        %v2928 = vpack.c.bf16 %v2912, %v2911
        %v2929 = vpack.c.bf16 %v2914, %v2913
        %v2930 = vpack.c.bf16 %v2916, %v2915
        %v2931 = vpack.c.bf16 %v2917, %v2917
        %v2932 = vld [vmem:[#allocation7] sm:$0xf]
        %v2933 = vld [vmem:[#allocation7 + $0x4] sm:$0xf]
        %v2934 = vld [vmem:[#allocation7 + $0x8] sm:$0xf]
        %v2935 = vld [vmem:[#allocation7 + $0xc] sm:$0xf]
        %v2936 = vld [vmem:[#allocation7 + $0x10] sm:$0xf]
        %v2937 = vld [vmem:[#allocation7 + $0x14] sm:$0xf]
        %v2938 = vld [vmem:[#allocation7 + $0x18] sm:$0xf]
        %v2939 = vld [vmem:[#allocation7 + $0x1c] sm:$0xf]
        %v2940 = vld [vmem:[#allocation7 + $0x20] sm:$0xf]
        %v2941 = vld [vmem:[#allocation7 + $0x24] sm:$0xf]
        %v2942 = vld [vmem:[#allocation7 + $0x28] sm:$0xf]
        %v2943 = vld [vmem:[#allocation7 + $0x2c] sm:$0xf]
        %v2944 = vld [vmem:[#allocation7 + $0x30] sm:$0xf]
        %v2945 = vld [vmem:[#allocation7 + $0x34] sm:$0xf]
        %v2946 = vld [vmem:[#allocation7 + $0x38] sm:$0xf]
        %v2947 = vld [vmem:[#allocation7 + $0x3c] sm:$0xf]
        %v2948 = vld [vmem:[%s4] sm:$0x1]
        %v2950 = vlaneseq
        %v2951 = vshrl.u32 %v2950, 7
        %v2952 = vsub.s32 0, %v2951
        %v2953 = vrot.slane %v2948, %v2952
        %v2971 = vunpack.c.l.b16 %v2932
        %v2972 = vunpack.c.l.b16 %v2933
        %v2973 = vunpack.c.l.b16 %v2934
        %v2974 = vunpack.c.l.b16 %v2935
        %v2975 = vunpack.c.l.b16 %v2936
        %v2976 = vunpack.c.l.b16 %v2937
        %v2977 = vunpack.c.l.b16 %v2938
        %v2978 = vunpack.c.l.b16 %v2939
        %v2979 = vunpack.c.l.b16 %v2940
        %v2980 = vunpack.c.l.b16 %v2941
        %v2981 = vunpack.c.l.b16 %v2942
        %v2982 = vunpack.c.l.b16 %v2943
        %v2983 = vunpack.c.l.b16 %v2944
        %v2984 = vunpack.c.l.b16 %v2945
        %v2985 = vunpack.c.l.b16 %v2946
        %v2986 = vunpack.c.l.b16 %v2947
        %v2987 = vpack.c.b16 %v2972, %v2971
        %v2988 = vpack.c.b16 %v2974, %v2973
        %v2989 = vpack.c.b16 %v2976, %v2975
        %v2990 = vpack.c.b16 %v2978, %v2977
        %v2991 = vpack.c.b16 %v2980, %v2979
        %v2992 = vpack.c.b16 %v2982, %v2981
        %v2993 = vpack.c.b16 %v2984, %v2983
        %v2994 = vpack.c.b16 %v2986, %v2985
        %3003 = vmatprep.subr.bf16.mxu0 0
        %3004 = vmatpush1.bf16.msra.mxu0 %v2987
        %3005 = vmatprep.subr.bf16.mxu0 0
        %3006 = vmatpush1.bf16.msra.mxu0 %v2988
        %3007 = vmatprep.subr.bf16.mxu0 0
        %3008 = vmatpush1.bf16.msra.mxu0 %v2989
        %3009 = vmatprep.subr.bf16.mxu0 0
        %3010 = vmatpush1.bf16.msra.mxu0 %v2990
        %3011 = vmatprep.subr.bf16.mxu0 0
        %3012 = vmatpush1.bf16.msra.mxu0 %v2991
        %3013 = vmatprep.subr.bf16.mxu0 0
        %3014 = vmatpush1.bf16.msra.mxu0 %v2992
        %3015 = vmatprep.subr.bf16.mxu0 0
        %3016 = vmatpush1.bf16.msra.mxu0 %v2993
        %3017 = vmatprep.subr.bf16.mxu0 0
        %3018 = vmatpush1.bf16.msra.mxu0 %v2994
        %3019 = vmatprep.subr.bf16.mxu0 0
        %3020 = vmatpush1.bf16.msra.mxu0 0
        %3021 = vmatprep.subr.bf16.mxu0 0
        %3022 = vmatpush1.bf16.msra.mxu0 0
        %3023 = vmatprep.subr.bf16.mxu0 0
        %3024 = vmatpush1.bf16.msra.mxu0 0
        %3025 = vmatprep.subr.bf16.mxu0 0
        %3026 = vmatpush1.bf16.msra.mxu0 0
        %3027 = vmatprep.subr.bf16.mxu0 0
        %3028 = vmatpush1.bf16.msra.mxu0 0
        %3029 = vmatprep.subr.bf16.mxu0 0
        %3030 = vmatpush1.bf16.msra.mxu0 0
        %3031 = vmatprep.subr.bf16.mxu0 0
        %3032 = vmatpush1.bf16.msra.mxu0 0
        %3033 = vmatprep.subr.bf16.mxu0 0
        %3034 = vmatpush1.bf16.msra.mxu0 0
        %3035 = vmatprep.mubr.bf16.mxu0 0
        %3036 = vmatmul.mubr.bf16.gmra.mrb[0].mxu0 %v2918
        %v3037 = vpop.f32.mrb[0].mxu0
        %v3038 = vadd.f32 %v2953, %v3037
        %v3039 = vpop.f32.mrb[0].mxu0
        %v3040 = vpop.f32.mrb[0].mxu0
        %v3041 = vadd.f32 %v2953, %v3040
        %v3042 = vpop.f32.mrb[0].mxu0
        %3043 = vmatprep.mubr.bf16.mxu0 0
        %3044 = vmatmul.mubr.bf16.gmra.mrb[0].mxu0 %v2919
        %v3045 = vpop.f32.mrb[0].mxu0
        %v3046 = vadd.f32 %v2953, %v3045
        %v3047 = vpop.f32.mrb[0].mxu0
        %v3048 = vpop.f32.mrb[0].mxu0
        %v3049 = vadd.f32 %v2953, %v3048
        %v3050 = vpop.f32.mrb[0].mxu0
        %3051 = vmatprep.mubr.bf16.mxu0 0
        %3052 = vmatmul.mubr.bf16.gmra.mrb[0].mxu0 %v2920
        %v3053 = vpop.f32.mrb[0].mxu0
        %v3054 = vadd.f32 %v2953, %v3053
        %v3055 = vpop.f32.mrb[0].mxu0
        %v3056 = vpop.f32.mrb[0].mxu0
        %v3057 = vadd.f32 %v2953, %v3056
        %v3058 = vpop.f32.mrb[0].mxu0
        %3059 = vmatprep.mubr.bf16.mxu0 0
        %3060 = vmatmul.mubr.bf16.gmra.mrb[0].mxu0 %v2921
        %v3061 = vpop.f32.mrb[0].mxu0
        %v3062 = vadd.f32 %v2953, %v3061
        %v3063 = vpop.f32.mrb[0].mxu0
        %v3064 = vpop.f32.mrb[0].mxu0
        %v3065 = vadd.f32 %v2953, %v3064
        %v3066 = vpop.f32.mrb[0].mxu0
        %3067 = vmatprep.mubr.bf16.mxu0 0
        %3068 = vmatmul.mubr.bf16.gmra.mrb[0].mxu0 %v2922
        %v3069 = vpop.f32.mrb[0].mxu0
        %v3070 = vadd.f32 %v2953, %v3069
        %v3071 = vpop.f32.mrb[0].mxu0
        %v3072 = vpop.f32.mrb[0].mxu0
        %v3073 = vadd.f32 %v2953, %v3072
        %v3074 = vpop.f32.mrb[0].mxu0
        %3075 = vmatprep.mubr.bf16.mxu0 0
        %3076 = vmatmul.mubr.bf16.gmra.mrb[0].mxu0 %v2923
        %v3077 = vpop.f32.mrb[0].mxu0
        %v3078 = vadd.f32 %v2953, %v3077
        %v3079 = vpop.f32.mrb[0].mxu0
        %v3080 = vpop.f32.mrb[0].mxu0
        %v3081 = vadd.f32 %v2953, %v3080
        %v3082 = vpop.f32.mrb[0].mxu0
        %3083 = vmatprep.mubr.bf16.mxu0 0
        %3084 = vmatmul.mubr.bf16.gmra.mrb[0].mxu0 %v2924
        %v3085 = vpop.f32.mrb[0].mxu0
        %v3086 = vadd.f32 %v2953, %v3085
        %v3087 = vpop.f32.mrb[0].mxu0
        %v3088 = vpop.f32.mrb[0].mxu0
        %v3089 = vadd.f32 %v2953, %v3088
        %v3090 = vpop.f32.mrb[0].mxu0
        %3091 = vmatprep.mubr.bf16.mxu0 0
        %3092 = vmatmul.mubr.bf16.gmra.mrb[0].mxu0 %v2925
        %v3093 = vpop.f32.mrb[0].mxu0
        %v3094 = vadd.f32 %v2953, %v3093
        %v3095 = vpop.f32.mrb[0].mxu0
        %v3096 = vpop.f32.mrb[0].mxu0
        %v3097 = vadd.f32 %v2953, %v3096
        %v3098 = vpop.f32.mrb[0].mxu0
        %3099 = vmatprep.mubr.bf16.mxu0 0
        %3100 = vmatmul.mubr.bf16.gmra.mrb[0].mxu0 %v2926
        %v3101 = vpop.f32.mrb[0].mxu0
        %v3102 = vadd.f32 %v2953, %v3101
        %v3103 = vpop.f32.mrb[0].mxu0
        %v3104 = vpop.f32.mrb[0].mxu0
        %v3105 = vadd.f32 %v2953, %v3104
        %v3106 = vpop.f32.mrb[0].mxu0
        %3107 = vmatprep.mubr.bf16.mxu0 0
        %3108 = vmatmul.mubr.bf16.gmra.mrb[0].mxu0 %v2927
        %v3109 = vpop.f32.mrb[0].mxu0
        %v3110 = vadd.f32 %v2953, %v3109
        %v3111 = vpop.f32.mrb[0].mxu0
        %v3112 = vpop.f32.mrb[0].mxu0
        %v3113 = vadd.f32 %v2953, %v3112
        %v3114 = vpop.f32.mrb[0].mxu0
        %3115 = vmatprep.mubr.bf16.mxu0 0
        %3116 = vmatmul.mubr.bf16.gmra.mrb[0].mxu0 %v2928
        %v3117 = vpop.f32.mrb[0].mxu0
        %v3118 = vadd.f32 %v2953, %v3117
        %v3119 = vpop.f32.mrb[0].mxu0
        %v3120 = vpop.f32.mrb[0].mxu0
        %v3121 = vadd.f32 %v2953, %v3120
        %v3122 = vpop.f32.mrb[0].mxu0
        %3123 = vmatprep.mubr.bf16.mxu0 0
        %3124 = vmatmul.mubr.bf16.gmra.mrb[0].mxu0 %v2929
        %v3125 = vpop.f32.mrb[0].mxu0
        %v3126 = vadd.f32 %v2953, %v3125
        %v3127 = vpop.f32.mrb[0].mxu0
        %v3128 = vpop.f32.mrb[0].mxu0
        %v3129 = vadd.f32 %v2953, %v3128
        %v3130 = vpop.f32.mrb[0].mxu0
        %3131 = vmatprep.mubr.bf16.mxu0 0
        %3132 = vmatmul.mubr.bf16.gmra.mrb[0].mxu0 %v2930
        %v3133 = vpop.f32.mrb[0].mxu0
        %v3134 = vadd.f32 %v2953, %v3133
        %v3135 = vpop.f32.mrb[0].mxu0
        %v3136 = vpop.f32.mrb[0].mxu0
        %v3137 = vadd.f32 %v2953, %v3136
        %v3138 = vpop.f32.mrb[0].mxu0
        %3139 = vmatprep.mubr.bf16.mxu0 0
        %3140 = vmatmul.mubr.bf16.gmra.mrb[0].mxu0 %v2931
        %v3141 = vpop.f32.mrb[0].mxu0
        %v3142 = vadd.f32 %v2953, %v3141
        %v3143 = vpop.f32.mrb[0].mxu0
        %v3144 = vpop.f32.mrb[0].mxu0
        %v3145 = vpop.f32.mrb[0].mxu0
        %3146 = vdwg.mxu0
        %v3147 = vmul.f32 %v3038, 0.5
        %v3148 = vmul.f32 %v3041, 0.5
        %v3149 = vmul.f32 %v3046, 0.5
        %v3150 = vmul.f32 %v3049, 0.5
        %v3151 = vmul.f32 %v3054, 0.5
        %v3152 = vmul.f32 %v3057, 0.5
        %v3153 = vmul.f32 %v3062, 0.5
        %v3154 = vmul.f32 %v3065, 0.5
        %v3155 = vmul.f32 %v3070, 0.5
        %v3156 = vmul.f32 %v3073, 0.5
        %v3157 = vmul.f32 %v3078, 0.5
        %v3158 = vmul.f32 %v3081, 0.5
        %v3159 = vmul.f32 %v3086, 0.5
        %v3160 = vmul.f32 %v3089, 0.5
        %v3161 = vmul.f32 %v3094, 0.5
        %v3162 = vmul.f32 %v3097, 0.5
        %v3163 = vmul.f32 %v3102, 0.5
        %v3164 = vmul.f32 %v3105, 0.5
        %v3165 = vmul.f32 %v3110, 0.5
        %v3166 = vmul.f32 %v3113, 0.5
        %v3167 = vmul.f32 %v3118, 0.5
        %v3168 = vmul.f32 %v3121, 0.5
        %v3169 = vmul.f32 %v3126, 0.5
        %v3170 = vmul.f32 %v3129, 0.5
        %v3171 = vmul.f32 %v3134, 0.5
        %v3172 = vmul.f32 %v3137, 0.5
        %v3173 = vmul.f32 %v3142, 0.5
        %v3174 = vtanh.pop %v3147
        %v3175 = vtanh.pop %v3148
        %v3176 = vtanh.pop %v3149
        %v3177 = vtanh.pop %v3150
        %v3178 = vtanh.pop %v3151
        %v3179 = vtanh.pop %v3152
        %v3180 = vtanh.pop %v3153
        %v3181 = vtanh.pop %v3154
        %v3182 = vtanh.pop %v3155
        %v3183 = vtanh.pop %v3156
        %v3184 = vtanh.pop %v3157
        %v3185 = vtanh.pop %v3158
        %v3186 = vtanh.pop %v3159
        %v3187 = vtanh.pop %v3160
        %v3188 = vtanh.pop %v3161
        %v3189 = vtanh.pop %v3162
        %v3190 = vtanh.pop %v3163
        %v3191 = vtanh.pop %v3164
        %v3192 = vtanh.pop %v3165
        %v3193 = vtanh.pop %v3166
        %v3194 = vtanh.pop %v3167
        %v3195 = vtanh.pop %v3168
        %v3196 = vtanh.pop %v3169
        %v3197 = vtanh.pop %v3170
        %v3198 = vtanh.pop %v3171
        %v3199 = vtanh.pop %v3172
        %v3200 = vtanh.pop %v3173
        %v3201 = vadd.f32 %v3174, 1.0
        %v3202 = vadd.f32 %v3175, 1.0
        %v3203 = vadd.f32 %v3176, 1.0
        %v3204 = vadd.f32 %v3177, 1.0
        %v3205 = vadd.f32 %v3178, 1.0
        %v3206 = vadd.f32 %v3179, 1.0
        %v3207 = vadd.f32 %v3180, 1.0
        %v3208 = vadd.f32 %v3181, 1.0
        %v3209 = vadd.f32 %v3182, 1.0
        %v3210 = vadd.f32 %v3183, 1.0
        %v3211 = vadd.f32 %v3184, 1.0
        %v3212 = vadd.f32 %v3185, 1.0
        %v3213 = vadd.f32 %v3186, 1.0
        %v3214 = vadd.f32 %v3187, 1.0
        %v3215 = vadd.f32 %v3188, 1.0
        %v3216 = vadd.f32 %v3189, 1.0
        %v3217 = vadd.f32 %v3190, 1.0
        %v3218 = vadd.f32 %v3191, 1.0
        %v3219 = vadd.f32 %v3192, 1.0
        %v3220 = vadd.f32 %v3193, 1.0
        %v3221 = vadd.f32 %v3194, 1.0
        %v3222 = vadd.f32 %v3195, 1.0
        %v3223 = vadd.f32 %v3196, 1.0
        %v3224 = vadd.f32 %v3197, 1.0
        %v3225 = vadd.f32 %v3198, 1.0
        %v3226 = vadd.f32 %v3199, 1.0
        %v3227 = vadd.f32 %v3200, 1.0
        %v3228 = vmul.f32 %v3201, 0.5
        %v3229 = vmul.f32 %v3202, 0.5
        %v3230 = vmul.f32 %v3203, 0.5
        %v3231 = vmul.f32 %v3204, 0.5
        %v3232 = vmul.f32 %v3205, 0.5
        %v3233 = vmul.f32 %v3206, 0.5
        %v3234 = vmul.f32 %v3207, 0.5
        %v3235 = vmul.f32 %v3208, 0.5
        %v3236 = vmul.f32 %v3209, 0.5
        %v3237 = vmul.f32 %v3210, 0.5
        %v3238 = vmul.f32 %v3211, 0.5
        %v3239 = vmul.f32 %v3212, 0.5
        %v3240 = vmul.f32 %v3213, 0.5
        %v3241 = vmul.f32 %v3214, 0.5
        %v3242 = vmul.f32 %v3215, 0.5
        %v3243 = vmul.f32 %v3216, 0.5
        %v3244 = vmul.f32 %v3217, 0.5
        %v3245 = vmul.f32 %v3218, 0.5
        %v3246 = vmul.f32 %v3219, 0.5
        %v3247 = vmul.f32 %v3220, 0.5
        %v3248 = vmul.f32 %v3221, 0.5
        %v3249 = vmul.f32 %v3222, 0.5
        %v3250 = vmul.f32 %v3223, 0.5
        %v3251 = vmul.f32 %v3224, 0.5
        %v3252 = vmul.f32 %v3225, 0.5
        %v3253 = vmul.f32 %v3226, 0.5
        %v3254 = vmul.f32 %v3227, 0.5
        %v3255 = vlaneseq
        %v3256 = vand.u32 %v3255, 127
        %vm3257 = vcmp.ge.s32.totalorder %v3256, 18
        %vm3258 = vcmp.lt.s32.totalorder %v3256, 21
        %vm3259 = vmand %vm3257, %vm3258
        %v3260 = vsel %vm3259, %v3228, %v3038
        %v3261 = vsel %vm3259, %v3229, %v3041
        %v3262 = vsel %vm3259, %v3230, %v3046
        %v3263 = vsel %vm3259, %v3231, %v3049
        %v3264 = vsel %vm3259, %v3232, %v3054
        %v3265 = vsel %vm3259, %v3233, %v3057
        %v3266 = vsel %vm3259, %v3234, %v3062
        %v3267 = vsel %vm3259, %v3235, %v3065
        %v3268 = vsel %vm3259, %v3236, %v3070
        %v3269 = vsel %vm3259, %v3237, %v3073
        %v3270 = vsel %vm3259, %v3238, %v3078
        %v3271 = vsel %vm3259, %v3239, %v3081
        %v3272 = vsel %vm3259, %v3240, %v3086
        %v3273 = vsel %vm3259, %v3241, %v3089
        %v3274 = vsel %vm3259, %v3242, %v3094
        %v3275 = vsel %vm3259, %v3243, %v3097
        %v3276 = vsel %vm3259, %v3244, %v3102
        %v3277 = vsel %vm3259, %v3245, %v3105
        %v3278 = vsel %vm3259, %v3246, %v3110
        %v3279 = vsel %vm3259, %v3247, %v3113
        %v3280 = vsel %vm3259, %v3248, %v3118
        %v3281 = vsel %vm3259, %v3249, %v3121
        %v3282 = vsel %vm3259, %v3250, %v3126
        %v3283 = vsel %vm3259, %v3251, %v3129
        %v3284 = vsel %vm3259, %v3252, %v3134
        %v3285 = vsel %vm3259, %v3253, %v3137
        %v3286 = vsel %vm3259, %v3254, %v3142
        %3287 = vst [vmem:[%s246] sm:$0xff] %v3260
        %3288 = vst [vmem:[%s246 + $0x8] sm:$0xff] %v3261
        %3289 = vst [vmem:[%s246 + $0x10] sm:$0xff] %v3262
        %3290 = vst [vmem:[%s246 + $0x18] sm:$0xff] %v3263
        %3291 = vst [vmem:[%s246 + $0x20] sm:$0xff] %v3264
        %3292 = vst [vmem:[%s246 + $0x28] sm:$0xff] %v3265
        %3293 = vst [vmem:[%s246 + $0x30] sm:$0xff] %v3266
        %3294 = vst [vmem:[%s246 + $0x38] sm:$0xff] %v3267
        %3295 = vst [vmem:[%s246 + $0x40] sm:$0xff] %v3268
        %3296 = vst [vmem:[%s246 + $0x48] sm:$0xff] %v3269
        %3297 = vst [vmem:[%s246 + $0x50] sm:$0xff] %v3270
        %3298 = vst [vmem:[%s246 + $0x58] sm:$0xff] %v3271
        %3299 = vst [vmem:[%s246 + $0x60] sm:$0xff] %v3272
        %3300 = vst [vmem:[%s246 + $0x68] sm:$0xff] %v3273
        %3301 = vst [vmem:[%s246 + $0x70] sm:$0xff] %v3274
        %3302 = vst [vmem:[%s246 + $0x78] sm:$0xff] %v3275
        %3303 = vst [vmem:[%s246 + $0x80] sm:$0xff] %v3276
        %3304 = vst [vmem:[%s246 + $0x88] sm:$0xff] %v3277
        %3305 = vst [vmem:[%s246 + $0x90] sm:$0xff] %v3278
        %3306 = vst [vmem:[%s246 + $0x98] sm:$0xff] %v3279
        %3307 = vst [vmem:[%s246 + $0xa0] sm:$0xff] %v3280
        %3308 = vst [vmem:[%s246 + $0xa8] sm:$0xff] %v3281
        %3309 = vst [vmem:[%s246 + $0xb0] sm:$0xff] %v3282
        %3310 = vst [vmem:[%s246 + $0xb8] sm:$0xff] %v3283
        %3311 = vst [vmem:[%s246 + $0xc0] sm:$0xff] %v3284
        %3312 = vst [vmem:[%s246 + $0xc8] sm:$0xff] %v3285
        %3313 = vst [vmem:[%s246 + $0xd0] sm:$0xff] %v3286
        %s3314 = sand.u32 %s134, 1
        %s3315 = scalar_lea.sflag [#allocation4], %s3314
        %s3316 = sand.u32 %s134, 1
        %s3317 = smul.addr %s3316, 216
        %s3318 = scalar_lea.vmem [#allocation8], %s3317
        // Predicated region
        $region53: #{tpu_custom_call.1} parent=39 // pred_check
          %p3319 = pneg %p144
        $region54: #{tpu_custom_call.1} parent=39 // pred_check_branch
          %3321 = sbr.rel (%p3319) target = $region56
        $region55: #{tpu_custom_call.1} parent=39 // pred_region
          %s3322 = smul.u32 27, %s21
          %s3324 = ssub.s32 3456, 3456
          %3325 = vsyncadd %s3315, %s3324
          %s3326 = smul.addr %s3322, 128
          %s3327 = scalar_lea.hbm %s5, %s3326
          %s3328 = sshll.u32 %s3318, 4
          %s3329 = int_to_ptr.vmem [resolvable:$true] %s3328
          %3334 = dma.vmem_to_hbm [thread:$0]  %s3329, 3456, %s3327, %s3315, 128, 128, 8
        $region56: #{tpu_custom_call.1} parent=39 // pred_fallthru
          _
      $region40: #{tpu_custom_call.1} parent=5 // pred_fallthru
        _
      %p3335 = scmp.le.s32.totalorder 2, %s16
      // Predicated region
      $region57: #{tpu_custom_call.1} parent=5 // pred_check
        %p3336 = pneg %p3335
      $region58: #{tpu_custom_call.1} parent=5 // pred_check_branch
        %3338 = sbr.rel (%p3336) target = $region60
      $region59: #{tpu_custom_call.1} parent=5 // pred_region
        %s3339 = ssub.s32 %s16, 2
        // Predicated region
        $region61: #{tpu_custom_call.1} parent=59 // pred_check
          %p3340 = pneg %p150
        $region62: #{tpu_custom_call.1} parent=59 // pred_check_branch
          %3342 = sbr.rel (%p3340) target = $region64
        $region63: #{tpu_custom_call.1} parent=59 // pred_region
          %s3343 = sand.u32 %s135, 1
          %s3344 = scalar_lea.sflag [#allocation4], %s3343
          %s3345 = sand.u32 %s135, 1
          %s3346 = smul.addr %s3345, 216
          %s3347 = scalar_lea.vmem [#allocation8], %s3346
          %3348 = dma.done %s3344, 3456
        $region64: #{tpu_custom_call.1} parent=59 // pred_fallthru
          _
      $region60: #{tpu_custom_call.1} parent=5 // pred_fallthru
        _
    $region6: #{tpu_custom_call.1} parent=1 // loop_footer
      %s20 = sadd.s32 1, %s16
    $region7: #{tpu_custom_call.1} parent=1 // loop_footer_branch
      %15 = sbr.rel target = $region3
    $region8: #{tpu_custom_call.1} parent=1 // loop_exit
      _
    %3349 = vsyncpa [#allocation3], 1
    %s3350 = scalar_lea.sflag [#allocation3], 1
    %3351 = vsyncpa %s3350, 1
    %3352 = vsyncpa [#allocation6], 1
    %3353 = vsyncpa [#allocation4], 1
    %s3354 = scalar_lea.sflag [#allocation4], 1
    %3355 = vsyncpa %s3354, 1

</llo_original>
